<compile_context>
chip_gen: v6e
topology: v6e:2x2x1
jax: 0.10.0
libtpu: 0.0.40
codegen_flags: <defaults>
</compile_context>

<pallas_src>
import functools

import jax
import jax.numpy as jnp
from jax.experimental import pallas as pl
from jax.experimental.pallas import tpu as pltpu


# ----------------------------------------------------------------------------
# Fused kernel: LSTM encoder + masked mean-pool + MLP head + AUCM partial stats
# (one batch block per grid step)
# ----------------------------------------------------------------------------
def fused_predict_aucm_kernel(x_ref, mask_ref, inv_len_ref, labels_ref,
                              w_ih_ref, w_hh_ref, b_g_ref,
                              w1_ref, b1_ref, w2_ref, b2_ref,
                              logits_ref, scores_ref, stats_ref,
                              xg_ref):
    T, Bb, D = x_ref.shape
    H = w_hh_ref.shape[0]

    # ---- hoisted input projection: one [T*Bb, D] x [D, 4H] bf16 MXU matmul,
    #      staged through VMEM scratch (not carried as a live vreg value) ----
    x_flat = x_ref[...].reshape(T * Bb, D).astype(jnp.bfloat16)
    xg_ref[...] = (jnp.dot(x_flat, w_ih_ref[...],
                           preferred_element_type=jnp.float32)
                   + b_g_ref[...])                                # [T*Bb, 4H] f32

    h = jnp.zeros((Bb, H), jnp.float32)
    c = jnp.zeros((Bb, H), jnp.float32)
    acc = jnp.zeros((Bb, H), jnp.float32)

    # ---- fully unrolled recurrence (T is small & static) ----
    for t in range(T):
        gates = xg_ref[pl.ds(t * Bb, Bb), :] + jnp.dot(
            h.astype(jnp.bfloat16), w_hh_ref[...],
            preferred_element_type=jnp.float32)
        # PyTorch gate order: i, f, g, o
        i = jax.nn.sigmoid(gates[:, 0 * H:1 * H])
        f = jax.nn.sigmoid(gates[:, 1 * H:2 * H])
        g = jnp.tanh(gates[:, 2 * H:3 * H])
        o = jax.nn.sigmoid(gates[:, 3 * H:4 * H])
        c_new = f * c + i * g
        h_new = o * jnp.tanh(c_new)

        m = mask_ref[:, t:t + 1] > 0.0          # [Bb, 1] sublane-aligned slice
        acc = acc + jnp.where(m, h_new, 0.0)    # mean-pool numerator
        # freeze state past each sequence end (emulates packed sequences)
        h = jnp.where(m, h_new, h)
        c = jnp.where(m, c_new, c)

    pooled = acc * inv_len_ref[...]             # [Bb, H] mean pooling

    hid = jnp.maximum(
        jnp.dot(pooled.astype(jnp.bfloat16), w1_ref[...],
                preferred_element_type=jnp.float32) + b1_ref[...],
        0.0)
    logits = jnp.dot(hid.astype(jnp.bfloat16), w2_ref[...],
                     preferred_element_type=jnp.float32) + b2_ref[...]
    logits_ref[...] = logits                    # [Bb, C]

    # softmax(logits)[:, -1] == sigmoid(l1 - l0) for two classes
    # TODO(synk): verify reference feeds softmax[:, -1] (not raw logits) to AUCMLoss.
    score = jax.nn.sigmoid(logits[:, 1:2] - logits[:, 0:1])       # [Bb, 1]
    scores_ref[...] = score

    # ---- per-block AUCM partial statistics (a/b/alpha-independent sums);
    #      combined across batch blocks in the wrapper ----
    pos = labels_ref[...]                       # [Bb, 1] in {0, 1}
    neg = 1.0 - pos
    s0 = jnp.sum(pos)                           # number of positives
    s1 = jnp.sum(score * pos)
    s2 = jnp.sum(score * score * pos)
    s3 = jnp.sum(score * neg)
    s4 = jnp.sum(score * score * neg)
    lane = jax.lax.broadcasted_iota(jnp.int32, (8, 128), 1)
    stats_ref[...] = (jnp.where(lane == 0, s0, 0.0)
                      + jnp.where(lane == 1, s1, 0.0)
                      + jnp.where(lane == 2, s2, 0.0)
                      + jnp.where(lane == 3, s3, 0.0)
                      + jnp.where(lane == 4, s4, 0.0))


# ----------------------------------------------------------------------------
# Wrapper
# ----------------------------------------------------------------------------
def predict_and_aucm_loss(x, mask_bt, inv_len, labels, aucm_vars, params,
                          *, b_blk=8):
    """Fused forward of inner_model + AUCMLoss + softmax positive scores.

    x:         [T, B, D] f32 padded embeddings (sequence-major, like nn.LSTM)
    mask_bt:   [B, T]    f32, 1.0 where t < length (pre-transposed layout)
    inv_len:   [B, 1]    f32, 1 / max(length, 1)
    labels:    [B, 1]    f32 in {0, 1}
    aucm_vars: (3,) f32 persistent [a, b, alpha]
    params:    dict from prepare_params (bf16 MXU weights, f32 biases)
    returns (logits [B, C], scores [B, 1], loss scalar)
    """
    T, B, D = x.shape
    H = params["w_hh"].shape[0]
    Fd = params["w1"].shape[1]
    C = params["b2"].shape[-1]
    assert B % b_blk == 0, "batch must be a multiple of the batch block"
    nblk = B // b_blk

    in_specs = [
        pl.BlockSpec((T, b_blk, D), lambda j: (0, j, 0)),   # x (batch-blocked)
        pl.BlockSpec((b_blk, T), lambda j: (j, 0)),         # mask [B, T]
        pl.BlockSpec((b_blk, 1), lambda j: (j, 0)),         # 1/len
        pl.BlockSpec((b_blk, 1), lambda j: (j, 0)),         # labels
        pl.BlockSpec((D, 4 * H), lambda j: (0, 0)),         # w_ih (resident)
        pl.BlockSpec((H, 4 * H), lambda j: (0, 0)),         # w_hh (resident)
        pl.BlockSpec((1, 4 * H), lambda j: (0, 0)),         # b_g
        pl.BlockSpec((H, Fd), lambda j: (0, 0)),            # w1
        pl.BlockSpec((1, Fd), lambda j: (0, 0)),            # b1
        pl.BlockSpec((Fd, C), lambda j: (0, 0)),            # w2
        pl.BlockSpec((1, C), lambda j: (0, 0)),             # b2
    ]
    out_specs = (
        pl.BlockSpec((b_blk, C), lambda j: (j, 0)),         # logits
        pl.BlockSpec((b_blk, 1), lambda j: (j, 0)),         # scores
        pl.BlockSpec((8, 128), lambda j: (j, 0)),           # lane-dense stats
    )

    logits, scores, stats = pl.pallas_call(
        fused_predict_aucm_kernel,
        out_shape=(jax.ShapeDtypeStruct((B, C), jnp.float32),
                   jax.ShapeDtypeStruct((B, 1), jnp.float32),
                   jax.ShapeDtypeStruct((nblk * 8, 128), jnp.float32)),
        grid=(nblk,),
        in_specs=in_specs,
        out_specs=out_specs,
        scratch_shapes=[pltpu.VMEM((T * b_blk, 4 * H), jnp.float32)],
        compiler_params=pltpu.CompilerParams(
            dimension_semantics=("parallel",)),
    )(x, mask_bt, inv_len, labels,
      params["w_ih"], params["w_hh"], params["b_g"],
      params["w1"], params["b1"], params["w2"], params["b2"])

    # ---- tiny cross-block combine of AUCM partial sums (jitted with the call) ----
    st = jnp.sum(stats.reshape(nblk, 8, 128)[:, 0, :], axis=0)
    a, b, alpha = aucm_vars[0], aucm_vars[1], aucm_vars[2]
    bsz = jnp.float32(B)
    n_pos = st[0]
    p = n_pos / bsz                                # per-batch positive ratio
    # sum((score-a)^2 * pos) and sum((score-b)^2 * neg), expanded algebraically
    sum_sq_a_pos = st[2] - 2.0 * a * st[1] + a * a * n_pos
    sum_sq_b_neg = st[4] - 2.0 * b * st[3] + b * b * (bsz - n_pos)
    margin = 1.0
    loss = ((1.0 - p) * sum_sq_a_pos / bsz
            + p * sum_sq_b_neg / bsz
            + 2.0 * alpha * (p * (1.0 - p) * margin
                             + (p * st[3] - (1.0 - p) * st[1]) / bsz)
            - p * (1.0 - p) * alpha * alpha)
    return logits, scores, loss


def init_params(key, D, H, F, C):
    ks = jax.random.split(key, 4)
    s = 0.1
    return {
        "w_ih": s * jax.random.normal(ks[0], (D, 4 * H), jnp.float32),
        "w_hh": s * jax.random.normal(ks[1], (H, 4 * H), jnp.float32),
        # PyTorch nn.LSTM has separate b_ih and b_hh; fold them: b_g = b_ih + b_hh
        "b_g": jnp.zeros((1, 4 * H), jnp.float32),
        "w1": s * jax.random.normal(ks[2], (H, F), jnp.float32),
        "b1": jnp.zeros((1, F), jnp.float32),
        "w2": s * jax.random.normal(ks[3], (F, C), jnp.float32),
        "b2": jnp.zeros((1, C), jnp.float32),
    }


def prepare_params(p32):
    """One-time conversion of MXU operands to bf16 (persistent; no per-call casts)."""
    p = dict(p32)
    for k in ("w_ih", "w_hh", "w1", "w2"):
        p[k] = p32[k].astype(jnp.bfloat16)
    return p


if __name__ == "__main__":
    # Small shapes consistent with the module: seq=8, batch=16 (2 batch blocks),
    # word_embed_dim=128, encoder_dim=128, fc_dim=128, n_classes=2.
    T, B, D, H, F, C = 8, 16, 128, 128, 128, 2
    B_BLK = 8

    key = jax.random.PRNGKey(0)
    k_x, k_p = jax.random.split(key)

    params = prepare_params(init_params(k_p, D, H, F, C))

    # padded GloVe-style embeddings [T, B, D] and per-sentence lengths
    x = jax.random.normal(k_x, (T, B, D), jnp.float32)
    lens = jnp.array([8, 5, 8, 3, 8, 6, 2, 8, 4, 8, 7, 1, 8, 5, 3, 8], jnp.int32)
    t_idx = jnp.arange(T)[:, None]                                    # [T, 1]
    mask_tb = (t_idx < lens[None, :]).astype(jnp.float32)             # [T, B]
    x = x * mask_tb[..., None]                                        # zero-pad like collate_pad
    mask_bt = mask_tb.T                                               # [B, T] layout for the kernel
    inv_len = (1.0 / jnp.maximum(lens, 1).astype(jnp.float32))[:, None]    # [B, 1]
    labels = jnp.array([1, 0, 1, 1, 0, 0, 1, 0, 1, 1, 0, 0, 1, 0, 1, 0],
                       jnp.float32)[:, None]                          # [B, 1]

    # AUCM variables a, b, alpha are zero-initialized in Learner.__init__; kept
    # as a single persistent (3,) array (no per-call concatenation).
    aucm_vars = jnp.zeros((3,), jnp.float32)

    fwd = jax.jit(functools.partial(predict_and_aucm_loss, b_blk=B_BLK))
    logits, scores, loss = fwd(x, mask_bt, inv_len, labels, aucm_vars, params)

    # TODO(synk): bilevel outer loop (autograd grads, SGD steps, hyper-momentum,
    # z_params update, roc_auc_score) is host-side training logic, not kernel compute.

    jax.block_until_ready((logits, scores, loss))
    print("KERNEL_OK")
</pallas_src>

<mosaic_0001>
module attributes {stable_mosaic.version = 11 : i64} {
  func.func @fused_predict_aucm_kernel(%arg0: i32, %arg1: memref<8x8x128xf32, #tpu.memory_space<vmem>>, %arg2: memref<8x8xf32, #tpu.memory_space<vmem>>, %arg3: memref<8x1xf32, #tpu.memory_space<vmem>>, %arg4: memref<8x1xf32, #tpu.memory_space<vmem>>, %arg5: memref<128x512xbf16, #tpu.memory_space<vmem>>, %arg6: memref<128x512xbf16, #tpu.memory_space<vmem>>, %arg7: memref<1x512xf32, #tpu.memory_space<vmem>>, %arg8: memref<128x128xbf16, #tpu.memory_space<vmem>>, %arg9: memref<1x128xf32, #tpu.memory_space<vmem>>, %arg10: memref<128x2xbf16, #tpu.memory_space<vmem>>, %arg11: memref<1x2xf32, #tpu.memory_space<vmem>>, %arg12: memref<8x2xf32, #tpu.memory_space<vmem>>, %arg13: memref<8x1xf32, #tpu.memory_space<vmem>>, %arg14: memref<8x128xf32, #tpu.memory_space<vmem>>, %arg15: memref<64x512xf32, #tpu.memory_space<vmem>>) attributes {dimension_semantics = [#tpu.dimension_semantics<parallel>], iteration_bounds = array<i64: 2>, scalar_prefetch = 0 : i64, scratch_operands = 1 : i64, tpu.core_type = #tpu.core_type<tc>, window_params = [{transform_indices = @transform_0, window_bounds = array<i64: 8, 8, 128>}, {transform_indices = @transform_1, window_bounds = array<i64: 8, 8>}, {transform_indices = @transform_2, window_bounds = array<i64: 8, 1>}, {transform_indices = @transform_3, window_bounds = array<i64: 8, 1>}, {pipeline_mode = #tpu.pipeline_mode<synchronous>, transform_indices = @transform_4, window_bounds = array<i64: 128, 512>}, {pipeline_mode = #tpu.pipeline_mode<synchronous>, transform_indices = @transform_5, window_bounds = array<i64: 128, 512>}, {pipeline_mode = #tpu.pipeline_mode<synchronous>, transform_indices = @transform_6, window_bounds = array<i64: 1, 512>}, {pipeline_mode = #tpu.pipeline_mode<synchronous>, transform_indices = @transform_7, window_bounds = array<i64: 128, 128>}, {pipeline_mode = #tpu.pipeline_mode<synchronous>, transform_indices = @transform_8, window_bounds = array<i64: 1, 128>}, {pipeline_mode = #tpu.pipeline_mode<synchronous>, transform_indices = @transform_9, window_bounds = array<i64: 128, 2>}, {pipeline_mode = #tpu.pipeline_mode<synchronous>, transform_indices = @transform_10, window_bounds = array<i64: 1, 2>}, {transform_indices = @transform_11, window_bounds = array<i64: 8, 2>}, {transform_indices = @transform_12, window_bounds = array<i64: 8, 1>}, {transform_indices = @transform_13, window_bounds = array<i64: 8, 128>}]} {
    %c0 = arith.constant 0 : index
    %c0_0 = arith.constant 0 : index
    %c0_1 = arith.constant 0 : index
    %0 = vector.load %arg1[%c0, %c0_0, %c0_1] : memref<8x8x128xf32, #tpu.memory_space<vmem>>, vector<8x8x128xf32>
    %1 = vector.shape_cast %0 : vector<8x8x128xf32> to vector<64x128xf32>
    %2 = arith.truncf %1 : vector<64x128xf32> to vector<64x128xbf16>
    %c0_2 = arith.constant 0 : index
    %c0_3 = arith.constant 0 : index
    %3 = vector.load %arg5[%c0_2, %c0_3] : memref<128x512xbf16, #tpu.memory_space<vmem>>, vector<128x512xbf16>
    %cst = arith.constant dense<0.000000e+00> : vector<64x512xf32>
    %4 = tpu.matmul %2, %3, %cst {dimension_numbers = #tpu.dot_dimension_numbers<[1], [0], [0], [1], [0, 0, 1, 1], [], []>} : vector<64x128xbf16>, vector<128x512xbf16>, vector<64x512xf32> -> vector<64x512xf32>
    %c0_4 = arith.constant 0 : index
    %c0_5 = arith.constant 0 : index
    %5 = vector.load %arg7[%c0_4, %c0_5] : memref<1x512xf32, #tpu.memory_space<vmem>>, vector<1x512xf32>
    %6 = vector.broadcast %5 : vector<1x512xf32> to vector<64x512xf32>
    %7 = arith.addf %4, %6 : vector<64x512xf32>
    %c0_6 = arith.constant 0 : index
    %c0_7 = arith.constant 0 : index
    %8 = vector.load %arg15[%c0_6, %c0_7] : memref<64x512xf32, #tpu.memory_space<vmem>>, vector<64x512xf32>
    tpu.vector_store %arg15[%c0_6, %c0_7], %7 {strides = array<i32>} : memref<64x512xf32, #tpu.memory_space<vmem>>, vector<64x512xf32>,
    %cst_8 = arith.constant 0.000000e+00 : f32
    %9 = vector.broadcast %cst_8 : f32 to vector<8x128xf32>
    %cst_9 = arith.constant 0.000000e+00 : f32
    %10 = vector.broadcast %cst_9 : f32 to vector<8x128xf32>
    %cst_10 = arith.constant 0.000000e+00 : f32
    %11 = vector.broadcast %cst_10 : f32 to vector<8x128xf32>
    %c0_11 = arith.constant 0 : index
    %c0_12 = arith.constant 0 : index
    %12 = vector.load %arg15[%c0_11, %c0_12] : memref<64x512xf32, #tpu.memory_space<vmem>>, vector<8x512xf32>
    %13 = arith.truncf %9 : vector<8x128xf32> to vector<8x128xbf16>
    %c0_13 = arith.constant 0 : index
    %c0_14 = arith.constant 0 : index
    %14 = vector.load %arg6[%c0_13, %c0_14] : memref<128x512xbf16, #tpu.memory_space<vmem>>, vector<128x512xbf16>
    %cst_15 = arith.constant dense<0.000000e+00> : vector<8x512xf32>
    %15 = tpu.matmul %13, %14, %cst_15 {dimension_numbers = #tpu.dot_dimension_numbers<[1], [0], [0], [1], [0, 0, 1, 1], [], []>} : vector<8x128xbf16>, vector<128x512xbf16>, vector<8x512xf32> -> vector<8x512xf32>
    %16 = arith.addf %12, %15 : vector<8x512xf32>
    %17 = vector.extract_strided_slice %16 {offsets = [0, 0], sizes = [8, 128], strides = [1, 1]} : vector<8x512xf32> to vector<8x128xf32>
    %18 = arith.negf %17 : vector<8x128xf32>
    %19 = math.exp %18 : vector<8x128xf32>
    %cst_16 = arith.constant 1.000000e+00 : f32
    %20 = vector.broadcast %cst_16 : f32 to vector<8x128xf32>
    %21 = arith.addf %20, %19 : vector<8x128xf32>
    %22 = arith.divf %20, %21 : vector<8x128xf32>
    %23 = vector.extract_strided_slice %16 {offsets = [0, 128], sizes = [8, 128], strides = [1, 1]} : vector<8x512xf32> to vector<8x128xf32>
    %24 = arith.negf %23 : vector<8x128xf32>
    %25 = math.exp %24 : vector<8x128xf32>
    %cst_17 = arith.constant 1.000000e+00 : f32
    %26 = vector.broadcast %cst_17 : f32 to vector<8x128xf32>
    %27 = arith.addf %26, %25 : vector<8x128xf32>
    %28 = arith.divf %26, %27 : vector<8x128xf32>
    %29 = vector.extract_strided_slice %16 {offsets = [0, 256], sizes = [8, 128], strides = [1, 1]} : vector<8x512xf32> to vector<8x128xf32>
    %30 = math.tanh %29 : vector<8x128xf32>
    %31 = vector.extract_strided_slice %16 {offsets = [0, 384], sizes = [8, 128], strides = [1, 1]} : vector<8x512xf32> to vector<8x128xf32>
    %32 = arith.negf %31 : vector<8x128xf32>
    %33 = math.exp %32 : vector<8x128xf32>
    %cst_18 = arith.constant 1.000000e+00 : f32
    %34 = vector.broadcast %cst_18 : f32 to vector<8x128xf32>
    %35 = arith.addf %34, %33 : vector<8x128xf32>
    %36 = arith.divf %34, %35 : vector<8x128xf32>
    %37 = arith.mulf %28, %10 : vector<8x128xf32>
    %38 = arith.mulf %22, %30 : vector<8x128xf32>
    %39 = arith.addf %37, %38 : vector<8x128xf32>
    %40 = math.tanh %39 : vector<8x128xf32>
    %41 = arith.mulf %36, %40 : vector<8x128xf32>
    %c0_19 = arith.constant 0 : index
    %c0_20 = arith.constant 0 : index
    %42 = vector.load %arg2[%c0_19, %c0_20] : memref<8x8xf32, #tpu.memory_space<vmem>>, vector<8x1xf32>
    %cst_21 = arith.constant 0.000000e+00 : f32
    %43 = vector.broadcast %cst_21 : f32 to vector<8x1xf32>
    %44 = arith.cmpf ogt, %42, %43 : vector<8x1xf32>
    %cst_22 = arith.constant 0.000000e+00 : f32
    %45 = vector.shape_cast %44 : vector<8x1xi1> to vector<8x1xi1>
    %46 = vector.broadcast %45 : vector<8x1xi1> to vector<8x128xi1>
    %47 = vector.broadcast %cst_22 : f32 to vector<8x128xf32>
    %48 = arith.select %46, %41, %47 : vector<8x128xi1>, vector<8x128xf32>
    %49 = arith.addf %11, %48 : vector<8x128xf32>
    %50 = vector.shape_cast %44 : vector<8x1xi1> to vector<8x1xi1>
    %51 = vector.broadcast %50 : vector<8x1xi1> to vector<8x128xi1>
    %52 = arith.select %51, %41, %9 : vector<8x128xi1>, vector<8x128xf32>
    %53 = vector.shape_cast %44 : vector<8x1xi1> to vector<8x1xi1>
    %54 = vector.broadcast %53 : vector<8x1xi1> to vector<8x128xi1>
    %55 = arith.select %54, %39, %10 : vector<8x128xi1>, vector<8x128xf32>
    %c8 = arith.constant 8 : index
    %c0_23 = arith.constant 0 : index
    %56 = vector.load %arg15[%c8, %c0_23] : memref<64x512xf32, #tpu.memory_space<vmem>>, vector<8x512xf32>
    %57 = arith.truncf %52 : vector<8x128xf32> to vector<8x128xbf16>
    %c0_24 = arith.constant 0 : index
    %c0_25 = arith.constant 0 : index
    %58 = vector.load %arg6[%c0_24, %c0_25] : memref<128x512xbf16, #tpu.memory_space<vmem>>, vector<128x512xbf16>
    %cst_26 = arith.constant dense<0.000000e+00> : vector<8x512xf32>
    %59 = tpu.matmul %57, %58, %cst_26 {dimension_numbers = #tpu.dot_dimension_numbers<[1], [0], [0], [1], [0, 0, 1, 1], [], []>} : vector<8x128xbf16>, vector<128x512xbf16>, vector<8x512xf32> -> vector<8x512xf32>
    %60 = arith.addf %56, %59 : vector<8x512xf32>
    %61 = vector.extract_strided_slice %60 {offsets = [0, 0], sizes = [8, 128], strides = [1, 1]} : vector<8x512xf32> to vector<8x128xf32>
    %62 = arith.negf %61 : vector<8x128xf32>
    %63 = math.exp %62 : vector<8x128xf32>
    %cst_27 = arith.constant 1.000000e+00 : f32
    %64 = vector.broadcast %cst_27 : f32 to vector<8x128xf32>
    %65 = arith.addf %64, %63 : vector<8x128xf32>
    %66 = arith.divf %64, %65 : vector<8x128xf32>
    %67 = vector.extract_strided_slice %60 {offsets = [0, 128], sizes = [8, 128], strides = [1, 1]} : vector<8x512xf32> to vector<8x128xf32>
    %68 = arith.negf %67 : vector<8x128xf32>
    %69 = math.exp %68 : vector<8x128xf32>
    %cst_28 = arith.constant 1.000000e+00 : f32
    %70 = vector.broadcast %cst_28 : f32 to vector<8x128xf32>
    %71 = arith.addf %70, %69 : vector<8x128xf32>
    %72 = arith.divf %70, %71 : vector<8x128xf32>
    %73 = vector.extract_strided_slice %60 {offsets = [0, 256], sizes = [8, 128], strides = [1, 1]} : vector<8x512xf32> to vector<8x128xf32>
    %74 = math.tanh %73 : vector<8x128xf32>
    %75 = vector.extract_strided_slice %60 {offsets = [0, 384], sizes = [8, 128], strides = [1, 1]} : vector<8x512xf32> to vector<8x128xf32>
    %76 = arith.negf %75 : vector<8x128xf32>
    %77 = math.exp %76 : vector<8x128xf32>
    %cst_29 = arith.constant 1.000000e+00 : f32
    %78 = vector.broadcast %cst_29 : f32 to vector<8x128xf32>
    %79 = arith.addf %78, %77 : vector<8x128xf32>
    %80 = arith.divf %78, %79 : vector<8x128xf32>
    %81 = arith.mulf %72, %55 : vector<8x128xf32>
    %82 = arith.mulf %66, %74 : vector<8x128xf32>
    %83 = arith.addf %81, %82 : vector<8x128xf32>
    %84 = math.tanh %83 : vector<8x128xf32>
    %85 = arith.mulf %80, %84 : vector<8x128xf32>
    %c0_30 = arith.constant 0 : index
    %c1 = arith.constant 1 : index
    %86 = vector.load %arg2[%c0_30, %c1] : memref<8x8xf32, #tpu.memory_space<vmem>>, vector<8x1xf32>
    %cst_31 = arith.constant 0.000000e+00 : f32
    %87 = vector.broadcast %cst_31 : f32 to vector<8x1xf32>
    %88 = arith.cmpf ogt, %86, %87 : vector<8x1xf32>
    %cst_32 = arith.constant 0.000000e+00 : f32
    %89 = vector.shape_cast %88 : vector<8x1xi1> to vector<8x1xi1>
    %90 = vector.broadcast %89 : vector<8x1xi1> to vector<8x128xi1>
    %91 = vector.broadcast %cst_32 : f32 to vector<8x128xf32>
    %92 = arith.select %90, %85, %91 : vector<8x128xi1>, vector<8x128xf32>
    %93 = arith.addf %49, %92 : vector<8x128xf32>
    %94 = vector.shape_cast %88 : vector<8x1xi1> to vector<8x1xi1>
    %95 = vector.broadcast %94 : vector<8x1xi1> to vector<8x128xi1>
    %96 = arith.select %95, %85, %52 : vector<8x128xi1>, vector<8x128xf32>
    %97 = vector.shape_cast %88 : vector<8x1xi1> to vector<8x1xi1>
    %98 = vector.broadcast %97 : vector<8x1xi1> to vector<8x128xi1>
    %99 = arith.select %98, %83, %55 : vector<8x128xi1>, vector<8x128xf32>
    %c16 = arith.constant 16 : index
    %c0_33 = arith.constant 0 : index
    %100 = vector.load %arg15[%c16, %c0_33] : memref<64x512xf32, #tpu.memory_space<vmem>>, vector<8x512xf32>
    %101 = arith.truncf %96 : vector<8x128xf32> to vector<8x128xbf16>
    %c0_34 = arith.constant 0 : index
    %c0_35 = arith.constant 0 : index
    %102 = vector.load %arg6[%c0_34, %c0_35] : memref<128x512xbf16, #tpu.memory_space<vmem>>, vector<128x512xbf16>
    %cst_36 = arith.constant dense<0.000000e+00> : vector<8x512xf32>
    %103 = tpu.matmul %101, %102, %cst_36 {dimension_numbers = #tpu.dot_dimension_numbers<[1], [0], [0], [1], [0, 0, 1, 1], [], []>} : vector<8x128xbf16>, vector<128x512xbf16>, vector<8x512xf32> -> vector<8x512xf32>
    %104 = arith.addf %100, %103 : vector<8x512xf32>
    %105 = vector.extract_strided_slice %104 {offsets = [0, 0], sizes = [8, 128], strides = [1, 1]} : vector<8x512xf32> to vector<8x128xf32>
    %106 = arith.negf %105 : vector<8x128xf32>
    %107 = math.exp %106 : vector<8x128xf32>
    %cst_37 = arith.constant 1.000000e+00 : f32
    %108 = vector.broadcast %cst_37 : f32 to vector<8x128xf32>
    %109 = arith.addf %108, %107 : vector<8x128xf32>
    %110 = arith.divf %108, %109 : vector<8x128xf32>
    %111 = vector.extract_strided_slice %104 {offsets = [0, 128], sizes = [8, 128], strides = [1, 1]} : vector<8x512xf32> to vector<8x128xf32>
    %112 = arith.negf %111 : vector<8x128xf32>
    %113 = math.exp %112 : vector<8x128xf32>
    %cst_38 = arith.constant 1.000000e+00 : f32
    %114 = vector.broadcast %cst_38 : f32 to vector<8x128xf32>
    %115 = arith.addf %114, %113 : vector<8x128xf32>
    %116 = arith.divf %114, %115 : vector<8x128xf32>
    %117 = vector.extract_strided_slice %104 {offsets = [0, 256], sizes = [8, 128], strides = [1, 1]} : vector<8x512xf32> to vector<8x128xf32>
    %118 = math.tanh %117 : vector<8x128xf32>
    %119 = vector.extract_strided_slice %104 {offsets = [0, 384], sizes = [8, 128], strides = [1, 1]} : vector<8x512xf32> to vector<8x128xf32>
    %120 = arith.negf %119 : vector<8x128xf32>
    %121 = math.exp %120 : vector<8x128xf32>
    %cst_39 = arith.constant 1.000000e+00 : f32
    %122 = vector.broadcast %cst_39 : f32 to vector<8x128xf32>
    %123 = arith.addf %122, %121 : vector<8x128xf32>
    %124 = arith.divf %122, %123 : vector<8x128xf32>
    %125 = arith.mulf %116, %99 : vector<8x128xf32>
    %126 = arith.mulf %110, %118 : vector<8x128xf32>
    %127 = arith.addf %125, %126 : vector<8x128xf32>
    %128 = math.tanh %127 : vector<8x128xf32>
    %129 = arith.mulf %124, %128 : vector<8x128xf32>
    %c0_40 = arith.constant 0 : index
    %c2 = arith.constant 2 : index
    %130 = vector.load %arg2[%c0_40, %c2] : memref<8x8xf32, #tpu.memory_space<vmem>>, vector<8x1xf32>
    %cst_41 = arith.constant 0.000000e+00 : f32
    %131 = vector.broadcast %cst_41 : f32 to vector<8x1xf32>
    %132 = arith.cmpf ogt, %130, %131 : vector<8x1xf32>
    %cst_42 = arith.constant 0.000000e+00 : f32
    %133 = vector.shape_cast %132 : vector<8x1xi1> to vector<8x1xi1>
    %134 = vector.broadcast %133 : vector<8x1xi1> to vector<8x128xi1>
    %135 = vector.broadcast %cst_42 : f32 to vector<8x128xf32>
    %136 = arith.select %134, %129, %135 : vector<8x128xi1>, vector<8x128xf32>
    %137 = arith.addf %93, %136 : vector<8x128xf32>
    %138 = vector.shape_cast %132 : vector<8x1xi1> to vector<8x1xi1>
    %139 = vector.broadcast %138 : vector<8x1xi1> to vector<8x128xi1>
    %140 = arith.select %139, %129, %96 : vector<8x128xi1>, vector<8x128xf32>
    %141 = vector.shape_cast %132 : vector<8x1xi1> to vector<8x1xi1>
    %142 = vector.broadcast %141 : vector<8x1xi1> to vector<8x128xi1>
    %143 = arith.select %142, %127, %99 : vector<8x128xi1>, vector<8x128xf32>
    %c24 = arith.constant 24 : index
    %c0_43 = arith.constant 0 : index
    %144 = vector.load %arg15[%c24, %c0_43] : memref<64x512xf32, #tpu.memory_space<vmem>>, vector<8x512xf32>
    %145 = arith.truncf %140 : vector<8x128xf32> to vector<8x128xbf16>
    %c0_44 = arith.constant 0 : index
    %c0_45 = arith.constant 0 : index
    %146 = vector.load %arg6[%c0_44, %c0_45] : memref<128x512xbf16, #tpu.memory_space<vmem>>, vector<128x512xbf16>
    %cst_46 = arith.constant dense<0.000000e+00> : vector<8x512xf32>
    %147 = tpu.matmul %145, %146, %cst_46 {dimension_numbers = #tpu.dot_dimension_numbers<[1], [0], [0], [1], [0, 0, 1, 1], [], []>} : vector<8x128xbf16>, vector<128x512xbf16>, vector<8x512xf32> -> vector<8x512xf32>
    %148 = arith.addf %144, %147 : vector<8x512xf32>
    %149 = vector.extract_strided_slice %148 {offsets = [0, 0], sizes = [8, 128], strides = [1, 1]} : vector<8x512xf32> to vector<8x128xf32>
    %150 = arith.negf %149 : vector<8x128xf32>
    %151 = math.exp %150 : vector<8x128xf32>
    %cst_47 = arith.constant 1.000000e+00 : f32
    %152 = vector.broadcast %cst_47 : f32 to vector<8x128xf32>
    %153 = arith.addf %152, %151 : vector<8x128xf32>
    %154 = arith.divf %152, %153 : vector<8x128xf32>
    %155 = vector.extract_strided_slice %148 {offsets = [0, 128], sizes = [8, 128], strides = [1, 1]} : vector<8x512xf32> to vector<8x128xf32>
    %156 = arith.negf %155 : vector<8x128xf32>
    %157 = math.exp %156 : vector<8x128xf32>
    %cst_48 = arith.constant 1.000000e+00 : f32
    %158 = vector.broadcast %cst_48 : f32 to vector<8x128xf32>
    %159 = arith.addf %158, %157 : vector<8x128xf32>
    %160 = arith.divf %158, %159 : vector<8x128xf32>
    %161 = vector.extract_strided_slice %148 {offsets = [0, 256], sizes = [8, 128], strides = [1, 1]} : vector<8x512xf32> to vector<8x128xf32>
    %162 = math.tanh %161 : vector<8x128xf32>
    %163 = vector.extract_strided_slice %148 {offsets = [0, 384], sizes = [8, 128], strides = [1, 1]} : vector<8x512xf32> to vector<8x128xf32>
    %164 = arith.negf %163 : vector<8x128xf32>
    %165 = math.exp %164 : vector<8x128xf32>
    %cst_49 = arith.constant 1.000000e+00 : f32
    %166 = vector.broadcast %cst_49 : f32 to vector<8x128xf32>
    %167 = arith.addf %166, %165 : vector<8x128xf32>
    %168 = arith.divf %166, %167 : vector<8x128xf32>
    %169 = arith.mulf %160, %143 : vector<8x128xf32>
    %170 = arith.mulf %154, %162 : vector<8x128xf32>
    %171 = arith.addf %169, %170 : vector<8x128xf32>
    %172 = math.tanh %171 : vector<8x128xf32>
    %173 = arith.mulf %168, %172 : vector<8x128xf32>
    %c0_50 = arith.constant 0 : index
    %c3 = arith.constant 3 : index
    %174 = vector.load %arg2[%c0_50, %c3] : memref<8x8xf32, #tpu.memory_space<vmem>>, vector<8x1xf32>
    %cst_51 = arith.constant 0.000000e+00 : f32
    %175 = vector.broadcast %cst_51 : f32 to vector<8x1xf32>
    %176 = arith.cmpf ogt, %174, %175 : vector<8x1xf32>
    %cst_52 = arith.constant 0.000000e+00 : f32
    %177 = vector.shape_cast %176 : vector<8x1xi1> to vector<8x1xi1>
    %178 = vector.broadcast %177 : vector<8x1xi1> to vector<8x128xi1>
    %179 = vector.broadcast %cst_52 : f32 to vector<8x128xf32>
    %180 = arith.select %178, %173, %179 : vector<8x128xi1>, vector<8x128xf32>
    %181 = arith.addf %137, %180 : vector<8x128xf32>
    %182 = vector.shape_cast %176 : vector<8x1xi1> to vector<8x1xi1>
    %183 = vector.broadcast %182 : vector<8x1xi1> to vector<8x128xi1>
    %184 = arith.select %183, %173, %140 : vector<8x128xi1>, vector<8x128xf32>
    %185 = vector.shape_cast %176 : vector<8x1xi1> to vector<8x1xi1>
    %186 = vector.broadcast %185 : vector<8x1xi1> to vector<8x128xi1>
    %187 = arith.select %186, %171, %143 : vector<8x128xi1>, vector<8x128xf32>
    %c32 = arith.constant 32 : index
    %c0_53 = arith.constant 0 : index
    %188 = vector.load %arg15[%c32, %c0_53] : memref<64x512xf32, #tpu.memory_space<vmem>>, vector<8x512xf32>
    %189 = arith.truncf %184 : vector<8x128xf32> to vector<8x128xbf16>
    %c0_54 = arith.constant 0 : index
    %c0_55 = arith.constant 0 : index
    %190 = vector.load %arg6[%c0_54, %c0_55] : memref<128x512xbf16, #tpu.memory_space<vmem>>, vector<128x512xbf16>
    %cst_56 = arith.constant dense<0.000000e+00> : vector<8x512xf32>
    %191 = tpu.matmul %189, %190, %cst_56 {dimension_numbers = #tpu.dot_dimension_numbers<[1], [0], [0], [1], [0, 0, 1, 1], [], []>} : vector<8x128xbf16>, vector<128x512xbf16>, vector<8x512xf32> -> vector<8x512xf32>
    %192 = arith.addf %188, %191 : vector<8x512xf32>
    %193 = vector.extract_strided_slice %192 {offsets = [0, 0], sizes = [8, 128], strides = [1, 1]} : vector<8x512xf32> to vector<8x128xf32>
    %194 = arith.negf %193 : vector<8x128xf32>
    %195 = math.exp %194 : vector<8x128xf32>
    %cst_57 = arith.constant 1.000000e+00 : f32
    %196 = vector.broadcast %cst_57 : f32 to vector<8x128xf32>
    %197 = arith.addf %196, %195 : vector<8x128xf32>
    %198 = arith.divf %196, %197 : vector<8x128xf32>
    %199 = vector.extract_strided_slice %192 {offsets = [0, 128], sizes = [8, 128], strides = [1, 1]} : vector<8x512xf32> to vector<8x128xf32>
    %200 = arith.negf %199 : vector<8x128xf32>
    %201 = math.exp %200 : vector<8x128xf32>
    %cst_58 = arith.constant 1.000000e+00 : f32
    %202 = vector.broadcast %cst_58 : f32 to vector<8x128xf32>
    %203 = arith.addf %202, %201 : vector<8x128xf32>
    %204 = arith.divf %202, %203 : vector<8x128xf32>
    %205 = vector.extract_strided_slice %192 {offsets = [0, 256], sizes = [8, 128], strides = [1, 1]} : vector<8x512xf32> to vector<8x128xf32>
    %206 = math.tanh %205 : vector<8x128xf32>
    %207 = vector.extract_strided_slice %192 {offsets = [0, 384], sizes = [8, 128], strides = [1, 1]} : vector<8x512xf32> to vector<8x128xf32>
    %208 = arith.negf %207 : vector<8x128xf32>
    %209 = math.exp %208 : vector<8x128xf32>
    %cst_59 = arith.constant 1.000000e+00 : f32
    %210 = vector.broadcast %cst_59 : f32 to vector<8x128xf32>
    %211 = arith.addf %210, %209 : vector<8x128xf32>
    %212 = arith.divf %210, %211 : vector<8x128xf32>
    %213 = arith.mulf %204, %187 : vector<8x128xf32>
    %214 = arith.mulf %198, %206 : vector<8x128xf32>
    %215 = arith.addf %213, %214 : vector<8x128xf32>
    %216 = math.tanh %215 : vector<8x128xf32>
    %217 = arith.mulf %212, %216 : vector<8x128xf32>
    %c0_60 = arith.constant 0 : index
    %c4 = arith.constant 4 : index
    %218 = vector.load %arg2[%c0_60, %c4] : memref<8x8xf32, #tpu.memory_space<vmem>>, vector<8x1xf32>
    %cst_61 = arith.constant 0.000000e+00 : f32
    %219 = vector.broadcast %cst_61 : f32 to vector<8x1xf32>
    %220 = arith.cmpf ogt, %218, %219 : vector<8x1xf32>
    %cst_62 = arith.constant 0.000000e+00 : f32
    %221 = vector.shape_cast %220 : vector<8x1xi1> to vector<8x1xi1>
    %222 = vector.broadcast %221 : vector<8x1xi1> to vector<8x128xi1>
    %223 = vector.broadcast %cst_62 : f32 to vector<8x128xf32>
    %224 = arith.select %222, %217, %223 : vector<8x128xi1>, vector<8x128xf32>
    %225 = arith.addf %181, %224 : vector<8x128xf32>
    %226 = vector.shape_cast %220 : vector<8x1xi1> to vector<8x1xi1>
    %227 = vector.broadcast %226 : vector<8x1xi1> to vector<8x128xi1>
    %228 = arith.select %227, %217, %184 : vector<8x128xi1>, vector<8x128xf32>
    %229 = vector.shape_cast %220 : vector<8x1xi1> to vector<8x1xi1>
    %230 = vector.broadcast %229 : vector<8x1xi1> to vector<8x128xi1>
    %231 = arith.select %230, %215, %187 : vector<8x128xi1>, vector<8x128xf32>
    %c40 = arith.constant 40 : index
    %c0_63 = arith.constant 0 : index
    %232 = vector.load %arg15[%c40, %c0_63] : memref<64x512xf32, #tpu.memory_space<vmem>>, vector<8x512xf32>
    %233 = arith.truncf %228 : vector<8x128xf32> to vector<8x128xbf16>
    %c0_64 = arith.constant 0 : index
    %c0_65 = arith.constant 0 : index
    %234 = vector.load %arg6[%c0_64, %c0_65] : memref<128x512xbf16, #tpu.memory_space<vmem>>, vector<128x512xbf16>
    %cst_66 = arith.constant dense<0.000000e+00> : vector<8x512xf32>
    %235 = tpu.matmul %233, %234, %cst_66 {dimension_numbers = #tpu.dot_dimension_numbers<[1], [0], [0], [1], [0, 0, 1, 1], [], []>} : vector<8x128xbf16>, vector<128x512xbf16>, vector<8x512xf32> -> vector<8x512xf32>
    %236 = arith.addf %232, %235 : vector<8x512xf32>
    %237 = vector.extract_strided_slice %236 {offsets = [0, 0], sizes = [8, 128], strides = [1, 1]} : vector<8x512xf32> to vector<8x128xf32>
    %238 = arith.negf %237 : vector<8x128xf32>
    %239 = math.exp %238 : vector<8x128xf32>
    %cst_67 = arith.constant 1.000000e+00 : f32
    %240 = vector.broadcast %cst_67 : f32 to vector<8x128xf32>
    %241 = arith.addf %240, %239 : vector<8x128xf32>
    %242 = arith.divf %240, %241 : vector<8x128xf32>
    %243 = vector.extract_strided_slice %236 {offsets = [0, 128], sizes = [8, 128], strides = [1, 1]} : vector<8x512xf32> to vector<8x128xf32>
    %244 = arith.negf %243 : vector<8x128xf32>
    %245 = math.exp %244 : vector<8x128xf32>
    %cst_68 = arith.constant 1.000000e+00 : f32
    %246 = vector.broadcast %cst_68 : f32 to vector<8x128xf32>
    %247 = arith.addf %246, %245 : vector<8x128xf32>
    %248 = arith.divf %246, %247 : vector<8x128xf32>
    %249 = vector.extract_strided_slice %236 {offsets = [0, 256], sizes = [8, 128], strides = [1, 1]} : vector<8x512xf32> to vector<8x128xf32>
    %250 = math.tanh %249 : vector<8x128xf32>
    %251 = vector.extract_strided_slice %236 {offsets = [0, 384], sizes = [8, 128], strides = [1, 1]} : vector<8x512xf32> to vector<8x128xf32>
    %252 = arith.negf %251 : vector<8x128xf32>
    %253 = math.exp %252 : vector<8x128xf32>
    %cst_69 = arith.constant 1.000000e+00 : f32
    %254 = vector.broadcast %cst_69 : f32 to vector<8x128xf32>
    %255 = arith.addf %254, %253 : vector<8x128xf32>
    %256 = arith.divf %254, %255 : vector<8x128xf32>
    %257 = arith.mulf %248, %231 : vector<8x128xf32>
    %258 = arith.mulf %242, %250 : vector<8x128xf32>
    %259 = arith.addf %257, %258 : vector<8x128xf32>
    %260 = math.tanh %259 : vector<8x128xf32>
    %261 = arith.mulf %256, %260 : vector<8x128xf32>
    %c0_70 = arith.constant 0 : index
    %c5 = arith.constant 5 : index
    %262 = vector.load %arg2[%c0_70, %c5] : memref<8x8xf32, #tpu.memory_space<vmem>>, vector<8x1xf32>
    %cst_71 = arith.constant 0.000000e+00 : f32
    %263 = vector.broadcast %cst_71 : f32 to vector<8x1xf32>
    %264 = arith.cmpf ogt, %262, %263 : vector<8x1xf32>
    %cst_72 = arith.constant 0.000000e+00 : f32
    %265 = vector.shape_cast %264 : vector<8x1xi1> to vector<8x1xi1>
    %266 = vector.broadcast %265 : vector<8x1xi1> to vector<8x128xi1>
    %267 = vector.broadcast %cst_72 : f32 to vector<8x128xf32>
    %268 = arith.select %266, %261, %267 : vector<8x128xi1>, vector<8x128xf32>
    %269 = arith.addf %225, %268 : vector<8x128xf32>
    %270 = vector.shape_cast %264 : vector<8x1xi1> to vector<8x1xi1>
    %271 = vector.broadcast %270 : vector<8x1xi1> to vector<8x128xi1>
    %272 = arith.select %271, %261, %228 : vector<8x128xi1>, vector<8x128xf32>
    %273 = vector.shape_cast %264 : vector<8x1xi1> to vector<8x1xi1>
    %274 = vector.broadcast %273 : vector<8x1xi1> to vector<8x128xi1>
    %275 = arith.select %274, %259, %231 : vector<8x128xi1>, vector<8x128xf32>
    %c48 = arith.constant 48 : index
    %c0_73 = arith.constant 0 : index
    %276 = vector.load %arg15[%c48, %c0_73] : memref<64x512xf32, #tpu.memory_space<vmem>>, vector<8x512xf32>
    %277 = arith.truncf %272 : vector<8x128xf32> to vector<8x128xbf16>
    %c0_74 = arith.constant 0 : index
    %c0_75 = arith.constant 0 : index
    %278 = vector.load %arg6[%c0_74, %c0_75] : memref<128x512xbf16, #tpu.memory_space<vmem>>, vector<128x512xbf16>
    %cst_76 = arith.constant dense<0.000000e+00> : vector<8x512xf32>
    %279 = tpu.matmul %277, %278, %cst_76 {dimension_numbers = #tpu.dot_dimension_numbers<[1], [0], [0], [1], [0, 0, 1, 1], [], []>} : vector<8x128xbf16>, vector<128x512xbf16>, vector<8x512xf32> -> vector<8x512xf32>
    %280 = arith.addf %276, %279 : vector<8x512xf32>
    %281 = vector.extract_strided_slice %280 {offsets = [0, 0], sizes = [8, 128], strides = [1, 1]} : vector<8x512xf32> to vector<8x128xf32>
    %282 = arith.negf %281 : vector<8x128xf32>
    %283 = math.exp %282 : vector<8x128xf32>
    %cst_77 = arith.constant 1.000000e+00 : f32
    %284 = vector.broadcast %cst_77 : f32 to vector<8x128xf32>
    %285 = arith.addf %284, %283 : vector<8x128xf32>
    %286 = arith.divf %284, %285 : vector<8x128xf32>
    %287 = vector.extract_strided_slice %280 {offsets = [0, 128], sizes = [8, 128], strides = [1, 1]} : vector<8x512xf32> to vector<8x128xf32>
    %288 = arith.negf %287 : vector<8x128xf32>
    %289 = math.exp %288 : vector<8x128xf32>
    %cst_78 = arith.constant 1.000000e+00 : f32
    %290 = vector.broadcast %cst_78 : f32 to vector<8x128xf32>
    %291 = arith.addf %290, %289 : vector<8x128xf32>
    %292 = arith.divf %290, %291 : vector<8x128xf32>
    %293 = vector.extract_strided_slice %280 {offsets = [0, 256], sizes = [8, 128], strides = [1, 1]} : vector<8x512xf32> to vector<8x128xf32>
    %294 = math.tanh %293 : vector<8x128xf32>
    %295 = vector.extract_strided_slice %280 {offsets = [0, 384], sizes = [8, 128], strides = [1, 1]} : vector<8x512xf32> to vector<8x128xf32>
    %296 = arith.negf %295 : vector<8x128xf32>
    %297 = math.exp %296 : vector<8x128xf32>
    %cst_79 = arith.constant 1.000000e+00 : f32
    %298 = vector.broadcast %cst_79 : f32 to vector<8x128xf32>
    %299 = arith.addf %298, %297 : vector<8x128xf32>
    %300 = arith.divf %298, %299 : vector<8x128xf32>
    %301 = arith.mulf %292, %275 : vector<8x128xf32>
    %302 = arith.mulf %286, %294 : vector<8x128xf32>
    %303 = arith.addf %301, %302 : vector<8x128xf32>
    %304 = math.tanh %303 : vector<8x128xf32>
    %305 = arith.mulf %300, %304 : vector<8x128xf32>
    %c0_80 = arith.constant 0 : index
    %c6 = arith.constant 6 : index
    %306 = vector.load %arg2[%c0_80, %c6] : memref<8x8xf32, #tpu.memory_space<vmem>>, vector<8x1xf32>
    %cst_81 = arith.constant 0.000000e+00 : f32
    %307 = vector.broadcast %cst_81 : f32 to vector<8x1xf32>
    %308 = arith.cmpf ogt, %306, %307 : vector<8x1xf32>
    %cst_82 = arith.constant 0.000000e+00 : f32
    %309 = vector.shape_cast %308 : vector<8x1xi1> to vector<8x1xi1>
    %310 = vector.broadcast %309 : vector<8x1xi1> to vector<8x128xi1>
    %311 = vector.broadcast %cst_82 : f32 to vector<8x128xf32>
    %312 = arith.select %310, %305, %311 : vector<8x128xi1>, vector<8x128xf32>
    %313 = arith.addf %269, %312 : vector<8x128xf32>
    %314 = vector.shape_cast %308 : vector<8x1xi1> to vector<8x1xi1>
    %315 = vector.broadcast %314 : vector<8x1xi1> to vector<8x128xi1>
    %316 = arith.select %315, %305, %272 : vector<8x128xi1>, vector<8x128xf32>
    %317 = vector.shape_cast %308 : vector<8x1xi1> to vector<8x1xi1>
    %318 = vector.broadcast %317 : vector<8x1xi1> to vector<8x128xi1>
    %319 = arith.select %318, %303, %275 : vector<8x128xi1>, vector<8x128xf32>
    %c56 = arith.constant 56 : index
    %c0_83 = arith.constant 0 : index
    %320 = vector.load %arg15[%c56, %c0_83] : memref<64x512xf32, #tpu.memory_space<vmem>>, vector<8x512xf32>
    %321 = arith.truncf %316 : vector<8x128xf32> to vector<8x128xbf16>
    %c0_84 = arith.constant 0 : index
    %c0_85 = arith.constant 0 : index
    %322 = vector.load %arg6[%c0_84, %c0_85] : memref<128x512xbf16, #tpu.memory_space<vmem>>, vector<128x512xbf16>
    %cst_86 = arith.constant dense<0.000000e+00> : vector<8x512xf32>
    %323 = tpu.matmul %321, %322, %cst_86 {dimension_numbers = #tpu.dot_dimension_numbers<[1], [0], [0], [1], [0, 0, 1, 1], [], []>} : vector<8x128xbf16>, vector<128x512xbf16>, vector<8x512xf32> -> vector<8x512xf32>
    %324 = arith.addf %320, %323 : vector<8x512xf32>
    %325 = vector.extract_strided_slice %324 {offsets = [0, 0], sizes = [8, 128], strides = [1, 1]} : vector<8x512xf32> to vector<8x128xf32>
    %326 = arith.negf %325 : vector<8x128xf32>
    %327 = math.exp %326 : vector<8x128xf32>
    %cst_87 = arith.constant 1.000000e+00 : f32
    %328 = vector.broadcast %cst_87 : f32 to vector<8x128xf32>
    %329 = arith.addf %328, %327 : vector<8x128xf32>
    %330 = arith.divf %328, %329 : vector<8x128xf32>
    %331 = vector.extract_strided_slice %324 {offsets = [0, 128], sizes = [8, 128], strides = [1, 1]} : vector<8x512xf32> to vector<8x128xf32>
    %332 = arith.negf %331 : vector<8x128xf32>
    %333 = math.exp %332 : vector<8x128xf32>
    %cst_88 = arith.constant 1.000000e+00 : f32
    %334 = vector.broadcast %cst_88 : f32 to vector<8x128xf32>
    %335 = arith.addf %334, %333 : vector<8x128xf32>
    %336 = arith.divf %334, %335 : vector<8x128xf32>
    %337 = vector.extract_strided_slice %324 {offsets = [0, 256], sizes = [8, 128], strides = [1, 1]} : vector<8x512xf32> to vector<8x128xf32>
    %338 = math.tanh %337 : vector<8x128xf32>
    %339 = vector.extract_strided_slice %324 {offsets = [0, 384], sizes = [8, 128], strides = [1, 1]} : vector<8x512xf32> to vector<8x128xf32>
    %340 = arith.negf %339 : vector<8x128xf32>
    %341 = math.exp %340 : vector<8x128xf32>
    %cst_89 = arith.constant 1.000000e+00 : f32
    %342 = vector.broadcast %cst_89 : f32 to vector<8x128xf32>
    %343 = arith.addf %342, %341 : vector<8x128xf32>
    %344 = arith.divf %342, %343 : vector<8x128xf32>
    %345 = arith.mulf %336, %319 : vector<8x128xf32>
    %346 = arith.mulf %330, %338 : vector<8x128xf32>
    %347 = arith.addf %345, %346 : vector<8x128xf32>
    %348 = math.tanh %347 : vector<8x128xf32>
    %349 = arith.mulf %344, %348 : vector<8x128xf32>
    %c0_90 = arith.constant 0 : index
    %c7 = arith.constant 7 : index
    %350 = vector.load %arg2[%c0_90, %c7] : memref<8x8xf32, #tpu.memory_space<vmem>>, vector<8x1xf32>
    %cst_91 = arith.constant 0.000000e+00 : f32
    %351 = vector.broadcast %cst_91 : f32 to vector<8x1xf32>
    %352 = arith.cmpf ogt, %350, %351 : vector<8x1xf32>
    %cst_92 = arith.constant 0.000000e+00 : f32
    %353 = vector.shape_cast %352 : vector<8x1xi1> to vector<8x1xi1>
    %354 = vector.broadcast %353 : vector<8x1xi1> to vector<8x128xi1>
    %355 = vector.broadcast %cst_92 : f32 to vector<8x128xf32>
    %356 = arith.select %354, %349, %355 : vector<8x128xi1>, vector<8x128xf32>
    %357 = arith.addf %313, %356 : vector<8x128xf32>
    %c0_93 = arith.constant 0 : index
    %c0_94 = arith.constant 0 : index
    %358 = vector.load %arg3[%c0_93, %c0_94] : memref<8x1xf32, #tpu.memory_space<vmem>>, vector<8x1xf32>
    %359 = vector.broadcast %358 : vector<8x1xf32> to vector<8x128xf32>
    %360 = arith.mulf %357, %359 : vector<8x128xf32>
    %361 = arith.truncf %360 : vector<8x128xf32> to vector<8x128xbf16>
    %c0_95 = arith.constant 0 : index
    %c0_96 = arith.constant 0 : index
    %362 = vector.load %arg8[%c0_95, %c0_96] : memref<128x128xbf16, #tpu.memory_space<vmem>>, vector<128x128xbf16>
    %cst_97 = arith.constant dense<0.000000e+00> : vector<8x128xf32>
    %363 = tpu.matmul %361, %362, %cst_97 {dimension_numbers = #tpu.dot_dimension_numbers<[1], [0], [0], [1], [0, 0, 1, 1], [], []>} : vector<8x128xbf16>, vector<128x128xbf16>, vector<8x128xf32> -> vector<8x128xf32>
    %c0_98 = arith.constant 0 : index
    %c0_99 = arith.constant 0 : index
    %364 = vector.load %arg9[%c0_98, %c0_99] : memref<1x128xf32, #tpu.memory_space<vmem>>, vector<1x128xf32>
    %365 = vector.broadcast %364 : vector<1x128xf32> to vector<8x128xf32>
    %366 = arith.addf %363, %365 : vector<8x128xf32>
    %cst_100 = arith.constant 0.000000e+00 : f32
    %367 = vector.broadcast %cst_100 : f32 to vector<8x128xf32>
    %368 = arith.maximumf %366, %367 : vector<8x128xf32>
    %369 = arith.truncf %368 : vector<8x128xf32> to vector<8x128xbf16>
    %c0_101 = arith.constant 0 : index
    %c0_102 = arith.constant 0 : index
    %370 = vector.load %arg10[%c0_101, %c0_102] : memref<128x2xbf16, #tpu.memory_space<vmem>>, vector<128x2xbf16>
    %cst_103 = arith.constant dense<0.000000e+00> : vector<8x2xf32>
    %371 = tpu.matmul %369, %370, %cst_103 {dimension_numbers = #tpu.dot_dimension_numbers<[1], [0], [0], [1], [0, 0, 1, 1], [], []>} : vector<8x128xbf16>, vector<128x2xbf16>, vector<8x2xf32> -> vector<8x2xf32>
    %c0_104 = arith.constant 0 : index
    %c0_105 = arith.constant 0 : index
    %372 = vector.load %arg11[%c0_104, %c0_105] : memref<1x2xf32, #tpu.memory_space<vmem>>, vector<1x2xf32>
    %373 = vector.broadcast %372 : vector<1x2xf32> to vector<8x2xf32>
    %374 = arith.addf %371, %373 : vector<8x2xf32>
    %c0_106 = arith.constant 0 : index
    %c0_107 = arith.constant 0 : index
    %375 = vector.load %arg12[%c0_106, %c0_107] : memref<8x2xf32, #tpu.memory_space<vmem>>, vector<8x2xf32>
    tpu.vector_store %arg12[%c0_106, %c0_107], %374 {strides = array<i32>} : memref<8x2xf32, #tpu.memory_space<vmem>>, vector<8x2xf32>,
    %376 = vector.extract_strided_slice %374 {offsets = [0, 1], sizes = [8, 1], strides = [1, 1]} : vector<8x2xf32> to vector<8x1xf32>
    %377 = vector.extract_strided_slice %374 {offsets = [0, 0], sizes = [8, 1], strides = [1, 1]} : vector<8x2xf32> to vector<8x1xf32>
    %378 = arith.subf %376, %377 : vector<8x1xf32>
    %379 = arith.negf %378 : vector<8x1xf32>
    %380 = math.exp %379 : vector<8x1xf32>
    %cst_108 = arith.constant 1.000000e+00 : f32
    %381 = vector.broadcast %cst_108 : f32 to vector<8x1xf32>
    %382 = arith.addf %381, %380 : vector<8x1xf32>
    %383 = arith.divf %381, %382 : vector<8x1xf32>
    %c0_109 = arith.constant 0 : index
    %c0_110 = arith.constant 0 : index
    %384 = vector.load %arg13[%c0_109, %c0_110] : memref<8x1xf32, #tpu.memory_space<vmem>>, vector<8x1xf32>
    tpu.vector_store %arg13[%c0_109, %c0_110], %383 {strides = array<i32>} : memref<8x1xf32, #tpu.memory_space<vmem>>, vector<8x1xf32>,
    %c0_111 = arith.constant 0 : index
    %c0_112 = arith.constant 0 : index
    %385 = vector.load %arg4[%c0_111, %c0_112] : memref<8x1xf32, #tpu.memory_space<vmem>>, vector<8x1xf32>
    %cst_113 = arith.constant 1.000000e+00 : f32
    %386 = vector.broadcast %cst_113 : f32 to vector<8x1xf32>
    %387 = arith.subf %386, %385 : vector<8x1xf32>
    %388 = vector.shape_cast %385 : vector<8x1xf32> to vector<1x8x1xf32>
    %cst_114 = arith.constant dense<0.000000e+00> : vector<1xf32>
    %389 = vector.multi_reduction <add>, %388, %cst_114 [1, 2] : vector<1x8x1xf32> to vector<1xf32>
    %390 = vector.shape_cast %389 : vector<1xf32> to vector<1x1x1xf32>
    %391 = vector.extract %390[0, 0, 0] : f32 from vector<1x1x1xf32>
    %392 = arith.mulf %383, %385 : vector<8x1xf32>
    %393 = vector.shape_cast %392 : vector<8x1xf32> to vector<1x8x1xf32>
    %cst_115 = arith.constant dense<0.000000e+00> : vector<1xf32>
    %394 = vector.multi_reduction <add>, %393, %cst_115 [1, 2] : vector<1x8x1xf32> to vector<1xf32>
    %395 = vector.shape_cast %394 : vector<1xf32> to vector<1x1x1xf32>
    %396 = vector.extract %395[0, 0, 0] : f32 from vector<1x1x1xf32>
    %397 = arith.mulf %383, %383 : vector<8x1xf32>
    %398 = arith.mulf %397, %385 : vector<8x1xf32>
    %399 = vector.shape_cast %398 : vector<8x1xf32> to vector<1x8x1xf32>
    %cst_116 = arith.constant dense<0.000000e+00> : vector<1xf32>
    %400 = vector.multi_reduction <add>, %399, %cst_116 [1, 2] : vector<1x8x1xf32> to vector<1xf32>
    %401 = vector.shape_cast %400 : vector<1xf32> to vector<1x1x1xf32>
    %402 = vector.extract %401[0, 0, 0] : f32 from vector<1x1x1xf32>
    %403 = arith.mulf %383, %387 : vector<8x1xf32>
    %404 = vector.shape_cast %403 : vector<8x1xf32> to vector<1x8x1xf32>
    %cst_117 = arith.constant dense<0.000000e+00> : vector<1xf32>
    %405 = vector.multi_reduction <add>, %404, %cst_117 [1, 2] : vector<1x8x1xf32> to vector<1xf32>
    %406 = vector.shape_cast %405 : vector<1xf32> to vector<1x1x1xf32>
    %407 = vector.extract %406[0, 0, 0] : f32 from vector<1x1x1xf32>
    %408 = arith.mulf %383, %383 : vector<8x1xf32>
    %409 = arith.mulf %408, %387 : vector<8x1xf32>
    %410 = vector.shape_cast %409 : vector<8x1xf32> to vector<1x8x1xf32>
    %cst_118 = arith.constant dense<0.000000e+00> : vector<1xf32>
    %411 = vector.multi_reduction <add>, %410, %cst_118 [1, 2] : vector<1x8x1xf32> to vector<1xf32>
    %412 = vector.shape_cast %411 : vector<1xf32> to vector<1x1x1xf32>
    %413 = vector.extract %412[0, 0, 0] : f32 from vector<1x1x1xf32>
    %414 = tpu.iota {dimensions = array<i32: 1>} : vector<8x128xi32>
    %c0_i32 = arith.constant 0 : i32
    %415 = vector.broadcast %c0_i32 : i32 to vector<8x128xi32>
    %416 = arith.cmpi eq, %414, %415 : vector<8x128xi32>
    %cst_119 = arith.constant 0.000000e+00 : f32
    %417 = vector.broadcast %391 : f32 to vector<8x128xf32>
    %418 = vector.broadcast %cst_119 : f32 to vector<8x128xf32>
    %419 = arith.select %416, %417, %418 : vector<8x128xi1>, vector<8x128xf32>
    %c1_i32 = arith.constant 1 : i32
    %420 = vector.broadcast %c1_i32 : i32 to vector<8x128xi32>
    %421 = arith.cmpi eq, %414, %420 : vector<8x128xi32>
    %cst_120 = arith.constant 0.000000e+00 : f32
    %422 = vector.broadcast %396 : f32 to vector<8x128xf32>
    %423 = vector.broadcast %cst_120 : f32 to vector<8x128xf32>
    %424 = arith.select %421, %422, %423 : vector<8x128xi1>, vector<8x128xf32>
    %425 = arith.addf %419, %424 : vector<8x128xf32>
    %c2_i32 = arith.constant 2 : i32
    %426 = vector.broadcast %c2_i32 : i32 to vector<8x128xi32>
    %427 = arith.cmpi eq, %414, %426 : vector<8x128xi32>
    %cst_121 = arith.constant 0.000000e+00 : f32
    %428 = vector.broadcast %402 : f32 to vector<8x128xf32>
    %429 = vector.broadcast %cst_121 : f32 to vector<8x128xf32>
    %430 = arith.select %427, %428, %429 : vector<8x128xi1>, vector<8x128xf32>
    %431 = arith.addf %425, %430 : vector<8x128xf32>
    %c3_i32 = arith.constant 3 : i32
    %432 = vector.broadcast %c3_i32 : i32 to vector<8x128xi32>
    %433 = arith.cmpi eq, %414, %432 : vector<8x128xi32>
    %cst_122 = arith.constant 0.000000e+00 : f32
    %434 = vector.broadcast %407 : f32 to vector<8x128xf32>
    %435 = vector.broadcast %cst_122 : f32 to vector<8x128xf32>
    %436 = arith.select %433, %434, %435 : vector<8x128xi1>, vector<8x128xf32>
    %437 = arith.addf %431, %436 : vector<8x128xf32>
    %c4_i32 = arith.constant 4 : i32
    %438 = vector.broadcast %c4_i32 : i32 to vector<8x128xi32>
    %439 = arith.cmpi eq, %414, %438 : vector<8x128xi32>
    %cst_123 = arith.constant 0.000000e+00 : f32
    %440 = vector.broadcast %413 : f32 to vector<8x128xf32>
    %441 = vector.broadcast %cst_123 : f32 to vector<8x128xf32>
    %442 = arith.select %439, %440, %441 : vector<8x128xi1>, vector<8x128xf32>
    %443 = arith.addf %437, %442 : vector<8x128xf32>
    %c0_124 = arith.constant 0 : index
    %c0_125 = arith.constant 0 : index
    %444 = vector.load %arg14[%c0_124, %c0_125] : memref<8x128xf32, #tpu.memory_space<vmem>>, vector<8x128xf32>
    tpu.vector_store %arg14[%c0_124, %c0_125], %443 {strides = array<i32>} : memref<8x128xf32, #tpu.memory_space<vmem>>, vector<8x128xf32>,
    return
  }
  func.func @transform_0(%arg0: i32) -> (i32, i32, i32) {
    %c0_i32 = arith.constant 0 : i32
    %c0_i32_0 = arith.constant 0 : i32
    %c0_i32_1 = arith.constant 0 : i32
    return %c0_i32, %arg0, %c0_i32_0 : i32, i32, i32
  }
  func.func @transform_1(%arg0: i32) -> (i32, i32) {
    %c0_i32 = arith.constant 0 : i32
    %c0_i32_0 = arith.constant 0 : i32
    return %arg0, %c0_i32 : i32, i32
  }
  func.func @transform_2(%arg0: i32) -> (i32, i32) {
    %c0_i32 = arith.constant 0 : i32
    %c0_i32_0 = arith.constant 0 : i32
    return %arg0, %c0_i32 : i32, i32
  }
  func.func @transform_3(%arg0: i32) -> (i32, i32) {
    %c0_i32 = arith.constant 0 : i32
    %c0_i32_0 = arith.constant 0 : i32
    return %arg0, %c0_i32 : i32, i32
  }
  func.func @transform_4(%arg0: i32) -> (i32, i32) {
    %c0_i32 = arith.constant 0 : i32
    %c0_i32_0 = arith.constant 0 : i32
    %c0_i32_1 = arith.constant 0 : i32
    return %c0_i32, %c0_i32_0 : i32, i32
  }
  func.func @transform_5(%arg0: i32) -> (i32, i32) {
    %c0_i32 = arith.constant 0 : i32
    %c0_i32_0 = arith.constant 0 : i32
    %c0_i32_1 = arith.constant 0 : i32
    return %c0_i32, %c0_i32_0 : i32, i32
  }
  func.func @transform_6(%arg0: i32) -> (i32, i32) {
    %c0_i32 = arith.constant 0 : i32
    %c0_i32_0 = arith.constant 0 : i32
    %c0_i32_1 = arith.constant 0 : i32
    return %c0_i32, %c0_i32_0 : i32, i32
  }
  func.func @transform_7(%arg0: i32) -> (i32, i32) {
    %c0_i32 = arith.constant 0 : i32
    %c0_i32_0 = arith.constant 0 : i32
    %c0_i32_1 = arith.constant 0 : i32
    return %c0_i32, %c0_i32_0 : i32, i32
  }
  func.func @transform_8(%arg0: i32) -> (i32, i32) {
    %c0_i32 = arith.constant 0 : i32
    %c0_i32_0 = arith.constant 0 : i32
    %c0_i32_1 = arith.constant 0 : i32
    return %c0_i32, %c0_i32_0 : i32, i32
  }
  func.func @transform_9(%arg0: i32) -> (i32, i32) {
    %c0_i32 = arith.constant 0 : i32
    %c0_i32_0 = arith.constant 0 : i32
    %c0_i32_1 = arith.constant 0 : i32
    return %c0_i32, %c0_i32_0 : i32, i32
  }
  func.func @transform_10(%arg0: i32) -> (i32, i32) {
    %c0_i32 = arith.constant 0 : i32
    %c0_i32_0 = arith.constant 0 : i32
    %c0_i32_1 = arith.constant 0 : i32
    return %c0_i32, %c0_i32_0 : i32, i32
  }
  func.func @transform_11(%arg0: i32) -> (i32, i32) {
    %c0_i32 = arith.constant 0 : i32
    %c0_i32_0 = arith.constant 0 : i32
    return %arg0, %c0_i32 : i32, i32
  }
  func.func @transform_12(%arg0: i32) -> (i32, i32) {
    %c0_i32 = arith.constant 0 : i32
    %c0_i32_0 = arith.constant 0 : i32
    return %arg0, %c0_i32 : i32, i32
  }
  func.func @transform_13(%arg0: i32) -> (i32, i32) {
    %c0_i32 = arith.constant 0 : i32
    %c0_i32_0 = arith.constant 0 : i32
    return %arg0, %c0_i32 : i32, i32
  }
}

</mosaic_0001>

<llo_original>
// kernel: predict_and_aucm_loss.1
$region0: #{predict_and_aucm_loss.1}
  #allocation0 [shape = 'u32[]', space=smem, size = 0x4, offset = 0x4, fixed_abs, tag = 'smem constant byte address 0x4 - core index']
  #allocation1 [shape = 'u32[144,128]{1,0:T(1,128)}', space=vmem, size = 0x12000, scoped, tag = 'internal scratch']
  #allocation2 [shape = 'f32[64,512]{1,0:T(8,128)}', space=vmem, size = 0x20000, scoped, tag = 'scratch operand']
  %s0 = inlined_call_operand.hbm [shape: f32[8,16,128], index: 0, kind: input, shape index: {}]
  %s1 = inlined_call_operand.vmem [shape: f32[16,8], index: 1, kind: input, shape index: {}]
  %s2 = inlined_call_operand.vmem [shape: f32[16,1], index: 2, kind: input, shape index: {}]
  %s3 = inlined_call_operand.vmem [shape: f32[16,1], index: 3, kind: input, shape index: {}]
  %s4 = inlined_call_operand.hbm [shape: bf16[128,512], index: 4, kind: input, shape index: {}]
  %s5 = inlined_call_operand.hbm [shape: bf16[128,512], index: 5, kind: input, shape index: {}]
  %s6 = inlined_call_operand.vmem [shape: f32[1,512], index: 6, kind: input, shape index: {}]
  %s7 = inlined_call_operand.vmem [shape: bf16[128,128], index: 7, kind: input, shape index: {}]
  %s8 = inlined_call_operand.vmem [shape: f32[1,128], index: 8, kind: input, shape index: {}]
  %s9 = inlined_call_operand.vmem [shape: bf16[128,2], index: 9, kind: input, shape index: {}]
  %s10 = inlined_call_operand.vmem [shape: f32[1,2], index: 10, kind: input, shape index: {}]
  %s11 = inlined_call_operand.vmem [shape: f32[16,2], index: 11, kind: output, shape index: {0}]
  %s12 = inlined_call_operand.vmem [shape: f32[16,1], index: 12, kind: output, shape index: {1}]
  %s13 = inlined_call_operand.vmem [shape: f32[16,128], index: 13, kind: output, shape index: {2}]
  %14 = xla_tuple %s11, %s12, %s13
  %s15 = sld [smem:[#allocation0]]
  $region105: #{predict_and_aucm_loss.1} parent=0
    _
  %s17 = ssub.s32 1, %s15
  %s18 = scalar_select 0, %s17, %s15
  $region1: #{predict_and_aucm_loss.1} parent=0
    #allocation3 [shape = 'u8[65536]{0}', space=vmem, size = 0x10000, scoped, tag = 'input window, operand 0']
    #allocation4 [shape = 's32[2]{0}', space=sflag, size = 0x8, scoped, tag = 'scoped memory for predict_and_aucm_loss.1']
    #allocation5 [shape = 'u8[131072]{0}', space=vmem, size = 0x20000, scoped, tag = 'input window, operand 4, single buffered']
    #allocation6 [shape = 's32[1]{0}', space=sflag, size = 0x4, scoped, tag = 'scoped memory for predict_and_aucm_loss.1']
    #allocation7 [shape = 'u8[131072]{0}', space=vmem, size = 0x20000, scoped, tag = 'input window, operand 5, single buffered']
    %19 = vsyncpa [#allocation4], 0
    %s20 = scalar_lea.sflag [#allocation4], 1
    %21 = vsyncpa %s20, 0
    %22 = vsyncpa [#allocation6], 0
    loop: start=0, step=1, limit=4
    $region2: #{predict_and_aucm_loss.1} parent=1 // loop_pre_header
      _
    $region3: #{predict_and_aucm_loss.1} parent=1 // loop_header
      %s24 = sphi 0, %s28
      %p25 = scmp.ge.s32.totalorder %s24, 4
      %s34 = sphi 0, %s36
      %s37 = sphi 0, %s34
      %s38 = sphi 0, %s37
      %s54 = sphi 0, %s38
      %s60 = sphi 0, %s62
      %s63 = sphi 0, %s60
      %s64 = sphi 0, %s63
      %s80 = sphi 0, %s64
      %s86 = sphi 0, %s88
      %s89 = sphi 0, %s86
      %s90 = sphi 0, %s89
      %s106 = sphi 0, %s90
      %s112 = sphi 0, %s114
      %s115 = sphi 0, %s112
      %s116 = sphi 0, %s115
      %s132 = sphi 0, %s116
      %s136 = sphi 0, %s136
      %s138 = sphi 0, %s136
      %s139 = sphi 0, %s138
      %s153 = sphi 0, %s139
      %s157 = sphi 0, %s157
      %s159 = sphi 0, %s157
      %s160 = sphi 0, %s159
      %s174 = sphi 0, %s160
      %s178 = sphi 0, %s178
      %s180 = sphi 0, %s178
      %s181 = sphi 0, %s180
      %s195 = sphi 0, %s181
      %s199 = sphi 0, %s199
      %s201 = sphi 0, %s199
      %s202 = sphi 0, %s201
      %s216 = sphi 0, %s202
      %s220 = sphi 0, %s220
      %s222 = sphi 0, %s220
      %s223 = sphi 0, %s222
      %s237 = sphi 0, %s223
      %s241 = sphi 0, %s241
      %s243 = sphi 0, %s241
      %s244 = sphi 0, %s243
      %s258 = sphi 0, %s244
      %s262 = sphi 0, %s262
      %s264 = sphi 0, %s262
      %s265 = sphi 0, %s264
      %s279 = sphi 0, %s265
      %s285 = sphi 0, %s287
      %s288 = sphi 0, %s285
      %s289 = sphi 0, %s288
      %s305 = sphi 0, %s289
      %s311 = sphi 0, %s313
      %s314 = sphi 0, %s311
      %s315 = sphi 0, %s314
      %s331 = sphi 0, %s315
      %s337 = sphi 0, %s339
      %s340 = sphi 0, %s337
      %s341 = sphi 0, %s340
      %s357 = sphi 0, %s341
    $region4: #{predict_and_aucm_loss.1} parent=1 // loop_header_branch
      %27 = sbr.rel (%p25) target = $region8
    $region5: #{predict_and_aucm_loss.1} parent=1 // loop_body
      %s29 = ssub.s32 %s24, 1
      %s30 = ssub.s32 %s24, 2
      %s31 = sadd.s32 %s24, 1
      %s32 = ssub.s32 %s24, %s31
      %p33 = scmp.eq.s32.totalorder %s32, 0
      %s35 = sadd.s32 %s34, 1
      %s36 = scalar_select %p33, %s34, %s35
      %p39 = pneg %p33
      %p40 = scmp.eq.s32.totalorder %s24, 1
      %p41 = por %p39, %p40
      %p42 = scmp.ne.s32.totalorder %s34, %s37
      %p43 = scmp.eq.s32.totalorder %s24, 0
      %p44 = por %p42, %p43
      %p45 = scmp.ne.s32.totalorder %s34, %s37
      %p46 = scmp.eq.s32.totalorder %s29, 1
      %p47 = por %p45, %p46
      %p48 = scmp.ne.s32.totalorder %s37, %s38
      %p49 = scmp.eq.s32.totalorder %s29, 0
      %p50 = por %p48, %p49
      %p51 = scmp.ne.s32.totalorder %s37, %s38
      %p52 = scmp.eq.s32.totalorder %s30, 1
      %p53 = por %p51, %p52
      %p55 = scmp.ne.s32.totalorder %s38, %s54
      %p56 = scmp.eq.s32.totalorder %s30, 0
      %p57 = por %p55, %p56
      %s58 = ssub.s32 %s24, %s31
      %p59 = scmp.eq.s32.totalorder %s58, 0
      %s61 = sadd.s32 %s60, 1
      %s62 = scalar_select %p59, %s60, %s61
      %p65 = pneg %p59
      %p66 = scmp.eq.s32.totalorder %s24, 1
      %p67 = por %p65, %p66
      %p68 = scmp.ne.s32.totalorder %s60, %s63
      %p69 = scmp.eq.s32.totalorder %s24, 0
      %p70 = por %p68, %p69
      %p71 = scmp.ne.s32.totalorder %s60, %s63
      %p72 = scmp.eq.s32.totalorder %s29, 1
      %p73 = por %p71, %p72
      %p74 = scmp.ne.s32.totalorder %s63, %s64
      %p75 = scmp.eq.s32.totalorder %s29, 0
      %p76 = por %p74, %p75
      %p77 = scmp.ne.s32.totalorder %s63, %s64
      %p78 = scmp.eq.s32.totalorder %s30, 1
      %p79 = por %p77, %p78
      %p81 = scmp.ne.s32.totalorder %s64, %s80
      %p82 = scmp.eq.s32.totalorder %s30, 0
      %p83 = por %p81, %p82
      %s84 = ssub.s32 %s24, %s31
      %p85 = scmp.eq.s32.totalorder %s84, 0
      %s87 = sadd.s32 %s86, 1
      %s88 = scalar_select %p85, %s86, %s87
      %p91 = pneg %p85
      %p92 = scmp.eq.s32.totalorder %s24, 1
      %p93 = por %p91, %p92
      %p94 = scmp.ne.s32.totalorder %s86, %s89
      %p95 = scmp.eq.s32.totalorder %s24, 0
      %p96 = por %p94, %p95
      %p97 = scmp.ne.s32.totalorder %s86, %s89
      %p98 = scmp.eq.s32.totalorder %s29, 1
      %p99 = por %p97, %p98
      %p100 = scmp.ne.s32.totalorder %s89, %s90
      %p101 = scmp.eq.s32.totalorder %s29, 0
      %p102 = por %p100, %p101
      %p103 = scmp.ne.s32.totalorder %s89, %s90
      %p104 = scmp.eq.s32.totalorder %s30, 1
      %p105 = por %p103, %p104
      %p107 = scmp.ne.s32.totalorder %s90, %s106
      %p108 = scmp.eq.s32.totalorder %s30, 0
      %p109 = por %p107, %p108
      %s110 = ssub.s32 %s24, %s31
      %p111 = scmp.eq.s32.totalorder %s110, 0
      %s113 = sadd.s32 %s112, 1
      %s114 = scalar_select %p111, %s112, %s113
      %p117 = pneg %p111
      %p118 = scmp.eq.s32.totalorder %s24, 1
      %p119 = por %p117, %p118
      %p120 = scmp.ne.s32.totalorder %s112, %s115
      %p121 = scmp.eq.s32.totalorder %s24, 0
      %p122 = por %p120, %p121
      %p123 = scmp.ne.s32.totalorder %s112, %s115
      %p124 = scmp.eq.s32.totalorder %s29, 1
      %p125 = por %p123, %p124
      %p126 = scmp.ne.s32.totalorder %s115, %s116
      %p127 = scmp.eq.s32.totalorder %s29, 0
      %p128 = por %p126, %p127
      %p129 = scmp.ne.s32.totalorder %s115, %s116
      %p130 = scmp.eq.s32.totalorder %s30, 1
      %p131 = por %p129, %p130
      %p133 = scmp.ne.s32.totalorder %s116, %s132
      %p134 = scmp.eq.s32.totalorder %s30, 0
      %p135 = por %p133, %p134
      %s137 = sadd.s32 %s136, 1
      %p140 = scmp.eq.s32.totalorder %s24, 1
      %p141 = scmp.ne.s32.totalorder %s136, %s138
      %p142 = scmp.eq.s32.totalorder %s24, 0
      %p143 = por %p141, %p142
      %p144 = scmp.ne.s32.totalorder %s136, %s138
      %p145 = scmp.eq.s32.totalorder %s29, 1
      %p146 = por %p144, %p145
      %p147 = scmp.ne.s32.totalorder %s138, %s139
      %p148 = scmp.eq.s32.totalorder %s29, 0
      %p149 = por %p147, %p148
      %p150 = scmp.ne.s32.totalorder %s138, %s139
      %p151 = scmp.eq.s32.totalorder %s30, 1
      %p152 = por %p150, %p151
      %p154 = scmp.ne.s32.totalorder %s139, %s153
      %p155 = scmp.eq.s32.totalorder %s30, 0
      %p156 = por %p154, %p155
      %s158 = sadd.s32 %s157, 1
      %p161 = scmp.eq.s32.totalorder %s24, 1
      %p162 = scmp.ne.s32.totalorder %s157, %s159
      %p163 = scmp.eq.s32.totalorder %s24, 0
      %p164 = por %p162, %p163
      %p165 = scmp.ne.s32.totalorder %s157, %s159
      %p166 = scmp.eq.s32.totalorder %s29, 1
      %p167 = por %p165, %p166
      %p168 = scmp.ne.s32.totalorder %s159, %s160
      %p169 = scmp.eq.s32.totalorder %s29, 0
      %p170 = por %p168, %p169
      %p171 = scmp.ne.s32.totalorder %s159, %s160
      %p172 = scmp.eq.s32.totalorder %s30, 1
      %p173 = por %p171, %p172
      %p175 = scmp.ne.s32.totalorder %s160, %s174
      %p176 = scmp.eq.s32.totalorder %s30, 0
      %p177 = por %p175, %p176
      %s179 = sadd.s32 %s178, 1
      %p182 = scmp.eq.s32.totalorder %s24, 1
      %p183 = scmp.ne.s32.totalorder %s178, %s180
      %p184 = scmp.eq.s32.totalorder %s24, 0
      %p185 = por %p183, %p184
      %p186 = scmp.ne.s32.totalorder %s178, %s180
      %p187 = scmp.eq.s32.totalorder %s29, 1
      %p188 = por %p186, %p187
      %p189 = scmp.ne.s32.totalorder %s180, %s181
      %p190 = scmp.eq.s32.totalorder %s29, 0
      %p191 = por %p189, %p190
      %p192 = scmp.ne.s32.totalorder %s180, %s181
      %p193 = scmp.eq.s32.totalorder %s30, 1
      %p194 = por %p192, %p193
      %p196 = scmp.ne.s32.totalorder %s181, %s195
      %p197 = scmp.eq.s32.totalorder %s30, 0
      %p198 = por %p196, %p197
      %s200 = sadd.s32 %s199, 1
      %p203 = scmp.eq.s32.totalorder %s24, 1
      %p204 = scmp.ne.s32.totalorder %s199, %s201
      %p205 = scmp.eq.s32.totalorder %s24, 0
      %p206 = por %p204, %p205
      %p207 = scmp.ne.s32.totalorder %s199, %s201
      %p208 = scmp.eq.s32.totalorder %s29, 1
      %p209 = por %p207, %p208
      %p210 = scmp.ne.s32.totalorder %s201, %s202
      %p211 = scmp.eq.s32.totalorder %s29, 0
      %p212 = por %p210, %p211
      %p213 = scmp.ne.s32.totalorder %s201, %s202
      %p214 = scmp.eq.s32.totalorder %s30, 1
      %p215 = por %p213, %p214
      %p217 = scmp.ne.s32.totalorder %s202, %s216
      %p218 = scmp.eq.s32.totalorder %s30, 0
      %p219 = por %p217, %p218
      %s221 = sadd.s32 %s220, 1
      %p224 = scmp.eq.s32.totalorder %s24, 1
      %p225 = scmp.ne.s32.totalorder %s220, %s222
      %p226 = scmp.eq.s32.totalorder %s24, 0
      %p227 = por %p225, %p226
      %p228 = scmp.ne.s32.totalorder %s220, %s222
      %p229 = scmp.eq.s32.totalorder %s29, 1
      %p230 = por %p228, %p229
      %p231 = scmp.ne.s32.totalorder %s222, %s223
      %p232 = scmp.eq.s32.totalorder %s29, 0
      %p233 = por %p231, %p232
      %p234 = scmp.ne.s32.totalorder %s222, %s223
      %p235 = scmp.eq.s32.totalorder %s30, 1
      %p236 = por %p234, %p235
      %p238 = scmp.ne.s32.totalorder %s223, %s237
      %p239 = scmp.eq.s32.totalorder %s30, 0
      %p240 = por %p238, %p239
      %s242 = sadd.s32 %s241, 1
      %p245 = scmp.eq.s32.totalorder %s24, 1
      %p246 = scmp.ne.s32.totalorder %s241, %s243
      %p247 = scmp.eq.s32.totalorder %s24, 0
      %p248 = por %p246, %p247
      %p249 = scmp.ne.s32.totalorder %s241, %s243
      %p250 = scmp.eq.s32.totalorder %s29, 1
      %p251 = por %p249, %p250
      %p252 = scmp.ne.s32.totalorder %s243, %s244
      %p253 = scmp.eq.s32.totalorder %s29, 0
      %p254 = por %p252, %p253
      %p255 = scmp.ne.s32.totalorder %s243, %s244
      %p256 = scmp.eq.s32.totalorder %s30, 1
      %p257 = por %p255, %p256
      %p259 = scmp.ne.s32.totalorder %s244, %s258
      %p260 = scmp.eq.s32.totalorder %s30, 0
      %p261 = por %p259, %p260
      %s263 = sadd.s32 %s262, 1
      %p266 = scmp.eq.s32.totalorder %s24, 1
      %p267 = scmp.ne.s32.totalorder %s262, %s264
      %p268 = scmp.eq.s32.totalorder %s24, 0
      %p269 = por %p267, %p268
      %p270 = scmp.ne.s32.totalorder %s262, %s264
      %p271 = scmp.eq.s32.totalorder %s29, 1
      %p272 = por %p270, %p271
      %p273 = scmp.ne.s32.totalorder %s264, %s265
      %p274 = scmp.eq.s32.totalorder %s29, 0
      %p275 = por %p273, %p274
      %p276 = scmp.ne.s32.totalorder %s264, %s265
      %p277 = scmp.eq.s32.totalorder %s30, 1
      %p278 = por %p276, %p277
      %p280 = scmp.ne.s32.totalorder %s265, %s279
      %p281 = scmp.eq.s32.totalorder %s30, 0
      %p282 = por %p280, %p281
      %s283 = ssub.s32 %s24, %s31
      %p284 = scmp.eq.s32.totalorder %s283, 0
      %s286 = sadd.s32 %s285, 1
      %s287 = scalar_select %p284, %s285, %s286
      %p290 = pneg %p284
      %p291 = scmp.eq.s32.totalorder %s24, 1
      %p292 = por %p290, %p291
      %p293 = scmp.ne.s32.totalorder %s285, %s288
      %p294 = scmp.eq.s32.totalorder %s24, 0
      %p295 = por %p293, %p294
      %p296 = scmp.ne.s32.totalorder %s285, %s288
      %p297 = scmp.eq.s32.totalorder %s29, 1
      %p298 = por %p296, %p297
      %p299 = scmp.ne.s32.totalorder %s288, %s289
      %p300 = scmp.eq.s32.totalorder %s29, 0
      %p301 = por %p299, %p300
      %p302 = scmp.ne.s32.totalorder %s288, %s289
      %p303 = scmp.eq.s32.totalorder %s30, 1
      %p304 = por %p302, %p303
      %p306 = scmp.ne.s32.totalorder %s289, %s305
      %p307 = scmp.eq.s32.totalorder %s30, 0
      %p308 = por %p306, %p307
      %s309 = ssub.s32 %s24, %s31
      %p310 = scmp.eq.s32.totalorder %s309, 0
      %s312 = sadd.s32 %s311, 1
      %s313 = scalar_select %p310, %s311, %s312
      %p316 = pneg %p310
      %p317 = scmp.eq.s32.totalorder %s24, 1
      %p318 = por %p316, %p317
      %p319 = scmp.ne.s32.totalorder %s311, %s314
      %p320 = scmp.eq.s32.totalorder %s24, 0
      %p321 = por %p319, %p320
      %p322 = scmp.ne.s32.totalorder %s311, %s314
      %p323 = scmp.eq.s32.totalorder %s29, 1
      %p324 = por %p322, %p323
      %p325 = scmp.ne.s32.totalorder %s314, %s315
      %p326 = scmp.eq.s32.totalorder %s29, 0
      %p327 = por %p325, %p326
      %p328 = scmp.ne.s32.totalorder %s314, %s315
      %p329 = scmp.eq.s32.totalorder %s30, 1
      %p330 = por %p328, %p329
      %p332 = scmp.ne.s32.totalorder %s315, %s331
      %p333 = scmp.eq.s32.totalorder %s30, 0
      %p334 = por %p332, %p333
      %s335 = ssub.s32 %s24, %s31
      %p336 = scmp.eq.s32.totalorder %s335, 0
      %s338 = sadd.s32 %s337, 1
      %s339 = scalar_select %p336, %s337, %s338
      %p342 = pneg %p336
      %p343 = scmp.eq.s32.totalorder %s24, 1
      %p344 = por %p342, %p343
      %p345 = scmp.ne.s32.totalorder %s337, %s340
      %p346 = scmp.eq.s32.totalorder %s24, 0
      %p347 = por %p345, %p346
      %p348 = scmp.ne.s32.totalorder %s337, %s340
      %p349 = scmp.eq.s32.totalorder %s29, 1
      %p350 = por %p348, %p349
      %p351 = scmp.ne.s32.totalorder %s340, %s341
      %p352 = scmp.eq.s32.totalorder %s29, 0
      %p353 = por %p351, %p352
      %p354 = scmp.ne.s32.totalorder %s340, %s341
      %p355 = scmp.eq.s32.totalorder %s30, 1
      %p356 = por %p354, %p355
      %p358 = scmp.ne.s32.totalorder %s341, %s357
      %p359 = scmp.eq.s32.totalorder %s30, 0
      %p360 = por %p358, %p359
      %p361 = scmp.le.s32.totalorder 1, %s24
      %p362 = scmp.lt.s32.totalorder %s24, 3
      %p363 = pnand %p361, %p362
      %p364 = pneg %p363
      // Predicated region
      $region9: #{predict_and_aucm_loss.1} parent=5 // pred_check
        _
      $region10: #{predict_and_aucm_loss.1} parent=5 // pred_check_branch
        %366 = sbr.rel (%p363) target = $region12
      $region11: #{predict_and_aucm_loss.1} parent=5 // pred_region
        %s367 = ssub.s32 %s24, 1
        // Predicated region
        $region13: #{predict_and_aucm_loss.1} parent=11 // pred_check
          %p368 = pneg %p149
        $region14: #{predict_and_aucm_loss.1} parent=11 // pred_check_branch
          %370 = sbr.rel (%p368) target = $region16
        $region15: #{predict_and_aucm_loss.1} parent=11 // pred_region
          %s372 = ssub.s32 4096, 4096
          %373 = vsyncadd [#allocation6], %s372
          %s374 = sshll.u32 [#allocation5], 4
          %s375 = int_to_ptr.vmem [resolvable:$true] %s374
          %380 = dma.hbm_to_vmem [thread:$0]  %s4, 4096, %s375, [#allocation6], 256, 256, 16
        $region16: #{predict_and_aucm_loss.1} parent=11 // pred_fallthru
          _
        // Predicated region
        $region17: #{predict_and_aucm_loss.1} parent=11 // pred_check
          %p381 = pneg %p170
        $region18: #{predict_and_aucm_loss.1} parent=11 // pred_check_branch
          %383 = sbr.rel (%p381) target = $region20
        $region19: #{predict_and_aucm_loss.1} parent=11 // pred_region
          %s385 = ssub.s32 4096, 4096
          %386 = vsyncadd [#allocation6], %s385
          %s387 = sshll.u32 [#allocation7], 4
          %s388 = int_to_ptr.vmem [resolvable:$true] %s387
          %393 = dma.hbm_to_vmem [thread:$0]  %s5, 4096, %s388, [#allocation6], 256, 256, 16
        $region20: #{predict_and_aucm_loss.1} parent=11 // pred_fallthru
          _
        // Predicated region
        $region21: #{predict_and_aucm_loss.1} parent=11 // pred_check
          %p394 = pneg %p191
        $region22: #{predict_and_aucm_loss.1} parent=11 // pred_check_branch
          %396 = sbr.rel (%p394) target = $region24
        $region23: #{predict_and_aucm_loss.1} parent=11 // pred_region
          _
        $region24: #{predict_and_aucm_loss.1} parent=11 // pred_fallthru
          _
        // Predicated region
        $region25: #{predict_and_aucm_loss.1} parent=11 // pred_check
          %p397 = pneg %p212
        $region26: #{predict_and_aucm_loss.1} parent=11 // pred_check_branch
          %399 = sbr.rel (%p397) target = $region28
        $region27: #{predict_and_aucm_loss.1} parent=11 // pred_region
          _
        $region28: #{predict_and_aucm_loss.1} parent=11 // pred_fallthru
          _
        // Predicated region
        $region29: #{predict_and_aucm_loss.1} parent=11 // pred_check
          %p400 = pneg %p233
        $region30: #{predict_and_aucm_loss.1} parent=11 // pred_check_branch
          %402 = sbr.rel (%p400) target = $region32
        $region31: #{predict_and_aucm_loss.1} parent=11 // pred_region
          _
        $region32: #{predict_and_aucm_loss.1} parent=11 // pred_fallthru
          _
        // Predicated region
        $region33: #{predict_and_aucm_loss.1} parent=11 // pred_check
          %p403 = pneg %p254
        $region34: #{predict_and_aucm_loss.1} parent=11 // pred_check_branch
          %405 = sbr.rel (%p403) target = $region36
        $region35: #{predict_and_aucm_loss.1} parent=11 // pred_region
          _
        $region36: #{predict_and_aucm_loss.1} parent=11 // pred_fallthru
          _
        // Predicated region
        $region37: #{predict_and_aucm_loss.1} parent=11 // pred_check
          %p406 = pneg %p275
        $region38: #{predict_and_aucm_loss.1} parent=11 // pred_check_branch
          %408 = sbr.rel (%p406) target = $region40
        $region39: #{predict_and_aucm_loss.1} parent=11 // pred_region
          _
        $region40: #{predict_and_aucm_loss.1} parent=11 // pred_fallthru
          _
      $region12: #{predict_and_aucm_loss.1} parent=5 // pred_fallthru
        _
      %p409 = scmp.lt.s32.totalorder %s24, 2
      // Predicated region
      $region41: #{predict_and_aucm_loss.1} parent=5 // pred_check
        %p410 = pneg %p409
      $region42: #{predict_and_aucm_loss.1} parent=5 // pred_check_branch
        %412 = sbr.rel (%p410) target = $region44
      $region43: #{predict_and_aucm_loss.1} parent=5 // pred_region
        // Predicated region
        $region45: #{predict_and_aucm_loss.1} parent=43 // pred_check
          %p413 = pneg %p44
        $region46: #{predict_and_aucm_loss.1} parent=43 // pred_check_branch
          %415 = sbr.rel (%p413) target = $region48
        $region47: #{predict_and_aucm_loss.1} parent=43 // pred_region
          %s416 = sand.u32 %s34, 1
          %s417 = scalar_lea.sflag [#allocation4], %s416
          %s418 = sand.u32 %s34, 1
          %s419 = smul.addr %s418, 64
          %s420 = scalar_lea.vmem [#allocation3], %s419
          %s422 = ssub.s32 1024, 1024
          %423 = vsyncadd %s417, %s422
          %s424 = smul.addr %s24, 128
          %s425 = scalar_lea.hbm %s0, %s424
          %s426 = sshll.u32 %s420, 4
          %s427 = int_to_ptr.vmem [resolvable:$true] %s426
          %432 = dma.hbm_to_vmem [thread:$0]  %s425, 1024, %s427, %s417, 256, 128, 8
        $region48: #{predict_and_aucm_loss.1} parent=43 // pred_fallthru
          _
        // Predicated region
        $region49: #{predict_and_aucm_loss.1} parent=43 // pred_check
          %p433 = pneg %p70
        $region50: #{predict_and_aucm_loss.1} parent=43 // pred_check_branch
          %435 = sbr.rel (%p433) target = $region52
        $region51: #{predict_and_aucm_loss.1} parent=43 // pred_region
          %p436 = scmp.lt.s32.totalorder %s24, 1
          %s437 = scalar_select %p436, %s24, 1
          %s438 = smul.addr %s437, 8
          %s439 = scalar_lea.vmem %s1, %s438
        $region52: #{predict_and_aucm_loss.1} parent=43 // pred_fallthru
          _
        // Predicated region
        $region53: #{predict_and_aucm_loss.1} parent=43 // pred_check
          %p440 = pneg %p96
        $region54: #{predict_and_aucm_loss.1} parent=43 // pred_check_branch
          %442 = sbr.rel (%p440) target = $region56
        $region55: #{predict_and_aucm_loss.1} parent=43 // pred_region
          %p443 = scmp.lt.s32.totalorder %s24, 1
          %s444 = scalar_select %p443, %s24, 1
          %s445 = smul.addr %s444, 8
          %s446 = scalar_lea.vmem %s2, %s445
        $region56: #{predict_and_aucm_loss.1} parent=43 // pred_fallthru
          _
        // Predicated region
        $region57: #{predict_and_aucm_loss.1} parent=43 // pred_check
          %p447 = pneg %p122
        $region58: #{predict_and_aucm_loss.1} parent=43 // pred_check_branch
          %449 = sbr.rel (%p447) target = $region60
        $region59: #{predict_and_aucm_loss.1} parent=43 // pred_region
          %p450 = scmp.lt.s32.totalorder %s24, 1
          %s451 = scalar_select %p450, %s24, 1
          %s452 = smul.addr %s451, 8
          %s453 = scalar_lea.vmem %s3, %s452
        $region60: #{predict_and_aucm_loss.1} parent=43 // pred_fallthru
          _
      $region44: #{predict_and_aucm_loss.1} parent=5 // pred_fallthru
        _
      %p454 = scmp.le.s32.totalorder 1, %s24
      %p455 = scmp.lt.s32.totalorder %s24, 3
      %p456 = pnand %p454, %p455
      %p457 = pneg %p456
      // Predicated region
      $region61: #{predict_and_aucm_loss.1} parent=5 // pred_check
        _
      $region62: #{predict_and_aucm_loss.1} parent=5 // pred_check_branch
        %459 = sbr.rel (%p456) target = $region64
      $region63: #{predict_and_aucm_loss.1} parent=5 // pred_region
        %s460 = ssub.s32 %s24, 1
        %s461 = sand.u32 %s37, 1
        %s462 = scalar_lea.sflag [#allocation4], %s461
        %s463 = sand.u32 %s37, 1
        %s464 = smul.addr %s463, 64
        %s465 = scalar_lea.vmem [#allocation3], %s464
        // Predicated region
        $region65: #{predict_and_aucm_loss.1} parent=63 // pred_check
          %p466 = pneg %p50
        $region66: #{predict_and_aucm_loss.1} parent=63 // pred_check_branch
          %468 = sbr.rel (%p466) target = $region68
        $region67: #{predict_and_aucm_loss.1} parent=63 // pred_region
          %469 = dma.done %s462, 1024
        $region68: #{predict_and_aucm_loss.1} parent=63 // pred_fallthru
          _
        // Predicated region
        $region69: #{predict_and_aucm_loss.1} parent=63 // pred_check
          %p470 = pneg %p149
        $region70: #{predict_and_aucm_loss.1} parent=63 // pred_check_branch
          %472 = sbr.rel (%p470) target = $region72
        $region71: #{predict_and_aucm_loss.1} parent=63 // pred_region
          %473 = dma.done [#allocation6], 4096
        $region72: #{predict_and_aucm_loss.1} parent=63 // pred_fallthru
          _
        // Predicated region
        $region73: #{predict_and_aucm_loss.1} parent=63 // pred_check
          %p474 = pneg %p170
        $region74: #{predict_and_aucm_loss.1} parent=63 // pred_check_branch
          %476 = sbr.rel (%p474) target = $region76
        $region75: #{predict_and_aucm_loss.1} parent=63 // pred_region
          %477 = dma.done [#allocation6], 4096
        $region76: #{predict_and_aucm_loss.1} parent=63 // pred_fallthru
          _
        %s478 = sand.u32 %s37, 1
        %s479 = scalar_lea.sflag [#allocation4], %s478
        %s480 = sand.u32 %s37, 1
        %s481 = smul.addr %s480, 64
        %s482 = scalar_lea.vmem [#allocation3], %s481
        %p483 = pneg %p50
        %p484 = pneg %p47
        %p485 = scmp.lt.s32.totalorder %s29, 1
        %s486 = scalar_select %p485, %s29, 1
        %s487 = smul.addr %s486, 8
        %s488 = scalar_lea.vmem %s1, %s487
        %p489 = pneg %p76
        %p490 = pneg %p73
        %p491 = scmp.lt.s32.totalorder %s29, 1
        %s492 = scalar_select %p491, %s29, 1
        %s493 = smul.addr %s492, 8
        %s494 = scalar_lea.vmem %s2, %s493
        %p495 = pneg %p102
        %p496 = pneg %p99
        %p497 = scmp.lt.s32.totalorder %s29, 1
        %s498 = scalar_select %p497, %s29, 1
        %s499 = smul.addr %s498, 8
        %s500 = scalar_lea.vmem %s3, %s499
        %p501 = pneg %p128
        %p502 = pneg %p125
        %p503 = pneg %p149
        %p504 = pneg %p146
        %p505 = pneg %p170
        %p506 = pneg %p167
        %p507 = pneg %p191
        %p508 = pneg %p188
        %p509 = pneg %p212
        %p510 = pneg %p209
        %p511 = pneg %p233
        %p512 = pneg %p230
        %p513 = pneg %p254
        %p514 = pneg %p251
        %p515 = pneg %p275
        %p516 = pneg %p272
        %p517 = pneg %p301
        %p518 = pneg %p298
        %p519 = scmp.lt.s32.totalorder %s29, 1
        %s520 = scalar_select %p519, %s29, 1
        %s521 = smul.addr %s520, 8
        %s522 = scalar_lea.vmem %s11, %s521
        %p523 = pneg %p327
        %p524 = pneg %p324
        %p525 = scmp.lt.s32.totalorder %s29, 1
        %s526 = scalar_select %p525, %s29, 1
        %s527 = smul.addr %s526, 8
        %s528 = scalar_lea.vmem %s12, %s527
        %p529 = pneg %p353
        %p530 = pneg %p350
        %p531 = scmp.lt.s32.totalorder %s29, 1
        %s532 = scalar_select %p531, %s29, 1
        %s533 = smul.addr %s532, 8
        %s534 = scalar_lea.vmem %s13, %s533
        %p535 = scmp.lt.s32.totalorder %s29, 1
        %s536 = scalar_select %p535, %s29, 1
        %s537 = smul.addr %s536, 8
        %s538 = scalar_lea.vmem %s1, %s537
        %p539 = scmp.lt.s32.totalorder %s29, 1
        %s540 = scalar_select %p539, %s29, 1
        %s541 = smul.addr %s540, 8
        %s542 = scalar_lea.vmem %s2, %s541
        %p543 = scmp.lt.s32.totalorder %s29, 1
        %s544 = scalar_select %p543, %s29, 1
        %s545 = smul.addr %s544, 8
        %s546 = scalar_lea.vmem %s3, %s545
        %p547 = scmp.lt.s32.totalorder %s29, 1
        %s548 = scalar_select %p547, %s29, 1
        %s549 = smul.addr %s548, 8
        %s550 = scalar_lea.vmem %s11, %s549
        %p551 = scmp.lt.s32.totalorder %s29, 1
        %s552 = scalar_select %p551, %s29, 1
        %s553 = smul.addr %s552, 8
        %s554 = scalar_lea.vmem %s12, %s553
        %p555 = scmp.lt.s32.totalorder %s29, 1
        %s556 = scalar_select %p555, %s29, 1
        %s557 = smul.addr %s556, 8
        %s558 = scalar_lea.vmem %s13, %s557
        %v560 = vld [vmem:[%s465] sm:$0xff]
        %v561 = vld [vmem:[%s465 + $0x8] sm:$0xff]
        %v562 = vld [vmem:[%s465 + $0x10] sm:$0xff]
        %v563 = vld [vmem:[%s465 + $0x18] sm:$0xff]
        %v564 = vld [vmem:[%s465 + $0x20] sm:$0xff]
        %v565 = vld [vmem:[%s465 + $0x28] sm:$0xff]
        %v566 = vld [vmem:[%s465 + $0x30] sm:$0xff]
        %v567 = vld [vmem:[%s465 + $0x38] sm:$0xff]
        %v568 = vpack.c.bf16 %v561, %v560
        %v569 = vpack.c.bf16 %v563, %v562
        %v570 = vpack.c.bf16 %v565, %v564
        %v571 = vpack.c.bf16 %v567, %v566
        %v572 = vld [vmem:[#allocation5] sm:$0xff]
        %v573 = vld [vmem:[#allocation5 + $0x8] sm:$0xff]
        %v574 = vld [vmem:[#allocation5 + $0x10] sm:$0xff]
        %v575 = vld [vmem:[#allocation5 + $0x18] sm:$0xff]
        %v576 = vld [vmem:[#allocation5 + $0x20] sm:$0xff]
        %v577 = vld [vmem:[#allocation5 + $0x28] sm:$0xff]
        %v578 = vld [vmem:[#allocation5 + $0x30] sm:$0xff]
        %v579 = vld [vmem:[#allocation5 + $0x38] sm:$0xff]
        %v580 = vld [vmem:[#allocation5 + $0x40] sm:$0xff]
        %v581 = vld [vmem:[#allocation5 + $0x48] sm:$0xff]
        %v582 = vld [vmem:[#allocation5 + $0x50] sm:$0xff]
        %v583 = vld [vmem:[#allocation5 + $0x58] sm:$0xff]
        %v584 = vld [vmem:[#allocation5 + $0x60] sm:$0xff]
        %v585 = vld [vmem:[#allocation5 + $0x68] sm:$0xff]
        %v586 = vld [vmem:[#allocation5 + $0x70] sm:$0xff]
        %v587 = vld [vmem:[#allocation5 + $0x78] sm:$0xff]
        %v588 = vld [vmem:[#allocation5 + $0x80] sm:$0xff]
        %v589 = vld [vmem:[#allocation5 + $0x88] sm:$0xff]
        %v590 = vld [vmem:[#allocation5 + $0x90] sm:$0xff]
        %v591 = vld [vmem:[#allocation5 + $0x98] sm:$0xff]
        %v592 = vld [vmem:[#allocation5 + $0xa0] sm:$0xff]
        %v593 = vld [vmem:[#allocation5 + $0xa8] sm:$0xff]
        %v594 = vld [vmem:[#allocation5 + $0xb0] sm:$0xff]
        %v595 = vld [vmem:[#allocation5 + $0xb8] sm:$0xff]
        %v596 = vld [vmem:[#allocation5 + $0xc0] sm:$0xff]
        %v597 = vld [vmem:[#allocation5 + $0xc8] sm:$0xff]
        %v598 = vld [vmem:[#allocation5 + $0xd0] sm:$0xff]
        %v599 = vld [vmem:[#allocation5 + $0xd8] sm:$0xff]
        %v600 = vld [vmem:[#allocation5 + $0xe0] sm:$0xff]
        %v601 = vld [vmem:[#allocation5 + $0xe8] sm:$0xff]
        %v602 = vld [vmem:[#allocation5 + $0xf0] sm:$0xff]
        %v603 = vld [vmem:[#allocation5 + $0xf8] sm:$0xff]
        %v604 = vld [vmem:[%s6] sm:$0xf]
        %v606 = vlaneseq
        %v607 = vshrl.u32 %v606, 7
        %v608 = vsub.s32 0, %v607
        %v609 = vrot.slane %v604, %v608
        %v610 = vlaneseq
        %v611 = vshrl.u32 %v610, 7
        %v612 = vsub.s32 1, %v611
        %v613 = vrot.slane %v604, %v612
        %v614 = vlaneseq
        %v615 = vshrl.u32 %v614, 7
        %v616 = vsub.s32 2, %v615
        %v617 = vrot.slane %v604, %v616
        %v618 = vlaneseq
        %v619 = vshrl.u32 %v618, 7
        %v620 = vsub.s32 3, %v619
        %v621 = vrot.slane %v604, %v620
        %v658 = vunpack.c.l.b16 %v572
        %v659 = vunpack.c.h.b16 %v572
        %v660 = vunpack.c.l.b16 %v573
        %v661 = vunpack.c.h.b16 %v573
        %v662 = vunpack.c.l.b16 %v574
        %v663 = vunpack.c.h.b16 %v574
        %v664 = vunpack.c.l.b16 %v575
        %v665 = vunpack.c.h.b16 %v575
        %v666 = vunpack.c.l.b16 %v576
        %v667 = vunpack.c.h.b16 %v576
        %v668 = vunpack.c.l.b16 %v577
        %v669 = vunpack.c.h.b16 %v577
        %v670 = vunpack.c.l.b16 %v578
        %v671 = vunpack.c.h.b16 %v578
        %v672 = vunpack.c.l.b16 %v579
        %v673 = vunpack.c.h.b16 %v579
        %v674 = vunpack.c.l.b16 %v580
        %v675 = vunpack.c.h.b16 %v580
        %v676 = vunpack.c.l.b16 %v581
        %v677 = vunpack.c.h.b16 %v581
        %v678 = vunpack.c.l.b16 %v582
        %v679 = vunpack.c.h.b16 %v582
        %v680 = vunpack.c.l.b16 %v583
        %v681 = vunpack.c.h.b16 %v583
        %v682 = vunpack.c.l.b16 %v584
        %v683 = vunpack.c.h.b16 %v584
        %v684 = vunpack.c.l.b16 %v585
        %v685 = vunpack.c.h.b16 %v585
        %v686 = vunpack.c.l.b16 %v586
        %v687 = vunpack.c.h.b16 %v586
        %v688 = vunpack.c.l.b16 %v587
        %v689 = vunpack.c.h.b16 %v587
        %v690 = vunpack.c.l.b16 %v588
        %v691 = vunpack.c.h.b16 %v588
        %v692 = vunpack.c.l.b16 %v589
        %v693 = vunpack.c.h.b16 %v589
        %v694 = vunpack.c.l.b16 %v590
        %v695 = vunpack.c.h.b16 %v590
        %v696 = vunpack.c.l.b16 %v591
        %v697 = vunpack.c.h.b16 %v591
        %v698 = vunpack.c.l.b16 %v592
        %v699 = vunpack.c.h.b16 %v592
        %v700 = vunpack.c.l.b16 %v593
        %v701 = vunpack.c.h.b16 %v593
        %v702 = vunpack.c.l.b16 %v594
        %v703 = vunpack.c.h.b16 %v594
        %v704 = vunpack.c.l.b16 %v595
        %v705 = vunpack.c.h.b16 %v595
        %v706 = vunpack.c.l.b16 %v596
        %v707 = vunpack.c.h.b16 %v596
        %v708 = vunpack.c.l.b16 %v597
        %v709 = vunpack.c.h.b16 %v597
        %v710 = vunpack.c.l.b16 %v598
        %v711 = vunpack.c.h.b16 %v598
        %v712 = vunpack.c.l.b16 %v599
        %v713 = vunpack.c.h.b16 %v599
        %v714 = vunpack.c.l.b16 %v600
        %v715 = vunpack.c.h.b16 %v600
        %v716 = vunpack.c.l.b16 %v601
        %v717 = vunpack.c.h.b16 %v601
        %v718 = vunpack.c.l.b16 %v602
        %v719 = vunpack.c.h.b16 %v602
        %v720 = vunpack.c.l.b16 %v603
        %v721 = vunpack.c.h.b16 %v603
        %v722 = vpack.c.b16 %v662, %v658
        %v723 = vpack.c.b16 %v663, %v659
        %v724 = vpack.c.b16 %v664, %v660
        %v725 = vpack.c.b16 %v665, %v661
        %v726 = vpack.c.b16 %v670, %v666
        %v727 = vpack.c.b16 %v671, %v667
        %v728 = vpack.c.b16 %v672, %v668
        %v729 = vpack.c.b16 %v673, %v669
        %v730 = vpack.c.b16 %v678, %v674
        %v731 = vpack.c.b16 %v679, %v675
        %v732 = vpack.c.b16 %v680, %v676
        %v733 = vpack.c.b16 %v681, %v677
        %v734 = vpack.c.b16 %v686, %v682
        %v735 = vpack.c.b16 %v687, %v683
        %v736 = vpack.c.b16 %v688, %v684
        %v737 = vpack.c.b16 %v689, %v685
        %v738 = vpack.c.b16 %v694, %v690
        %v739 = vpack.c.b16 %v695, %v691
        %v740 = vpack.c.b16 %v696, %v692
        %v741 = vpack.c.b16 %v697, %v693
        %v742 = vpack.c.b16 %v702, %v698
        %v743 = vpack.c.b16 %v703, %v699
        %v744 = vpack.c.b16 %v704, %v700
        %v745 = vpack.c.b16 %v705, %v701
        %v746 = vpack.c.b16 %v710, %v706
        %v747 = vpack.c.b16 %v711, %v707
        %v748 = vpack.c.b16 %v712, %v708
        %v749 = vpack.c.b16 %v713, %v709
        %v750 = vpack.c.b16 %v718, %v714
        %v751 = vpack.c.b16 %v719, %v715
        %v752 = vpack.c.b16 %v720, %v716
        %v753 = vpack.c.b16 %v721, %v717
        %786 = vmatprep.subr.bf16.mxu0 %v751
        %787 = vmatpush1.bf16.msra.mxu0 %v750
        %788 = vmatprep.subr.bf16.mxu0 %v747
        %789 = vmatpush1.bf16.msra.mxu0 %v746
        %790 = vmatprep.subr.bf16.mxu0 %v743
        %791 = vmatpush1.bf16.msra.mxu0 %v742
        %792 = vmatprep.subr.bf16.mxu0 %v739
        %793 = vmatpush1.bf16.msra.mxu0 %v738
        %794 = vmatprep.subr.bf16.mxu0 %v735
        %795 = vmatpush1.bf16.msra.mxu0 %v734
        %796 = vmatprep.subr.bf16.mxu0 %v731
        %797 = vmatpush1.bf16.msra.mxu0 %v730
        %798 = vmatprep.subr.bf16.mxu0 %v727
        %799 = vmatpush1.bf16.msra.mxu0 %v726
        %800 = vmatprep.subr.bf16.mxu0 %v723
        %801 = vmatpush1.bf16.msra.mxu0 %v722
        %802 = vmatprep.subr.bf16.mxu0 0
        %803 = vmatpush2.bf16.msra.mxu0 0
        %804 = vmatprep.subr.bf16.mxu0 0
        %805 = vmatpush2.bf16.msra.mxu0 0
        %806 = vmatprep.subr.bf16.mxu0 0
        %807 = vmatpush2.bf16.msra.mxu0 0
        %808 = vmatprep.subr.bf16.mxu0 0
        %809 = vmatpush2.bf16.msra.mxu0 0
        %810 = vmatprep.subr.bf16.mxu0 0
        %811 = vmatpush2.bf16.msra.mxu0 0
        %812 = vmatprep.subr.bf16.mxu0 0
        %813 = vmatpush2.bf16.msra.mxu0 0
        %814 = vmatprep.subr.bf16.mxu0 0
        %815 = vmatpush2.bf16.msra.mxu0 0
        %816 = vmatprep.subr.bf16.mxu0 0
        %817 = vmatpush2.bf16.msra.mxu0 0
        %818 = vmatprep.mubr.bf16.mxu0 0
        %819 = vmatmul.mubr.bf16.gmra.mxu0 %v568
        %v820 = vpop.f32.mrf.mxu0
        %v821 = vadd.f32 %v609, %v820
        %v822 = vpop.f32.mrf.mxu0
        %v823 = vadd.f32 %v613, %v822
        %v824 = vpop.f32.mrf.mxu0
        %v825 = vadd.f32 %v609, %v824
        %v826 = vpop.f32.mrf.mxu0
        %v827 = vadd.f32 %v613, %v826
        %828 = vmatprep.mubr.bf16.mxu0 0
        %829 = vmatmul.mubr.bf16.gmra.mxu0 %v569
        %v830 = vpop.f32.mrf.mxu0
        %v831 = vadd.f32 %v609, %v830
        %v832 = vpop.f32.mrf.mxu0
        %v833 = vadd.f32 %v613, %v832
        %v834 = vpop.f32.mrf.mxu0
        %v835 = vadd.f32 %v609, %v834
        %v836 = vpop.f32.mrf.mxu0
        %v837 = vadd.f32 %v613, %v836
        %838 = vmatprep.mubr.bf16.mxu0 0
        %839 = vmatmul.mubr.bf16.gmra.mxu0 %v570
        %v840 = vpop.f32.mrf.mxu0
        %v841 = vadd.f32 %v609, %v840
        %v842 = vpop.f32.mrf.mxu0
        %v843 = vadd.f32 %v613, %v842
        %v844 = vpop.f32.mrf.mxu0
        %v845 = vadd.f32 %v609, %v844
        %v846 = vpop.f32.mrf.mxu0
        %v847 = vadd.f32 %v613, %v846
        %848 = vmatprep.mubr.bf16.mxu0 0
        %849 = vmatmul.mubr.bf16.gmra.mxu0 %v571
        %v850 = vpop.f32.mrf.mxu0
        %v851 = vadd.f32 %v609, %v850
        %v852 = vpop.f32.mrf.mxu0
        %v853 = vadd.f32 %v613, %v852
        %v854 = vpop.f32.mrf.mxu0
        %v855 = vadd.f32 %v609, %v854
        %v856 = vpop.f32.mrf.mxu0
        %v857 = vadd.f32 %v613, %v856
        %858 = vdwg.mxu0
        %859 = vmatprep.subr.bf16.mxu0 %v753
        %860 = vmatpush1.bf16.msra.mxu0 %v752
        %861 = vmatprep.subr.bf16.mxu0 %v749
        %862 = vmatpush1.bf16.msra.mxu0 %v748
        %863 = vmatprep.subr.bf16.mxu0 %v745
        %864 = vmatpush1.bf16.msra.mxu0 %v744
        %865 = vmatprep.subr.bf16.mxu0 %v741
        %866 = vmatpush1.bf16.msra.mxu0 %v740
        %867 = vmatprep.subr.bf16.mxu0 %v737
        %868 = vmatpush1.bf16.msra.mxu0 %v736
        %869 = vmatprep.subr.bf16.mxu0 %v733
        %870 = vmatpush1.bf16.msra.mxu0 %v732
        %871 = vmatprep.subr.bf16.mxu0 %v729
        %872 = vmatpush1.bf16.msra.mxu0 %v728
        %873 = vmatprep.subr.bf16.mxu0 %v725
        %874 = vmatpush1.bf16.msra.mxu0 %v724
        %875 = vmatprep.subr.bf16.mxu0 0
        %876 = vmatpush2.bf16.msra.mxu0 0
        %877 = vmatprep.subr.bf16.mxu0 0
        %878 = vmatpush2.bf16.msra.mxu0 0
        %879 = vmatprep.subr.bf16.mxu0 0
        %880 = vmatpush2.bf16.msra.mxu0 0
        %881 = vmatprep.subr.bf16.mxu0 0
        %882 = vmatpush2.bf16.msra.mxu0 0
        %883 = vmatprep.subr.bf16.mxu0 0
        %884 = vmatpush2.bf16.msra.mxu0 0
        %885 = vmatprep.subr.bf16.mxu0 0
        %886 = vmatpush2.bf16.msra.mxu0 0
        %887 = vmatprep.subr.bf16.mxu0 0
        %888 = vmatpush2.bf16.msra.mxu0 0
        %889 = vmatprep.subr.bf16.mxu0 0
        %890 = vmatpush2.bf16.msra.mxu0 0
        %891 = vmatprep.mubr.bf16.mxu0 0
        %892 = vmatmul.mubr.bf16.gmra.mxu0 %v568
        %v893 = vpop.f32.mrf.mxu0
        %v894 = vadd.f32 %v617, %v893
        %v895 = vpop.f32.mrf.mxu0
        %v896 = vadd.f32 %v621, %v895
        %v897 = vpop.f32.mrf.mxu0
        %v898 = vadd.f32 %v617, %v897
        %v899 = vpop.f32.mrf.mxu0
        %v900 = vadd.f32 %v621, %v899
        %901 = vmatprep.mubr.bf16.mxu0 0
        %902 = vmatmul.mubr.bf16.gmra.mxu0 %v569
        %v903 = vpop.f32.mrf.mxu0
        %v904 = vadd.f32 %v617, %v903
        %v905 = vpop.f32.mrf.mxu0
        %v906 = vadd.f32 %v621, %v905
        %v907 = vpop.f32.mrf.mxu0
        %v908 = vadd.f32 %v617, %v907
        %v909 = vpop.f32.mrf.mxu0
        %v910 = vadd.f32 %v621, %v909
        %911 = vmatprep.mubr.bf16.mxu0 0
        %912 = vmatmul.mubr.bf16.gmra.mxu0 %v570
        %v913 = vpop.f32.mrf.mxu0
        %v914 = vadd.f32 %v617, %v913
        %v915 = vpop.f32.mrf.mxu0
        %v916 = vadd.f32 %v621, %v915
        %v917 = vpop.f32.mrf.mxu0
        %v918 = vadd.f32 %v617, %v917
        %v919 = vpop.f32.mrf.mxu0
        %v920 = vadd.f32 %v621, %v919
        %921 = vmatprep.mubr.bf16.mxu0 0
        %922 = vmatmul.mubr.bf16.gmra.mxu0 %v571
        %v923 = vpop.f32.mrf.mxu0
        %v924 = vadd.f32 %v617, %v923
        %v925 = vpop.f32.mrf.mxu0
        %v926 = vadd.f32 %v621, %v925
        %v927 = vpop.f32.mrf.mxu0
        %v928 = vadd.f32 %v617, %v927
        %v929 = vpop.f32.mrf.mxu0
        %v930 = vadd.f32 %v621, %v929
        %931 = vdwg.mxu0
        %932 = vst [vmem:[#allocation2] sm:$0xff] %v821
        %933 = vst [vmem:[#allocation2 + $0x8] sm:$0xff] %v823
        %934 = vst [vmem:[#allocation2 + $0x10] sm:$0xff] %v894
        %935 = vst [vmem:[#allocation2 + $0x18] sm:$0xff] %v896
        %936 = vst [vmem:[#allocation2 + $0x20] sm:$0xff] %v825
        %937 = vst [vmem:[#allocation2 + $0x28] sm:$0xff] %v827
        %938 = vst [vmem:[#allocation2 + $0x30] sm:$0xff] %v898
        %939 = vst [vmem:[#allocation2 + $0x38] sm:$0xff] %v900
        %940 = vst [vmem:[#allocation2 + $0x40] sm:$0xff] %v831
        %941 = vst [vmem:[#allocation2 + $0x48] sm:$0xff] %v833
        %942 = vst [vmem:[#allocation2 + $0x50] sm:$0xff] %v904
        %943 = vst [vmem:[#allocation2 + $0x58] sm:$0xff] %v906
        %944 = vst [vmem:[#allocation2 + $0x60] sm:$0xff] %v835
        %945 = vst [vmem:[#allocation2 + $0x68] sm:$0xff] %v837
        %946 = vst [vmem:[#allocation2 + $0x70] sm:$0xff] %v908
        %947 = vst [vmem:[#allocation2 + $0x78] sm:$0xff] %v910
        %948 = vst [vmem:[#allocation2 + $0x80] sm:$0xff] %v841
        %949 = vst [vmem:[#allocation2 + $0x88] sm:$0xff] %v843
        %950 = vst [vmem:[#allocation2 + $0x90] sm:$0xff] %v914
        %951 = vst [vmem:[#allocation2 + $0x98] sm:$0xff] %v916
        %952 = vst [vmem:[#allocation2 + $0xa0] sm:$0xff] %v845
        %953 = vst [vmem:[#allocation2 + $0xa8] sm:$0xff] %v847
        %954 = vst [vmem:[#allocation2 + $0xb0] sm:$0xff] %v918
        %955 = vst [vmem:[#allocation2 + $0xb8] sm:$0xff] %v920
        %956 = vst [vmem:[#allocation2 + $0xc0] sm:$0xff] %v851
        %957 = vst [vmem:[#allocation2 + $0xc8] sm:$0xff] %v853
        %958 = vst [vmem:[#allocation2 + $0xd0] sm:$0xff] %v924
        %959 = vst [vmem:[#allocation2 + $0xd8] sm:$0xff] %v926
        %960 = vst [vmem:[#allocation2 + $0xe0] sm:$0xff] %v855
        %961 = vst [vmem:[#allocation2 + $0xe8] sm:$0xff] %v857
        %962 = vst [vmem:[#allocation2 + $0xf0] sm:$0xff] %v928
        %963 = vst [vmem:[#allocation2 + $0xf8] sm:$0xff] %v930
        %v964 = vld [vmem:[#allocation2] sm:$0xff]
        %v965 = vld [vmem:[#allocation2 + $0x8] sm:$0xff]
        %v966 = vld [vmem:[#allocation2 + $0x10] sm:$0xff]
        %v967 = vld [vmem:[#allocation2 + $0x18] sm:$0xff]
        %v968 = vld [vmem:[#allocation7] sm:$0xff]
        %v969 = vld [vmem:[#allocation7 + $0x8] sm:$0xff]
        %v970 = vld [vmem:[#allocation7 + $0x10] sm:$0xff]
        %v971 = vld [vmem:[#allocation7 + $0x18] sm:$0xff]
        %v972 = vld [vmem:[#allocation7 + $0x20] sm:$0xff]
        %v973 = vld [vmem:[#allocation7 + $0x28] sm:$0xff]
        %v974 = vld [vmem:[#allocation7 + $0x30] sm:$0xff]
        %v975 = vld [vmem:[#allocation7 + $0x38] sm:$0xff]
        %v976 = vld [vmem:[#allocation7 + $0x40] sm:$0xff]
        %v977 = vld [vmem:[#allocation7 + $0x48] sm:$0xff]
        %v978 = vld [vmem:[#allocation7 + $0x50] sm:$0xff]
        %v979 = vld [vmem:[#allocation7 + $0x58] sm:$0xff]
        %v980 = vld [vmem:[#allocation7 + $0x60] sm:$0xff]
        %v981 = vld [vmem:[#allocation7 + $0x68] sm:$0xff]
        %v982 = vld [vmem:[#allocation7 + $0x70] sm:$0xff]
        %v983 = vld [vmem:[#allocation7 + $0x78] sm:$0xff]
        %v984 = vld [vmem:[#allocation7 + $0x80] sm:$0xff]
        %v985 = vld [vmem:[#allocation7 + $0x88] sm:$0xff]
        %v986 = vld [vmem:[#allocation7 + $0x90] sm:$0xff]
        %v987 = vld [vmem:[#allocation7 + $0x98] sm:$0xff]
        %v988 = vld [vmem:[#allocation7 + $0xa0] sm:$0xff]
        %v989 = vld [vmem:[#allocation7 + $0xa8] sm:$0xff]
        %v990 = vld [vmem:[#allocation7 + $0xb0] sm:$0xff]
        %v991 = vld [vmem:[#allocation7 + $0xb8] sm:$0xff]
        %v992 = vld [vmem:[#allocation7 + $0xc0] sm:$0xff]
        %v993 = vld [vmem:[#allocation7 + $0xc8] sm:$0xff]
        %v994 = vld [vmem:[#allocation7 + $0xd0] sm:$0xff]
        %v995 = vld [vmem:[#allocation7 + $0xd8] sm:$0xff]
        %v996 = vld [vmem:[#allocation7 + $0xe0] sm:$0xff]
        %v997 = vld [vmem:[#allocation7 + $0xe8] sm:$0xff]
        %v998 = vld [vmem:[#allocation7 + $0xf0] sm:$0xff]
        %v999 = vld [vmem:[#allocation7 + $0xf8] sm:$0xff]
        %v1032 = vunpack.c.l.b16 %v968
        %v1033 = vunpack.c.h.b16 %v968
        %v1034 = vunpack.c.l.b16 %v969
        %v1035 = vunpack.c.h.b16 %v969
        %v1036 = vunpack.c.l.b16 %v970
        %v1037 = vunpack.c.h.b16 %v970
        %v1038 = vunpack.c.l.b16 %v971
        %v1039 = vunpack.c.h.b16 %v971
        %v1040 = vunpack.c.l.b16 %v972
        %v1041 = vunpack.c.h.b16 %v972
        %v1042 = vunpack.c.l.b16 %v973
        %v1043 = vunpack.c.h.b16 %v973
        %v1044 = vunpack.c.l.b16 %v974
        %v1045 = vunpack.c.h.b16 %v974
        %v1046 = vunpack.c.l.b16 %v975
        %v1047 = vunpack.c.h.b16 %v975
        %v1048 = vunpack.c.l.b16 %v976
        %v1049 = vunpack.c.h.b16 %v976
        %v1050 = vunpack.c.l.b16 %v977
        %v1051 = vunpack.c.h.b16 %v977
        %v1052 = vunpack.c.l.b16 %v978
        %v1053 = vunpack.c.h.b16 %v978
        %v1054 = vunpack.c.l.b16 %v979
        %v1055 = vunpack.c.h.b16 %v979
        %v1056 = vunpack.c.l.b16 %v980
        %v1057 = vunpack.c.h.b16 %v980
        %v1058 = vunpack.c.l.b16 %v981
        %v1059 = vunpack.c.h.b16 %v981
        %v1060 = vunpack.c.l.b16 %v982
        %v1061 = vunpack.c.h.b16 %v982
        %v1062 = vunpack.c.l.b16 %v983
        %v1063 = vunpack.c.h.b16 %v983
        %v1064 = vunpack.c.l.b16 %v984
        %v1065 = vunpack.c.h.b16 %v984
        %v1066 = vunpack.c.l.b16 %v985
        %v1067 = vunpack.c.h.b16 %v985
        %v1068 = vunpack.c.l.b16 %v986
        %v1069 = vunpack.c.h.b16 %v986
        %v1070 = vunpack.c.l.b16 %v987
        %v1071 = vunpack.c.h.b16 %v987
        %v1072 = vunpack.c.l.b16 %v988
        %v1073 = vunpack.c.h.b16 %v988
        %v1074 = vunpack.c.l.b16 %v989
        %v1075 = vunpack.c.h.b16 %v989
        %v1076 = vunpack.c.l.b16 %v990
        %v1077 = vunpack.c.h.b16 %v990
        %v1078 = vunpack.c.l.b16 %v991
        %v1079 = vunpack.c.h.b16 %v991
        %v1080 = vunpack.c.l.b16 %v992
        %v1081 = vunpack.c.h.b16 %v992
        %v1082 = vunpack.c.l.b16 %v993
        %v1083 = vunpack.c.h.b16 %v993
        %v1084 = vunpack.c.l.b16 %v994
        %v1085 = vunpack.c.h.b16 %v994
        %v1086 = vunpack.c.l.b16 %v995
        %v1087 = vunpack.c.h.b16 %v995
        %v1088 = vunpack.c.l.b16 %v996
        %v1089 = vunpack.c.h.b16 %v996
        %v1090 = vunpack.c.l.b16 %v997
        %v1091 = vunpack.c.h.b16 %v997
        %v1092 = vunpack.c.l.b16 %v998
        %v1093 = vunpack.c.h.b16 %v998
        %v1094 = vunpack.c.l.b16 %v999
        %v1095 = vunpack.c.h.b16 %v999
        %v1096 = vpack.c.b16 %v1036, %v1032
        %v1097 = vpack.c.b16 %v1037, %v1033
        %v1098 = vpack.c.b16 %v1038, %v1034
        %v1099 = vpack.c.b16 %v1039, %v1035
        %v1100 = vpack.c.b16 %v1044, %v1040
        %v1101 = vpack.c.b16 %v1045, %v1041
        %v1102 = vpack.c.b16 %v1046, %v1042
        %v1103 = vpack.c.b16 %v1047, %v1043
        %v1104 = vpack.c.b16 %v1052, %v1048
        %v1105 = vpack.c.b16 %v1053, %v1049
        %v1106 = vpack.c.b16 %v1054, %v1050
        %v1107 = vpack.c.b16 %v1055, %v1051
        %v1108 = vpack.c.b16 %v1060, %v1056
        %v1109 = vpack.c.b16 %v1061, %v1057
        %v1110 = vpack.c.b16 %v1062, %v1058
        %v1111 = vpack.c.b16 %v1063, %v1059
        %v1112 = vpack.c.b16 %v1068, %v1064
        %v1113 = vpack.c.b16 %v1069, %v1065
        %v1114 = vpack.c.b16 %v1070, %v1066
        %v1115 = vpack.c.b16 %v1071, %v1067
        %v1116 = vpack.c.b16 %v1076, %v1072
        %v1117 = vpack.c.b16 %v1077, %v1073
        %v1118 = vpack.c.b16 %v1078, %v1074
        %v1119 = vpack.c.b16 %v1079, %v1075
        %v1120 = vpack.c.b16 %v1084, %v1080
        %v1121 = vpack.c.b16 %v1085, %v1081
        %v1122 = vpack.c.b16 %v1086, %v1082
        %v1123 = vpack.c.b16 %v1087, %v1083
        %v1124 = vpack.c.b16 %v1092, %v1088
        %v1125 = vpack.c.b16 %v1093, %v1089
        %v1126 = vpack.c.b16 %v1094, %v1090
        %v1127 = vpack.c.b16 %v1095, %v1091
        %1160 = vmatprep.subr.bf16.mxu0 %v1125
        %1161 = vmatpush1.bf16.msra.mxu0 %v1124
        %1162 = vmatprep.subr.bf16.mxu0 %v1121
        %1163 = vmatpush1.bf16.msra.mxu0 %v1120
        %1164 = vmatprep.subr.bf16.mxu0 %v1117
        %1165 = vmatpush1.bf16.msra.mxu0 %v1116
        %1166 = vmatprep.subr.bf16.mxu0 %v1113
        %1167 = vmatpush1.bf16.msra.mxu0 %v1112
        %1168 = vmatprep.subr.bf16.mxu0 %v1109
        %1169 = vmatpush1.bf16.msra.mxu0 %v1108
        %1170 = vmatprep.subr.bf16.mxu0 %v1105
        %1171 = vmatpush1.bf16.msra.mxu0 %v1104
        %1172 = vmatprep.subr.bf16.mxu0 %v1101
        %1173 = vmatpush1.bf16.msra.mxu0 %v1100
        %1174 = vmatprep.subr.bf16.mxu0 %v1097
        %1175 = vmatpush1.bf16.msra.mxu0 %v1096
        %1176 = vmatprep.subr.bf16.mxu0 0
        %1177 = vmatpush2.bf16.msra.mxu0 0
        %1178 = vmatprep.subr.bf16.mxu0 0
        %1179 = vmatpush2.bf16.msra.mxu0 0
        %1180 = vmatprep.subr.bf16.mxu0 0
        %1181 = vmatpush2.bf16.msra.mxu0 0
        %1182 = vmatprep.subr.bf16.mxu0 0
        %1183 = vmatpush2.bf16.msra.mxu0 0
        %1184 = vmatprep.subr.bf16.mxu0 0
        %1185 = vmatpush2.bf16.msra.mxu0 0
        %1186 = vmatprep.subr.bf16.mxu0 0
        %1187 = vmatpush2.bf16.msra.mxu0 0
        %1188 = vmatprep.subr.bf16.mxu0 0
        %1189 = vmatpush2.bf16.msra.mxu0 0
        %1190 = vmatprep.subr.bf16.mxu0 0
        %1191 = vmatpush2.bf16.msra.mxu0 0
        %1192 = vmatprep.mubr.bf16.mxu0 0
        %1193 = vmatmul.mubr.bf16.gmra.mxu0 0
        %v1194 = vpop.f32.mrf.mxu0
        %v1195 = vadd.f32 0.0, %v1194
        %v1196 = vpop.f32.mrf.mxu0
        %v1197 = vadd.f32 0.0, %v1196
        %v1198 = vpop.f32.mrf.mxu0
        %v1199 = vpop.f32.mrf.mxu0
        %1200 = vdwg.mxu0
        %1201 = vmatprep.subr.bf16.mxu0 %v1127
        %1202 = vmatpush1.bf16.msra.mxu0 %v1126
        %1203 = vmatprep.subr.bf16.mxu0 %v1123
        %1204 = vmatpush1.bf16.msra.mxu0 %v1122
        %1205 = vmatprep.subr.bf16.mxu0 %v1119
        %1206 = vmatpush1.bf16.msra.mxu0 %v1118
        %1207 = vmatprep.subr.bf16.mxu0 %v1115
        %1208 = vmatpush1.bf16.msra.mxu0 %v1114
        %1209 = vmatprep.subr.bf16.mxu0 %v1111
        %1210 = vmatpush1.bf16.msra.mxu0 %v1110
        %1211 = vmatprep.subr.bf16.mxu0 %v1107
        %1212 = vmatpush1.bf16.msra.mxu0 %v1106
        %1213 = vmatprep.subr.bf16.mxu0 %v1103
        %1214 = vmatpush1.bf16.msra.mxu0 %v1102
        %1215 = vmatprep.subr.bf16.mxu0 %v1099
        %1216 = vmatpush1.bf16.msra.mxu0 %v1098
        %1217 = vmatprep.subr.bf16.mxu0 0
        %1218 = vmatpush2.bf16.msra.mxu0 0
        %1219 = vmatprep.subr.bf16.mxu0 0
        %1220 = vmatpush2.bf16.msra.mxu0 0
        %1221 = vmatprep.subr.bf16.mxu0 0
        %1222 = vmatpush2.bf16.msra.mxu0 0
        %1223 = vmatprep.subr.bf16.mxu0 0
        %1224 = vmatpush2.bf16.msra.mxu0 0
        %1225 = vmatprep.subr.bf16.mxu0 0
        %1226 = vmatpush2.bf16.msra.mxu0 0
        %1227 = vmatprep.subr.bf16.mxu0 0
        %1228 = vmatpush2.bf16.msra.mxu0 0
        %1229 = vmatprep.subr.bf16.mxu0 0
        %1230 = vmatpush2.bf16.msra.mxu0 0
        %1231 = vmatprep.subr.bf16.mxu0 0
        %1232 = vmatpush2.bf16.msra.mxu0 0
        %1233 = vmatprep.mubr.bf16.mxu0 0
        %1234 = vmatmul.mubr.bf16.gmra.mxu0 0
        %v1235 = vpop.f32.mrf.mxu0
        %v1236 = vadd.f32 0.0, %v1235
        %v1237 = vpop.f32.mrf.mxu0
        %v1238 = vadd.f32 0.0, %v1237
        %v1239 = vpop.f32.mrf.mxu0
        %v1240 = vpop.f32.mrf.mxu0
        %1241 = vdwg.mxu0
        %v1242 = vadd.f32 %v964, %v1195
        %v1243 = vadd.f32 %v965, %v1197
        %v1244 = vadd.f32 %v966, %v1236
        %v1245 = vadd.f32 %v967, %v1238
        %v1246 = vxor.u32 %v1242, 2147483648
        %v1247 = vmul.f32 %v1246, 1.442695
        %v1248 = vpow.pop %v1247
        %v1249 = vadd.f32 %v1248, 1.0
        %v1250 = vrcp.pop %v1249
        %v1251 = vmul.f32 1.0, %v1250
        %v1252 = vxor.u32 %v1243, 2147483648
        %v1253 = vmul.f32 %v1252, 1.442695
        %v1254 = vpow.pop %v1253
        %v1255 = vadd.f32 %v1254, 1.0
        %v1256 = vrcp.pop %v1255
        %v1257 = vmul.f32 1.0, %v1256
        %v1258 = vtanh.pop %v1244
        %v1259 = vxor.u32 %v1245, 2147483648
        %v1260 = vmul.f32 %v1259, 1.442695
        %v1261 = vpow.pop %v1260
        %v1262 = vadd.f32 %v1261, 1.0
        %v1263 = vrcp.pop %v1262
        %v1264 = vmul.f32 1.0, %v1263
        %v1265 = vmul.f32 %v1257, 0.0
        %v1266 = vmul.f32 %v1251, %v1258
        %v1267 = vadd.f32 %v1265, %v1266
        %v1268 = vtanh.pop %v1267
        %v1269 = vmul.f32 %v1264, %v1268
        %v1270 = vld [vmem:[%s538] sm:$0xff]
        %vm1271 = vcmp.gt.f32.partialorder %v1270, 0.0
        %v1272 = vsel %vm1271, 1, 0
        %1273 = vset.pattern.permute.xlu0 0
        %1274 = vperm.xlu0 %1273, %v1272
        %v1275 = vpop.permute.xlu0 %1274
        %vm1276 = vcmp.eq.s32.totalorder %v1275, 1
        %v1277 = vsel %vm1276, %v1269, 0.0
        %v1278 = vadd.f32 %v1277, 0.0
        %v1279 = vsel %vm1276, %v1267, 0.0
        %v1280 = vld [vmem:[#allocation2 + $0x20] sm:$0xff]
        %v1281 = vld [vmem:[#allocation2 + $0x28] sm:$0xff]
        %v1282 = vld [vmem:[#allocation2 + $0x30] sm:$0xff]
        %v1283 = vld [vmem:[#allocation2 + $0x38] sm:$0xff]
        %v1284 = vpack.c.bf16 %v1277, %v1277
        %1285 = vmatprep.subr.bf16.mxu0 %v1125
        %1286 = vmatpush1.bf16.msra.mxu0 %v1124
        %1287 = vmatprep.subr.bf16.mxu0 %v1121
        %1288 = vmatpush1.bf16.msra.mxu0 %v1120
        %1289 = vmatprep.subr.bf16.mxu0 %v1117
        %1290 = vmatpush1.bf16.msra.mxu0 %v1116
        %1291 = vmatprep.subr.bf16.mxu0 %v1113
        %1292 = vmatpush1.bf16.msra.mxu0 %v1112
        %1293 = vmatprep.subr.bf16.mxu0 %v1109
        %1294 = vmatpush1.bf16.msra.mxu0 %v1108
        %1295 = vmatprep.subr.bf16.mxu0 %v1105
        %1296 = vmatpush1.bf16.msra.mxu0 %v1104
        %1297 = vmatprep.subr.bf16.mxu0 %v1101
        %1298 = vmatpush1.bf16.msra.mxu0 %v1100
        %1299 = vmatprep.subr.bf16.mxu0 %v1097
        %1300 = vmatpush1.bf16.msra.mxu0 %v1096
        %1301 = vmatprep.subr.bf16.mxu0 0
        %1302 = vmatpush2.bf16.msra.mxu0 0
        %1303 = vmatprep.subr.bf16.mxu0 0
        %1304 = vmatpush2.bf16.msra.mxu0 0
        %1305 = vmatprep.subr.bf16.mxu0 0
        %1306 = vmatpush2.bf16.msra.mxu0 0
        %1307 = vmatprep.subr.bf16.mxu0 0
        %1308 = vmatpush2.bf16.msra.mxu0 0
        %1309 = vmatprep.subr.bf16.mxu0 0
        %1310 = vmatpush2.bf16.msra.mxu0 0
        %1311 = vmatprep.subr.bf16.mxu0 0
        %1312 = vmatpush2.bf16.msra.mxu0 0
        %1313 = vmatprep.subr.bf16.mxu0 0
        %1314 = vmatpush2.bf16.msra.mxu0 0
        %1315 = vmatprep.subr.bf16.mxu0 0
        %1316 = vmatpush2.bf16.msra.mxu0 0
        %1317 = vmatprep.mubr.bf16.mxu0 0
        %1318 = vmatmul.mubr.bf16.gmra.mxu0 %v1284
        %v1319 = vpop.f32.mrf.mxu0
        %v1320 = vadd.f32 0.0, %v1319
        %v1321 = vpop.f32.mrf.mxu0
        %v1322 = vadd.f32 0.0, %v1321
        %v1323 = vpop.f32.mrf.mxu0
        %v1324 = vpop.f32.mrf.mxu0
        %1325 = vdwg.mxu0
        %1326 = vmatprep.subr.bf16.mxu0 %v1127
        %1327 = vmatpush1.bf16.msra.mxu0 %v1126
        %1328 = vmatprep.subr.bf16.mxu0 %v1123
        %1329 = vmatpush1.bf16.msra.mxu0 %v1122
        %1330 = vmatprep.subr.bf16.mxu0 %v1119
        %1331 = vmatpush1.bf16.msra.mxu0 %v1118
        %1332 = vmatprep.subr.bf16.mxu0 %v1115
        %1333 = vmatpush1.bf16.msra.mxu0 %v1114
        %1334 = vmatprep.subr.bf16.mxu0 %v1111
        %1335 = vmatpush1.bf16.msra.mxu0 %v1110
        %1336 = vmatprep.subr.bf16.mxu0 %v1107
        %1337 = vmatpush1.bf16.msra.mxu0 %v1106
        %1338 = vmatprep.subr.bf16.mxu0 %v1103
        %1339 = vmatpush1.bf16.msra.mxu0 %v1102
        %1340 = vmatprep.subr.bf16.mxu0 %v1099
        %1341 = vmatpush1.bf16.msra.mxu0 %v1098
        %1342 = vmatprep.subr.bf16.mxu0 0
        %1343 = vmatpush2.bf16.msra.mxu0 0
        %1344 = vmatprep.subr.bf16.mxu0 0
        %1345 = vmatpush2.bf16.msra.mxu0 0
        %1346 = vmatprep.subr.bf16.mxu0 0
        %1347 = vmatpush2.bf16.msra.mxu0 0
        %1348 = vmatprep.subr.bf16.mxu0 0
        %1349 = vmatpush2.bf16.msra.mxu0 0
        %1350 = vmatprep.subr.bf16.mxu0 0
        %1351 = vmatpush2.bf16.msra.mxu0 0
        %1352 = vmatprep.subr.bf16.mxu0 0
        %1353 = vmatpush2.bf16.msra.mxu0 0
        %1354 = vmatprep.subr.bf16.mxu0 0
        %1355 = vmatpush2.bf16.msra.mxu0 0
        %1356 = vmatprep.subr.bf16.mxu0 0
        %1357 = vmatpush2.bf16.msra.mxu0 0
        %1358 = vmatprep.mubr.bf16.mxu0 0
        %1359 = vmatmul.mubr.bf16.gmra.mxu0 %v1284
        %v1360 = vpop.f32.mrf.mxu0
        %v1361 = vadd.f32 0.0, %v1360
        %v1362 = vpop.f32.mrf.mxu0
        %v1363 = vadd.f32 0.0, %v1362
        %v1364 = vpop.f32.mrf.mxu0
        %v1365 = vpop.f32.mrf.mxu0
        %1366 = vdwg.mxu0
        %v1367 = vadd.f32 %v1280, %v1320
        %v1368 = vadd.f32 %v1281, %v1322
        %v1369 = vadd.f32 %v1282, %v1361
        %v1370 = vadd.f32 %v1283, %v1363
        %v1371 = vxor.u32 %v1367, 2147483648
        %v1372 = vmul.f32 %v1371, 1.442695
        %v1373 = vpow.pop %v1372
        %v1374 = vadd.f32 %v1373, 1.0
        %v1375 = vrcp.pop %v1374
        %v1376 = vmul.f32 1.0, %v1375
        %v1377 = vxor.u32 %v1368, 2147483648
        %v1378 = vmul.f32 %v1377, 1.442695
        %v1379 = vpow.pop %v1378
        %v1380 = vadd.f32 %v1379, 1.0
        %v1381 = vrcp.pop %v1380
        %v1382 = vmul.f32 1.0, %v1381
        %v1383 = vtanh.pop %v1369
        %v1384 = vxor.u32 %v1370, 2147483648
        %v1385 = vmul.f32 %v1384, 1.442695
        %v1386 = vpow.pop %v1385
        %v1387 = vadd.f32 %v1386, 1.0
        %v1388 = vrcp.pop %v1387
        %v1389 = vmul.f32 1.0, %v1388
        %v1390 = vmul.f32 %v1382, %v1279
        %v1391 = vmul.f32 %v1376, %v1383
        %v1392 = vadd.f32 %v1390, %v1391
        %v1393 = vtanh.pop %v1392
        %v1394 = vmul.f32 %v1389, %v1393
        %1395 = vset.pattern.permute.xlu0 1
        %1396 = vperm.xlu0 %1395, %v1272
        %v1397 = vpop.permute.xlu0 %1396
        %vm1398 = vcmp.eq.s32.totalorder %v1397, 1
        %v1399 = vsel %vm1398, %v1394, 0.0
        %v1400 = vadd.f32 %v1278, %v1399
        %v1401 = vsel %vm1398, %v1394, %v1277
        %v1402 = vsel %vm1398, %v1392, %v1279
        %v1403 = vld [vmem:[#allocation2 + $0x40] sm:$0xff]
        %v1404 = vld [vmem:[#allocation2 + $0x48] sm:$0xff]
        %v1405 = vld [vmem:[#allocation2 + $0x50] sm:$0xff]
        %v1406 = vld [vmem:[#allocation2 + $0x58] sm:$0xff]
        %v1407 = vpack.c.bf16 %v1401, %v1401
        %1408 = vmatprep.subr.bf16.mxu0 %v1125
        %1409 = vmatpush1.bf16.msra.mxu0 %v1124
        %1410 = vmatprep.subr.bf16.mxu0 %v1121
        %1411 = vmatpush1.bf16.msra.mxu0 %v1120
        %1412 = vmatprep.subr.bf16.mxu0 %v1117
        %1413 = vmatpush1.bf16.msra.mxu0 %v1116
        %1414 = vmatprep.subr.bf16.mxu0 %v1113
        %1415 = vmatpush1.bf16.msra.mxu0 %v1112
        %1416 = vmatprep.subr.bf16.mxu0 %v1109
        %1417 = vmatpush1.bf16.msra.mxu0 %v1108
        %1418 = vmatprep.subr.bf16.mxu0 %v1105
        %1419 = vmatpush1.bf16.msra.mxu0 %v1104
        %1420 = vmatprep.subr.bf16.mxu0 %v1101
        %1421 = vmatpush1.bf16.msra.mxu0 %v1100
        %1422 = vmatprep.subr.bf16.mxu0 %v1097
        %1423 = vmatpush1.bf16.msra.mxu0 %v1096
        %1424 = vmatprep.subr.bf16.mxu0 0
        %1425 = vmatpush2.bf16.msra.mxu0 0
        %1426 = vmatprep.subr.bf16.mxu0 0
        %1427 = vmatpush2.bf16.msra.mxu0 0
        %1428 = vmatprep.subr.bf16.mxu0 0
        %1429 = vmatpush2.bf16.msra.mxu0 0
        %1430 = vmatprep.subr.bf16.mxu0 0
        %1431 = vmatpush2.bf16.msra.mxu0 0
        %1432 = vmatprep.subr.bf16.mxu0 0
        %1433 = vmatpush2.bf16.msra.mxu0 0
        %1434 = vmatprep.subr.bf16.mxu0 0
        %1435 = vmatpush2.bf16.msra.mxu0 0
        %1436 = vmatprep.subr.bf16.mxu0 0
        %1437 = vmatpush2.bf16.msra.mxu0 0
        %1438 = vmatprep.subr.bf16.mxu0 0
        %1439 = vmatpush2.bf16.msra.mxu0 0
        %1440 = vmatprep.mubr.bf16.mxu0 0
        %1441 = vmatmul.mubr.bf16.gmra.mxu0 %v1407
        %v1442 = vpop.f32.mrf.mxu0
        %v1443 = vadd.f32 0.0, %v1442
        %v1444 = vpop.f32.mrf.mxu0
        %v1445 = vadd.f32 0.0, %v1444
        %v1446 = vpop.f32.mrf.mxu0
        %v1447 = vpop.f32.mrf.mxu0
        %1448 = vdwg.mxu0
        %1449 = vmatprep.subr.bf16.mxu0 %v1127
        %1450 = vmatpush1.bf16.msra.mxu0 %v1126
        %1451 = vmatprep.subr.bf16.mxu0 %v1123
        %1452 = vmatpush1.bf16.msra.mxu0 %v1122
        %1453 = vmatprep.subr.bf16.mxu0 %v1119
        %1454 = vmatpush1.bf16.msra.mxu0 %v1118
        %1455 = vmatprep.subr.bf16.mxu0 %v1115
        %1456 = vmatpush1.bf16.msra.mxu0 %v1114
        %1457 = vmatprep.subr.bf16.mxu0 %v1111
        %1458 = vmatpush1.bf16.msra.mxu0 %v1110
        %1459 = vmatprep.subr.bf16.mxu0 %v1107
        %1460 = vmatpush1.bf16.msra.mxu0 %v1106
        %1461 = vmatprep.subr.bf16.mxu0 %v1103
        %1462 = vmatpush1.bf16.msra.mxu0 %v1102
        %1463 = vmatprep.subr.bf16.mxu0 %v1099
        %1464 = vmatpush1.bf16.msra.mxu0 %v1098
        %1465 = vmatprep.subr.bf16.mxu0 0
        %1466 = vmatpush2.bf16.msra.mxu0 0
        %1467 = vmatprep.subr.bf16.mxu0 0
        %1468 = vmatpush2.bf16.msra.mxu0 0
        %1469 = vmatprep.subr.bf16.mxu0 0
        %1470 = vmatpush2.bf16.msra.mxu0 0
        %1471 = vmatprep.subr.bf16.mxu0 0
        %1472 = vmatpush2.bf16.msra.mxu0 0
        %1473 = vmatprep.subr.bf16.mxu0 0
        %1474 = vmatpush2.bf16.msra.mxu0 0
        %1475 = vmatprep.subr.bf16.mxu0 0
        %1476 = vmatpush2.bf16.msra.mxu0 0
        %1477 = vmatprep.subr.bf16.mxu0 0
        %1478 = vmatpush2.bf16.msra.mxu0 0
        %1479 = vmatprep.subr.bf16.mxu0 0
        %1480 = vmatpush2.bf16.msra.mxu0 0
        %1481 = vmatprep.mubr.bf16.mxu0 0
        %1482 = vmatmul.mubr.bf16.gmra.mxu0 %v1407
        %v1483 = vpop.f32.mrf.mxu0
        %v1484 = vadd.f32 0.0, %v1483
        %v1485 = vpop.f32.mrf.mxu0
        %v1486 = vadd.f32 0.0, %v1485
        %v1487 = vpop.f32.mrf.mxu0
        %v1488 = vpop.f32.mrf.mxu0
        %1489 = vdwg.mxu0
        %v1490 = vadd.f32 %v1403, %v1443
        %v1491 = vadd.f32 %v1404, %v1445
        %v1492 = vadd.f32 %v1405, %v1484
        %v1493 = vadd.f32 %v1406, %v1486
        %v1494 = vxor.u32 %v1490, 2147483648
        %v1495 = vmul.f32 %v1494, 1.442695
        %v1496 = vpow.pop %v1495
        %v1497 = vadd.f32 %v1496, 1.0
        %v1498 = vrcp.pop %v1497
        %v1499 = vmul.f32 1.0, %v1498
        %v1500 = vxor.u32 %v1491, 2147483648
        %v1501 = vmul.f32 %v1500, 1.442695
        %v1502 = vpow.pop %v1501
        %v1503 = vadd.f32 %v1502, 1.0
        %v1504 = vrcp.pop %v1503
        %v1505 = vmul.f32 1.0, %v1504
        %v1506 = vtanh.pop %v1492
        %v1507 = vxor.u32 %v1493, 2147483648
        %v1508 = vmul.f32 %v1507, 1.442695
        %v1509 = vpow.pop %v1508
        %v1510 = vadd.f32 %v1509, 1.0
        %v1511 = vrcp.pop %v1510
        %v1512 = vmul.f32 1.0, %v1511
        %v1513 = vmul.f32 %v1505, %v1402
        %v1514 = vmul.f32 %v1499, %v1506
        %v1515 = vadd.f32 %v1513, %v1514
        %v1516 = vtanh.pop %v1515
        %v1517 = vmul.f32 %v1512, %v1516
        %1518 = vset.pattern.permute.xlu0 2
        %1519 = vperm.xlu0 %1518, %v1272
        %v1520 = vpop.permute.xlu0 %1519
        %vm1521 = vcmp.eq.s32.totalorder %v1520, 1
        %v1522 = vsel %vm1521, %v1517, 0.0
        %v1523 = vadd.f32 %v1400, %v1522
        %v1524 = vsel %vm1521, %v1517, %v1401
        %v1525 = vsel %vm1521, %v1515, %v1402
        %v1526 = vld [vmem:[#allocation2 + $0x60] sm:$0xff]
        %v1527 = vld [vmem:[#allocation2 + $0x68] sm:$0xff]
        %v1528 = vld [vmem:[#allocation2 + $0x70] sm:$0xff]
        %v1529 = vld [vmem:[#allocation2 + $0x78] sm:$0xff]
        %v1530 = vpack.c.bf16 %v1524, %v1524
        %1531 = vmatprep.subr.bf16.mxu0 %v1125
        %1532 = vmatpush1.bf16.msra.mxu0 %v1124
        %1533 = vmatprep.subr.bf16.mxu0 %v1121
        %1534 = vmatpush1.bf16.msra.mxu0 %v1120
        %1535 = vmatprep.subr.bf16.mxu0 %v1117
        %1536 = vmatpush1.bf16.msra.mxu0 %v1116
        %1537 = vmatprep.subr.bf16.mxu0 %v1113
        %1538 = vmatpush1.bf16.msra.mxu0 %v1112
        %1539 = vmatprep.subr.bf16.mxu0 %v1109
        %1540 = vmatpush1.bf16.msra.mxu0 %v1108
        %1541 = vmatprep.subr.bf16.mxu0 %v1105
        %1542 = vmatpush1.bf16.msra.mxu0 %v1104
        %1543 = vmatprep.subr.bf16.mxu0 %v1101
        %1544 = vmatpush1.bf16.msra.mxu0 %v1100
        %1545 = vmatprep.subr.bf16.mxu0 %v1097
        %1546 = vmatpush1.bf16.msra.mxu0 %v1096
        %1547 = vmatprep.subr.bf16.mxu0 0
        %1548 = vmatpush2.bf16.msra.mxu0 0
        %1549 = vmatprep.subr.bf16.mxu0 0
        %1550 = vmatpush2.bf16.msra.mxu0 0
        %1551 = vmatprep.subr.bf16.mxu0 0
        %1552 = vmatpush2.bf16.msra.mxu0 0
        %1553 = vmatprep.subr.bf16.mxu0 0
        %1554 = vmatpush2.bf16.msra.mxu0 0
        %1555 = vmatprep.subr.bf16.mxu0 0
        %1556 = vmatpush2.bf16.msra.mxu0 0
        %1557 = vmatprep.subr.bf16.mxu0 0
        %1558 = vmatpush2.bf16.msra.mxu0 0
        %1559 = vmatprep.subr.bf16.mxu0 0
        %1560 = vmatpush2.bf16.msra.mxu0 0
        %1561 = vmatprep.subr.bf16.mxu0 0
        %1562 = vmatpush2.bf16.msra.mxu0 0
        %1563 = vmatprep.mubr.bf16.mxu0 0
        %1564 = vmatmul.mubr.bf16.gmra.mxu0 %v1530
        %v1565 = vpop.f32.mrf.mxu0
        %v1566 = vadd.f32 0.0, %v1565
        %v1567 = vpop.f32.mrf.mxu0
        %v1568 = vadd.f32 0.0, %v1567
        %v1569 = vpop.f32.mrf.mxu0
        %v1570 = vpop.f32.mrf.mxu0
        %1571 = vdwg.mxu0
        %1572 = vmatprep.subr.bf16.mxu0 %v1127
        %1573 = vmatpush1.bf16.msra.mxu0 %v1126
        %1574 = vmatprep.subr.bf16.mxu0 %v1123
        %1575 = vmatpush1.bf16.msra.mxu0 %v1122
        %1576 = vmatprep.subr.bf16.mxu0 %v1119
        %1577 = vmatpush1.bf16.msra.mxu0 %v1118
        %1578 = vmatprep.subr.bf16.mxu0 %v1115
        %1579 = vmatpush1.bf16.msra.mxu0 %v1114
        %1580 = vmatprep.subr.bf16.mxu0 %v1111
        %1581 = vmatpush1.bf16.msra.mxu0 %v1110
        %1582 = vmatprep.subr.bf16.mxu0 %v1107
        %1583 = vmatpush1.bf16.msra.mxu0 %v1106
        %1584 = vmatprep.subr.bf16.mxu0 %v1103
        %1585 = vmatpush1.bf16.msra.mxu0 %v1102
        %1586 = vmatprep.subr.bf16.mxu0 %v1099
        %1587 = vmatpush1.bf16.msra.mxu0 %v1098
        %1588 = vmatprep.subr.bf16.mxu0 0
        %1589 = vmatpush2.bf16.msra.mxu0 0
        %1590 = vmatprep.subr.bf16.mxu0 0
        %1591 = vmatpush2.bf16.msra.mxu0 0
        %1592 = vmatprep.subr.bf16.mxu0 0
        %1593 = vmatpush2.bf16.msra.mxu0 0
        %1594 = vmatprep.subr.bf16.mxu0 0
        %1595 = vmatpush2.bf16.msra.mxu0 0
        %1596 = vmatprep.subr.bf16.mxu0 0
        %1597 = vmatpush2.bf16.msra.mxu0 0
        %1598 = vmatprep.subr.bf16.mxu0 0
        %1599 = vmatpush2.bf16.msra.mxu0 0
        %1600 = vmatprep.subr.bf16.mxu0 0
        %1601 = vmatpush2.bf16.msra.mxu0 0
        %1602 = vmatprep.subr.bf16.mxu0 0
        %1603 = vmatpush2.bf16.msra.mxu0 0
        %1604 = vmatprep.mubr.bf16.mxu0 0
        %1605 = vmatmul.mubr.bf16.gmra.mxu0 %v1530
        %v1606 = vpop.f32.mrf.mxu0
        %v1607 = vadd.f32 0.0, %v1606
        %v1608 = vpop.f32.mrf.mxu0
        %v1609 = vadd.f32 0.0, %v1608
        %v1610 = vpop.f32.mrf.mxu0
        %v1611 = vpop.f32.mrf.mxu0
        %1612 = vdwg.mxu0
        %v1613 = vadd.f32 %v1526, %v1566
        %v1614 = vadd.f32 %v1527, %v1568
        %v1615 = vadd.f32 %v1528, %v1607
        %v1616 = vadd.f32 %v1529, %v1609
        %v1617 = vxor.u32 %v1613, 2147483648
        %v1618 = vmul.f32 %v1617, 1.442695
        %v1619 = vpow.pop %v1618
        %v1620 = vadd.f32 %v1619, 1.0
        %v1621 = vrcp.pop %v1620
        %v1622 = vmul.f32 1.0, %v1621
        %v1623 = vxor.u32 %v1614, 2147483648
        %v1624 = vmul.f32 %v1623, 1.442695
        %v1625 = vpow.pop %v1624
        %v1626 = vadd.f32 %v1625, 1.0
        %v1627 = vrcp.pop %v1626
        %v1628 = vmul.f32 1.0, %v1627
        %v1629 = vtanh.pop %v1615
        %v1630 = vxor.u32 %v1616, 2147483648
        %v1631 = vmul.f32 %v1630, 1.442695
        %v1632 = vpow.pop %v1631
        %v1633 = vadd.f32 %v1632, 1.0
        %v1634 = vrcp.pop %v1633
        %v1635 = vmul.f32 1.0, %v1634
        %v1636 = vmul.f32 %v1628, %v1525
        %v1637 = vmul.f32 %v1622, %v1629
        %v1638 = vadd.f32 %v1636, %v1637
        %v1639 = vtanh.pop %v1638
        %v1640 = vmul.f32 %v1635, %v1639
        %1641 = vset.pattern.permute.xlu0 3
        %1642 = vperm.xlu0 %1641, %v1272
        %v1643 = vpop.permute.xlu0 %1642
        %vm1644 = vcmp.eq.s32.totalorder %v1643, 1
        %v1645 = vsel %vm1644, %v1640, 0.0
        %v1646 = vadd.f32 %v1523, %v1645
        %v1647 = vsel %vm1644, %v1640, %v1524
        %v1648 = vsel %vm1644, %v1638, %v1525
        %v1649 = vld [vmem:[#allocation2 + $0x80] sm:$0xff]
        %v1650 = vld [vmem:[#allocation2 + $0x88] sm:$0xff]
        %v1651 = vld [vmem:[#allocation2 + $0x90] sm:$0xff]
        %v1652 = vld [vmem:[#allocation2 + $0x98] sm:$0xff]
        %v1653 = vpack.c.bf16 %v1647, %v1647
        %1654 = vmatprep.subr.bf16.mxu0 %v1125
        %1655 = vmatpush1.bf16.msra.mxu0 %v1124
        %1656 = vmatprep.subr.bf16.mxu0 %v1121
        %1657 = vmatpush1.bf16.msra.mxu0 %v1120
        %1658 = vmatprep.subr.bf16.mxu0 %v1117
        %1659 = vmatpush1.bf16.msra.mxu0 %v1116
        %1660 = vmatprep.subr.bf16.mxu0 %v1113
        %1661 = vmatpush1.bf16.msra.mxu0 %v1112
        %1662 = vmatprep.subr.bf16.mxu0 %v1109
        %1663 = vmatpush1.bf16.msra.mxu0 %v1108
        %1664 = vmatprep.subr.bf16.mxu0 %v1105
        %1665 = vmatpush1.bf16.msra.mxu0 %v1104
        %1666 = vmatprep.subr.bf16.mxu0 %v1101
        %1667 = vmatpush1.bf16.msra.mxu0 %v1100
        %1668 = vmatprep.subr.bf16.mxu0 %v1097
        %1669 = vmatpush1.bf16.msra.mxu0 %v1096
        %1670 = vmatprep.subr.bf16.mxu0 0
        %1671 = vmatpush2.bf16.msra.mxu0 0
        %1672 = vmatprep.subr.bf16.mxu0 0
        %1673 = vmatpush2.bf16.msra.mxu0 0
        %1674 = vmatprep.subr.bf16.mxu0 0
        %1675 = vmatpush2.bf16.msra.mxu0 0
        %1676 = vmatprep.subr.bf16.mxu0 0
        %1677 = vmatpush2.bf16.msra.mxu0 0
        %1678 = vmatprep.subr.bf16.mxu0 0
        %1679 = vmatpush2.bf16.msra.mxu0 0
        %1680 = vmatprep.subr.bf16.mxu0 0
        %1681 = vmatpush2.bf16.msra.mxu0 0
        %1682 = vmatprep.subr.bf16.mxu0 0
        %1683 = vmatpush2.bf16.msra.mxu0 0
        %1684 = vmatprep.subr.bf16.mxu0 0
        %1685 = vmatpush2.bf16.msra.mxu0 0
        %1686 = vmatprep.mubr.bf16.mxu0 0
        %1687 = vmatmul.mubr.bf16.gmra.mxu0 %v1653
        %v1688 = vpop.f32.mrf.mxu0
        %v1689 = vadd.f32 0.0, %v1688
        %v1690 = vpop.f32.mrf.mxu0
        %v1691 = vadd.f32 0.0, %v1690
        %v1692 = vpop.f32.mrf.mxu0
        %v1693 = vpop.f32.mrf.mxu0
        %1694 = vdwg.mxu0
        %1695 = vmatprep.subr.bf16.mxu0 %v1127
        %1696 = vmatpush1.bf16.msra.mxu0 %v1126
        %1697 = vmatprep.subr.bf16.mxu0 %v1123
        %1698 = vmatpush1.bf16.msra.mxu0 %v1122
        %1699 = vmatprep.subr.bf16.mxu0 %v1119
        %1700 = vmatpush1.bf16.msra.mxu0 %v1118
        %1701 = vmatprep.subr.bf16.mxu0 %v1115
        %1702 = vmatpush1.bf16.msra.mxu0 %v1114
        %1703 = vmatprep.subr.bf16.mxu0 %v1111
        %1704 = vmatpush1.bf16.msra.mxu0 %v1110
        %1705 = vmatprep.subr.bf16.mxu0 %v1107
        %1706 = vmatpush1.bf16.msra.mxu0 %v1106
        %1707 = vmatprep.subr.bf16.mxu0 %v1103
        %1708 = vmatpush1.bf16.msra.mxu0 %v1102
        %1709 = vmatprep.subr.bf16.mxu0 %v1099
        %1710 = vmatpush1.bf16.msra.mxu0 %v1098
        %1711 = vmatprep.subr.bf16.mxu0 0
        %1712 = vmatpush2.bf16.msra.mxu0 0
        %1713 = vmatprep.subr.bf16.mxu0 0
        %1714 = vmatpush2.bf16.msra.mxu0 0
        %1715 = vmatprep.subr.bf16.mxu0 0
        %1716 = vmatpush2.bf16.msra.mxu0 0
        %1717 = vmatprep.subr.bf16.mxu0 0
        %1718 = vmatpush2.bf16.msra.mxu0 0
        %1719 = vmatprep.subr.bf16.mxu0 0
        %1720 = vmatpush2.bf16.msra.mxu0 0
        %1721 = vmatprep.subr.bf16.mxu0 0
        %1722 = vmatpush2.bf16.msra.mxu0 0
        %1723 = vmatprep.subr.bf16.mxu0 0
        %1724 = vmatpush2.bf16.msra.mxu0 0
        %1725 = vmatprep.subr.bf16.mxu0 0
        %1726 = vmatpush2.bf16.msra.mxu0 0
        %1727 = vmatprep.mubr.bf16.mxu0 0
        %1728 = vmatmul.mubr.bf16.gmra.mxu0 %v1653
        %v1729 = vpop.f32.mrf.mxu0
        %v1730 = vadd.f32 0.0, %v1729
        %v1731 = vpop.f32.mrf.mxu0
        %v1732 = vadd.f32 0.0, %v1731
        %v1733 = vpop.f32.mrf.mxu0
        %v1734 = vpop.f32.mrf.mxu0
        %1735 = vdwg.mxu0
        %v1736 = vadd.f32 %v1649, %v1689
        %v1737 = vadd.f32 %v1650, %v1691
        %v1738 = vadd.f32 %v1651, %v1730
        %v1739 = vadd.f32 %v1652, %v1732
        %v1740 = vxor.u32 %v1736, 2147483648
        %v1741 = vmul.f32 %v1740, 1.442695
        %v1742 = vpow.pop %v1741
        %v1743 = vadd.f32 %v1742, 1.0
        %v1744 = vrcp.pop %v1743
        %v1745 = vmul.f32 1.0, %v1744
        %v1746 = vxor.u32 %v1737, 2147483648
        %v1747 = vmul.f32 %v1746, 1.442695
        %v1748 = vpow.pop %v1747
        %v1749 = vadd.f32 %v1748, 1.0
        %v1750 = vrcp.pop %v1749
        %v1751 = vmul.f32 1.0, %v1750
        %v1752 = vtanh.pop %v1738
        %v1753 = vxor.u32 %v1739, 2147483648
        %v1754 = vmul.f32 %v1753, 1.442695
        %v1755 = vpow.pop %v1754
        %v1756 = vadd.f32 %v1755, 1.0
        %v1757 = vrcp.pop %v1756
        %v1758 = vmul.f32 1.0, %v1757
        %v1759 = vmul.f32 %v1751, %v1648
        %v1760 = vmul.f32 %v1745, %v1752
        %v1761 = vadd.f32 %v1759, %v1760
        %v1762 = vtanh.pop %v1761
        %v1763 = vmul.f32 %v1758, %v1762
        %1764 = vset.pattern.permute.xlu0 4
        %1765 = vperm.xlu0 %1764, %v1272
        %v1766 = vpop.permute.xlu0 %1765
        %vm1767 = vcmp.eq.s32.totalorder %v1766, 1
        %v1768 = vsel %vm1767, %v1763, 0.0
        %v1769 = vadd.f32 %v1646, %v1768
        %v1770 = vsel %vm1767, %v1763, %v1647
        %v1771 = vsel %vm1767, %v1761, %v1648
        %v1772 = vld [vmem:[#allocation2 + $0xa0] sm:$0xff]
        %v1773 = vld [vmem:[#allocation2 + $0xa8] sm:$0xff]
        %v1774 = vld [vmem:[#allocation2 + $0xb0] sm:$0xff]
        %v1775 = vld [vmem:[#allocation2 + $0xb8] sm:$0xff]
        %v1776 = vpack.c.bf16 %v1770, %v1770
        %1777 = vmatprep.subr.bf16.mxu0 %v1125
        %1778 = vmatpush1.bf16.msra.mxu0 %v1124
        %1779 = vmatprep.subr.bf16.mxu0 %v1121
        %1780 = vmatpush1.bf16.msra.mxu0 %v1120
        %1781 = vmatprep.subr.bf16.mxu0 %v1117
        %1782 = vmatpush1.bf16.msra.mxu0 %v1116
        %1783 = vmatprep.subr.bf16.mxu0 %v1113
        %1784 = vmatpush1.bf16.msra.mxu0 %v1112
        %1785 = vmatprep.subr.bf16.mxu0 %v1109
        %1786 = vmatpush1.bf16.msra.mxu0 %v1108
        %1787 = vmatprep.subr.bf16.mxu0 %v1105
        %1788 = vmatpush1.bf16.msra.mxu0 %v1104
        %1789 = vmatprep.subr.bf16.mxu0 %v1101
        %1790 = vmatpush1.bf16.msra.mxu0 %v1100
        %1791 = vmatprep.subr.bf16.mxu0 %v1097
        %1792 = vmatpush1.bf16.msra.mxu0 %v1096
        %1793 = vmatprep.subr.bf16.mxu0 0
        %1794 = vmatpush2.bf16.msra.mxu0 0
        %1795 = vmatprep.subr.bf16.mxu0 0
        %1796 = vmatpush2.bf16.msra.mxu0 0
        %1797 = vmatprep.subr.bf16.mxu0 0
        %1798 = vmatpush2.bf16.msra.mxu0 0
        %1799 = vmatprep.subr.bf16.mxu0 0
        %1800 = vmatpush2.bf16.msra.mxu0 0
        %1801 = vmatprep.subr.bf16.mxu0 0
        %1802 = vmatpush2.bf16.msra.mxu0 0
        %1803 = vmatprep.subr.bf16.mxu0 0
        %1804 = vmatpush2.bf16.msra.mxu0 0
        %1805 = vmatprep.subr.bf16.mxu0 0
        %1806 = vmatpush2.bf16.msra.mxu0 0
        %1807 = vmatprep.subr.bf16.mxu0 0
        %1808 = vmatpush2.bf16.msra.mxu0 0
        %1809 = vmatprep.mubr.bf16.mxu0 0
        %1810 = vmatmul.mubr.bf16.gmra.mxu0 %v1776
        %v1811 = vpop.f32.mrf.mxu0
        %v1812 = vadd.f32 0.0, %v1811
        %v1813 = vpop.f32.mrf.mxu0
        %v1814 = vadd.f32 0.0, %v1813
        %v1815 = vpop.f32.mrf.mxu0
        %v1816 = vpop.f32.mrf.mxu0
        %1817 = vdwg.mxu0
        %1818 = vmatprep.subr.bf16.mxu0 %v1127
        %1819 = vmatpush1.bf16.msra.mxu0 %v1126
        %1820 = vmatprep.subr.bf16.mxu0 %v1123
        %1821 = vmatpush1.bf16.msra.mxu0 %v1122
        %1822 = vmatprep.subr.bf16.mxu0 %v1119
        %1823 = vmatpush1.bf16.msra.mxu0 %v1118
        %1824 = vmatprep.subr.bf16.mxu0 %v1115
        %1825 = vmatpush1.bf16.msra.mxu0 %v1114
        %1826 = vmatprep.subr.bf16.mxu0 %v1111
        %1827 = vmatpush1.bf16.msra.mxu0 %v1110
        %1828 = vmatprep.subr.bf16.mxu0 %v1107
        %1829 = vmatpush1.bf16.msra.mxu0 %v1106
        %1830 = vmatprep.subr.bf16.mxu0 %v1103
        %1831 = vmatpush1.bf16.msra.mxu0 %v1102
        %1832 = vmatprep.subr.bf16.mxu0 %v1099
        %1833 = vmatpush1.bf16.msra.mxu0 %v1098
        %1834 = vmatprep.subr.bf16.mxu0 0
        %1835 = vmatpush2.bf16.msra.mxu0 0
        %1836 = vmatprep.subr.bf16.mxu0 0
        %1837 = vmatpush2.bf16.msra.mxu0 0
        %1838 = vmatprep.subr.bf16.mxu0 0
        %1839 = vmatpush2.bf16.msra.mxu0 0
        %1840 = vmatprep.subr.bf16.mxu0 0
        %1841 = vmatpush2.bf16.msra.mxu0 0
        %1842 = vmatprep.subr.bf16.mxu0 0
        %1843 = vmatpush2.bf16.msra.mxu0 0
        %1844 = vmatprep.subr.bf16.mxu0 0
        %1845 = vmatpush2.bf16.msra.mxu0 0
        %1846 = vmatprep.subr.bf16.mxu0 0
        %1847 = vmatpush2.bf16.msra.mxu0 0
        %1848 = vmatprep.subr.bf16.mxu0 0
        %1849 = vmatpush2.bf16.msra.mxu0 0
        %1850 = vmatprep.mubr.bf16.mxu0 0
        %1851 = vmatmul.mubr.bf16.gmra.mxu0 %v1776
        %v1852 = vpop.f32.mrf.mxu0
        %v1853 = vadd.f32 0.0, %v1852
        %v1854 = vpop.f32.mrf.mxu0
        %v1855 = vadd.f32 0.0, %v1854
        %v1856 = vpop.f32.mrf.mxu0
        %v1857 = vpop.f32.mrf.mxu0
        %1858 = vdwg.mxu0
        %v1859 = vadd.f32 %v1772, %v1812
        %v1860 = vadd.f32 %v1773, %v1814
        %v1861 = vadd.f32 %v1774, %v1853
        %v1862 = vadd.f32 %v1775, %v1855
        %v1863 = vxor.u32 %v1859, 2147483648
        %v1864 = vmul.f32 %v1863, 1.442695
        %v1865 = vpow.pop %v1864
        %v1866 = vadd.f32 %v1865, 1.0
        %v1867 = vrcp.pop %v1866
        %v1868 = vmul.f32 1.0, %v1867
        %v1869 = vxor.u32 %v1860, 2147483648
        %v1870 = vmul.f32 %v1869, 1.442695
        %v1871 = vpow.pop %v1870
        %v1872 = vadd.f32 %v1871, 1.0
        %v1873 = vrcp.pop %v1872
        %v1874 = vmul.f32 1.0, %v1873
        %v1875 = vtanh.pop %v1861
        %v1876 = vxor.u32 %v1862, 2147483648
        %v1877 = vmul.f32 %v1876, 1.442695
        %v1878 = vpow.pop %v1877
        %v1879 = vadd.f32 %v1878, 1.0
        %v1880 = vrcp.pop %v1879
        %v1881 = vmul.f32 1.0, %v1880
        %v1882 = vmul.f32 %v1874, %v1771
        %v1883 = vmul.f32 %v1868, %v1875
        %v1884 = vadd.f32 %v1882, %v1883
        %v1885 = vtanh.pop %v1884
        %v1886 = vmul.f32 %v1881, %v1885
        %1887 = vset.pattern.permute.xlu0 5
        %1888 = vperm.xlu0 %1887, %v1272
        %v1889 = vpop.permute.xlu0 %1888
        %vm1890 = vcmp.eq.s32.totalorder %v1889, 1
        %v1891 = vsel %vm1890, %v1886, 0.0
        %v1892 = vadd.f32 %v1769, %v1891
        %v1893 = vsel %vm1890, %v1886, %v1770
        %v1894 = vsel %vm1890, %v1884, %v1771
        %v1895 = vld [vmem:[#allocation2 + $0xc0] sm:$0xff]
        %v1896 = vld [vmem:[#allocation2 + $0xc8] sm:$0xff]
        %v1897 = vld [vmem:[#allocation2 + $0xd0] sm:$0xff]
        %v1898 = vld [vmem:[#allocation2 + $0xd8] sm:$0xff]
        %v1899 = vpack.c.bf16 %v1893, %v1893
        %1900 = vmatprep.subr.bf16.mxu0 %v1125
        %1901 = vmatpush1.bf16.msra.mxu0 %v1124
        %1902 = vmatprep.subr.bf16.mxu0 %v1121
        %1903 = vmatpush1.bf16.msra.mxu0 %v1120
        %1904 = vmatprep.subr.bf16.mxu0 %v1117
        %1905 = vmatpush1.bf16.msra.mxu0 %v1116
        %1906 = vmatprep.subr.bf16.mxu0 %v1113
        %1907 = vmatpush1.bf16.msra.mxu0 %v1112
        %1908 = vmatprep.subr.bf16.mxu0 %v1109
        %1909 = vmatpush1.bf16.msra.mxu0 %v1108
        %1910 = vmatprep.subr.bf16.mxu0 %v1105
        %1911 = vmatpush1.bf16.msra.mxu0 %v1104
        %1912 = vmatprep.subr.bf16.mxu0 %v1101
        %1913 = vmatpush1.bf16.msra.mxu0 %v1100
        %1914 = vmatprep.subr.bf16.mxu0 %v1097
        %1915 = vmatpush1.bf16.msra.mxu0 %v1096
        %1916 = vmatprep.subr.bf16.mxu0 0
        %1917 = vmatpush2.bf16.msra.mxu0 0
        %1918 = vmatprep.subr.bf16.mxu0 0
        %1919 = vmatpush2.bf16.msra.mxu0 0
        %1920 = vmatprep.subr.bf16.mxu0 0
        %1921 = vmatpush2.bf16.msra.mxu0 0
        %1922 = vmatprep.subr.bf16.mxu0 0
        %1923 = vmatpush2.bf16.msra.mxu0 0
        %1924 = vmatprep.subr.bf16.mxu0 0
        %1925 = vmatpush2.bf16.msra.mxu0 0
        %1926 = vmatprep.subr.bf16.mxu0 0
        %1927 = vmatpush2.bf16.msra.mxu0 0
        %1928 = vmatprep.subr.bf16.mxu0 0
        %1929 = vmatpush2.bf16.msra.mxu0 0
        %1930 = vmatprep.subr.bf16.mxu0 0
        %1931 = vmatpush2.bf16.msra.mxu0 0
        %1932 = vmatprep.mubr.bf16.mxu0 0
        %1933 = vmatmul.mubr.bf16.gmra.mxu0 %v1899
        %v1934 = vpop.f32.mrf.mxu0
        %v1935 = vadd.f32 0.0, %v1934
        %v1936 = vpop.f32.mrf.mxu0
        %v1937 = vadd.f32 0.0, %v1936
        %v1938 = vpop.f32.mrf.mxu0
        %v1939 = vpop.f32.mrf.mxu0
        %1940 = vdwg.mxu0
        %1941 = vmatprep.subr.bf16.mxu0 %v1127
        %1942 = vmatpush1.bf16.msra.mxu0 %v1126
        %1943 = vmatprep.subr.bf16.mxu0 %v1123
        %1944 = vmatpush1.bf16.msra.mxu0 %v1122
        %1945 = vmatprep.subr.bf16.mxu0 %v1119
        %1946 = vmatpush1.bf16.msra.mxu0 %v1118
        %1947 = vmatprep.subr.bf16.mxu0 %v1115
        %1948 = vmatpush1.bf16.msra.mxu0 %v1114
        %1949 = vmatprep.subr.bf16.mxu0 %v1111
        %1950 = vmatpush1.bf16.msra.mxu0 %v1110
        %1951 = vmatprep.subr.bf16.mxu0 %v1107
        %1952 = vmatpush1.bf16.msra.mxu0 %v1106
        %1953 = vmatprep.subr.bf16.mxu0 %v1103
        %1954 = vmatpush1.bf16.msra.mxu0 %v1102
        %1955 = vmatprep.subr.bf16.mxu0 %v1099
        %1956 = vmatpush1.bf16.msra.mxu0 %v1098
        %1957 = vmatprep.subr.bf16.mxu0 0
        %1958 = vmatpush2.bf16.msra.mxu0 0
        %1959 = vmatprep.subr.bf16.mxu0 0
        %1960 = vmatpush2.bf16.msra.mxu0 0
        %1961 = vmatprep.subr.bf16.mxu0 0
        %1962 = vmatpush2.bf16.msra.mxu0 0
        %1963 = vmatprep.subr.bf16.mxu0 0
        %1964 = vmatpush2.bf16.msra.mxu0 0
        %1965 = vmatprep.subr.bf16.mxu0 0
        %1966 = vmatpush2.bf16.msra.mxu0 0
        %1967 = vmatprep.subr.bf16.mxu0 0
        %1968 = vmatpush2.bf16.msra.mxu0 0
        %1969 = vmatprep.subr.bf16.mxu0 0
        %1970 = vmatpush2.bf16.msra.mxu0 0
        %1971 = vmatprep.subr.bf16.mxu0 0
        %1972 = vmatpush2.bf16.msra.mxu0 0
        %1973 = vmatprep.mubr.bf16.mxu0 0
        %1974 = vmatmul.mubr.bf16.gmra.mxu0 %v1899
        %v1975 = vpop.f32.mrf.mxu0
        %v1976 = vadd.f32 0.0, %v1975
        %v1977 = vpop.f32.mrf.mxu0
        %v1978 = vadd.f32 0.0, %v1977
        %v1979 = vpop.f32.mrf.mxu0
        %v1980 = vpop.f32.mrf.mxu0
        %1981 = vdwg.mxu0
        %v1982 = vadd.f32 %v1895, %v1935
        %v1983 = vadd.f32 %v1896, %v1937
        %v1984 = vadd.f32 %v1897, %v1976
        %v1985 = vadd.f32 %v1898, %v1978
        %v1986 = vxor.u32 %v1982, 2147483648
        %v1987 = vmul.f32 %v1986, 1.442695
        %v1988 = vpow.pop %v1987
        %v1989 = vadd.f32 %v1988, 1.0
        %v1990 = vrcp.pop %v1989
        %v1991 = vmul.f32 1.0, %v1990
        %v1992 = vxor.u32 %v1983, 2147483648
        %v1993 = vmul.f32 %v1992, 1.442695
        %v1994 = vpow.pop %v1993
        %v1995 = vadd.f32 %v1994, 1.0
        %v1996 = vrcp.pop %v1995
        %v1997 = vmul.f32 1.0, %v1996
        %v1998 = vtanh.pop %v1984
        %v1999 = vxor.u32 %v1985, 2147483648
        %v2000 = vmul.f32 %v1999, 1.442695
        %v2001 = vpow.pop %v2000
        %v2002 = vadd.f32 %v2001, 1.0
        %v2003 = vrcp.pop %v2002
        %v2004 = vmul.f32 1.0, %v2003
        %v2005 = vmul.f32 %v1997, %v1894
        %v2006 = vmul.f32 %v1991, %v1998
        %v2007 = vadd.f32 %v2005, %v2006
        %v2008 = vtanh.pop %v2007
        %v2009 = vmul.f32 %v2004, %v2008
        %2010 = vset.pattern.permute.xlu0 6
        %2011 = vperm.xlu0 %2010, %v1272
        %v2012 = vpop.permute.xlu0 %2011
        %vm2013 = vcmp.eq.s32.totalorder %v2012, 1
        %v2014 = vsel %vm2013, %v2009, 0.0
        %v2015 = vadd.f32 %v1892, %v2014
        %v2016 = vsel %vm2013, %v2009, %v1893
        %v2017 = vsel %vm2013, %v2007, %v1894
        %v2018 = vld [vmem:[#allocation2 + $0xe0] sm:$0xff]
        %v2019 = vld [vmem:[#allocation2 + $0xe8] sm:$0xff]
        %v2020 = vld [vmem:[#allocation2 + $0xf0] sm:$0xff]
        %v2021 = vld [vmem:[#allocation2 + $0xf8] sm:$0xff]
        %v2022 = vpack.c.bf16 %v2016, %v2016
        %2023 = vmatprep.subr.bf16.mxu0 %v1125
        %2024 = vmatpush1.bf16.msra.mxu0 %v1124
        %2025 = vmatprep.subr.bf16.mxu0 %v1121
        %2026 = vmatpush1.bf16.msra.mxu0 %v1120
        %2027 = vmatprep.subr.bf16.mxu0 %v1117
        %2028 = vmatpush1.bf16.msra.mxu0 %v1116
        %2029 = vmatprep.subr.bf16.mxu0 %v1113
        %2030 = vmatpush1.bf16.msra.mxu0 %v1112
        %2031 = vmatprep.subr.bf16.mxu0 %v1109
        %2032 = vmatpush1.bf16.msra.mxu0 %v1108
        %2033 = vmatprep.subr.bf16.mxu0 %v1105
        %2034 = vmatpush1.bf16.msra.mxu0 %v1104
        %2035 = vmatprep.subr.bf16.mxu0 %v1101
        %2036 = vmatpush1.bf16.msra.mxu0 %v1100
        %2037 = vmatprep.subr.bf16.mxu0 %v1097
        %2038 = vmatpush1.bf16.msra.mxu0 %v1096
        %2039 = vmatprep.subr.bf16.mxu0 0
        %2040 = vmatpush2.bf16.msra.mxu0 0
        %2041 = vmatprep.subr.bf16.mxu0 0
        %2042 = vmatpush2.bf16.msra.mxu0 0
        %2043 = vmatprep.subr.bf16.mxu0 0
        %2044 = vmatpush2.bf16.msra.mxu0 0
        %2045 = vmatprep.subr.bf16.mxu0 0
        %2046 = vmatpush2.bf16.msra.mxu0 0
        %2047 = vmatprep.subr.bf16.mxu0 0
        %2048 = vmatpush2.bf16.msra.mxu0 0
        %2049 = vmatprep.subr.bf16.mxu0 0
        %2050 = vmatpush2.bf16.msra.mxu0 0
        %2051 = vmatprep.subr.bf16.mxu0 0
        %2052 = vmatpush2.bf16.msra.mxu0 0
        %2053 = vmatprep.subr.bf16.mxu0 0
        %2054 = vmatpush2.bf16.msra.mxu0 0
        %2055 = vmatprep.mubr.bf16.mxu0 0
        %2056 = vmatmul.mubr.bf16.gmra.mxu0 %v2022
        %v2057 = vpop.f32.mrf.mxu0
        %v2058 = vadd.f32 0.0, %v2057
        %v2059 = vpop.f32.mrf.mxu0
        %v2060 = vadd.f32 0.0, %v2059
        %v2061 = vpop.f32.mrf.mxu0
        %v2062 = vpop.f32.mrf.mxu0
        %2063 = vdwg.mxu0
        %2064 = vmatprep.subr.bf16.mxu0 %v1127
        %2065 = vmatpush1.bf16.msra.mxu0 %v1126
        %2066 = vmatprep.subr.bf16.mxu0 %v1123
        %2067 = vmatpush1.bf16.msra.mxu0 %v1122
        %2068 = vmatprep.subr.bf16.mxu0 %v1119
        %2069 = vmatpush1.bf16.msra.mxu0 %v1118
        %2070 = vmatprep.subr.bf16.mxu0 %v1115
        %2071 = vmatpush1.bf16.msra.mxu0 %v1114
        %2072 = vmatprep.subr.bf16.mxu0 %v1111
        %2073 = vmatpush1.bf16.msra.mxu0 %v1110
        %2074 = vmatprep.subr.bf16.mxu0 %v1107
        %2075 = vmatpush1.bf16.msra.mxu0 %v1106
        %2076 = vmatprep.subr.bf16.mxu0 %v1103
        %2077 = vmatpush1.bf16.msra.mxu0 %v1102
        %2078 = vmatprep.subr.bf16.mxu0 %v1099
        %2079 = vmatpush1.bf16.msra.mxu0 %v1098
        %2080 = vmatprep.subr.bf16.mxu0 0
        %2081 = vmatpush2.bf16.msra.mxu0 0
        %2082 = vmatprep.subr.bf16.mxu0 0
        %2083 = vmatpush2.bf16.msra.mxu0 0
        %2084 = vmatprep.subr.bf16.mxu0 0
        %2085 = vmatpush2.bf16.msra.mxu0 0
        %2086 = vmatprep.subr.bf16.mxu0 0
        %2087 = vmatpush2.bf16.msra.mxu0 0
        %2088 = vmatprep.subr.bf16.mxu0 0
        %2089 = vmatpush2.bf16.msra.mxu0 0
        %2090 = vmatprep.subr.bf16.mxu0 0
        %2091 = vmatpush2.bf16.msra.mxu0 0
        %2092 = vmatprep.subr.bf16.mxu0 0
        %2093 = vmatpush2.bf16.msra.mxu0 0
        %2094 = vmatprep.subr.bf16.mxu0 0
        %2095 = vmatpush2.bf16.msra.mxu0 0
        %2096 = vmatprep.mubr.bf16.mxu0 0
        %2097 = vmatmul.mubr.bf16.gmra.mxu0 %v2022
        %v2098 = vpop.f32.mrf.mxu0
        %v2099 = vadd.f32 0.0, %v2098
        %v2100 = vpop.f32.mrf.mxu0
        %v2101 = vadd.f32 0.0, %v2100
        %v2102 = vpop.f32.mrf.mxu0
        %v2103 = vpop.f32.mrf.mxu0
        %2104 = vdwg.mxu0
        %v2105 = vadd.f32 %v2018, %v2058
        %v2106 = vadd.f32 %v2019, %v2060
        %v2107 = vadd.f32 %v2020, %v2099
        %v2108 = vadd.f32 %v2021, %v2101
        %v2109 = vxor.u32 %v2105, 2147483648
        %v2110 = vmul.f32 %v2109, 1.442695
        %v2111 = vpow.pop %v2110
        %v2112 = vadd.f32 %v2111, 1.0
        %v2113 = vrcp.pop %v2112
        %v2114 = vmul.f32 1.0, %v2113
        %v2115 = vxor.u32 %v2106, 2147483648
        %v2116 = vmul.f32 %v2115, 1.442695
        %v2117 = vpow.pop %v2116
        %v2118 = vadd.f32 %v2117, 1.0
        %v2119 = vrcp.pop %v2118
        %v2120 = vmul.f32 1.0, %v2119
        %v2121 = vtanh.pop %v2107
        %v2122 = vxor.u32 %v2108, 2147483648
        %v2123 = vmul.f32 %v2122, 1.442695
        %v2124 = vpow.pop %v2123
        %v2125 = vadd.f32 %v2124, 1.0
        %v2126 = vrcp.pop %v2125
        %v2127 = vmul.f32 1.0, %v2126
        %v2128 = vmul.f32 %v2120, %v2017
        %v2129 = vmul.f32 %v2114, %v2121
        %v2130 = vadd.f32 %v2128, %v2129
        %v2131 = vtanh.pop %v2130
        %v2132 = vmul.f32 %v2127, %v2131
        %2133 = vset.pattern.permute.xlu0 7
        %2134 = vperm.xlu0 %2133, %v1272
        %v2135 = vpop.permute.xlu0 %2134
        %vm2136 = vcmp.eq.s32.totalorder %v2135, 1
        %v2137 = vsel %vm2136, %v2132, 0.0
        %v2138 = vadd.f32 %v2015, %v2137
        %v2139 = vld [vmem:[%s542] sm:$0xff]
        %2141 = vset.pattern.permute.xlu0 0
        %2142 = vperm.xlu0 %2141, %v2139
        %v2143 = vpop.permute.xlu0 %2142
        %v2145 = vmul.f32 %v2138, %v2143
        %v2146 = vpack.c.bf16 %v2145, %v2145
        %v2147 = vld [vmem:[%s7] sm:$0xf]
        %v2148 = vld [vmem:[%s7 + $0x4] sm:$0xf]
        %v2149 = vld [vmem:[%s7 + $0x8] sm:$0xf]
        %v2150 = vld [vmem:[%s7 + $0xc] sm:$0xf]
        %v2151 = vld [vmem:[%s7 + $0x10] sm:$0xf]
        %v2152 = vld [vmem:[%s7 + $0x14] sm:$0xf]
        %v2153 = vld [vmem:[%s7 + $0x18] sm:$0xf]
        %v2154 = vld [vmem:[%s7 + $0x1c] sm:$0xf]
        %v2155 = vld [vmem:[%s7 + $0x20] sm:$0xf]
        %v2156 = vld [vmem:[%s7 + $0x24] sm:$0xf]
        %v2157 = vld [vmem:[%s7 + $0x28] sm:$0xf]
        %v2158 = vld [vmem:[%s7 + $0x2c] sm:$0xf]
        %v2159 = vld [vmem:[%s7 + $0x30] sm:$0xf]
        %v2160 = vld [vmem:[%s7 + $0x34] sm:$0xf]
        %v2161 = vld [vmem:[%s7 + $0x38] sm:$0xf]
        %v2162 = vld [vmem:[%s7 + $0x3c] sm:$0xf]
        %v2163 = vld [vmem:[%s8] sm:$0x1]
        %v2165 = vlaneseq
        %v2166 = vshrl.u32 %v2165, 7
        %v2167 = vsub.s32 0, %v2166
        %v2168 = vrot.slane %v2163, %v2167
        %v2186 = vunpack.c.l.b16 %v2147
        %v2187 = vunpack.c.l.b16 %v2148
        %v2188 = vunpack.c.l.b16 %v2149
        %v2189 = vunpack.c.l.b16 %v2150
        %v2190 = vunpack.c.l.b16 %v2151
        %v2191 = vunpack.c.l.b16 %v2152
        %v2192 = vunpack.c.l.b16 %v2153
        %v2193 = vunpack.c.l.b16 %v2154
        %v2194 = vunpack.c.l.b16 %v2155
        %v2195 = vunpack.c.l.b16 %v2156
        %v2196 = vunpack.c.l.b16 %v2157
        %v2197 = vunpack.c.l.b16 %v2158
        %v2198 = vunpack.c.l.b16 %v2159
        %v2199 = vunpack.c.l.b16 %v2160
        %v2200 = vunpack.c.l.b16 %v2161
        %v2201 = vunpack.c.l.b16 %v2162
        %v2202 = vpack.c.b16 %v2187, %v2186
        %v2203 = vpack.c.b16 %v2189, %v2188
        %v2204 = vpack.c.b16 %v2191, %v2190
        %v2205 = vpack.c.b16 %v2193, %v2192
        %v2206 = vpack.c.b16 %v2195, %v2194
        %v2207 = vpack.c.b16 %v2197, %v2196
        %v2208 = vpack.c.b16 %v2199, %v2198
        %v2209 = vpack.c.b16 %v2201, %v2200
        %2218 = vmatprep.subr.bf16.mxu0 0
        %2219 = vmatpush1.bf16.msra.mxu0 %v2209
        %2220 = vmatprep.subr.bf16.mxu0 0
        %2221 = vmatpush1.bf16.msra.mxu0 %v2208
        %2222 = vmatprep.subr.bf16.mxu0 0
        %2223 = vmatpush1.bf16.msra.mxu0 %v2207
        %2224 = vmatprep.subr.bf16.mxu0 0
        %2225 = vmatpush1.bf16.msra.mxu0 %v2206
        %2226 = vmatprep.subr.bf16.mxu0 0
        %2227 = vmatpush1.bf16.msra.mxu0 %v2205
        %2228 = vmatprep.subr.bf16.mxu0 0
        %2229 = vmatpush1.bf16.msra.mxu0 %v2204
        %2230 = vmatprep.subr.bf16.mxu0 0
        %2231 = vmatpush1.bf16.msra.mxu0 %v2203
        %2232 = vmatprep.subr.bf16.mxu0 0
        %2233 = vmatpush1.bf16.msra.mxu0 %v2202
        %2234 = vmatprep.subr.bf16.mxu0 0
        %2235 = vmatpush2.bf16.msra.mxu0 0
        %2236 = vmatprep.subr.bf16.mxu0 0
        %2237 = vmatpush2.bf16.msra.mxu0 0
        %2238 = vmatprep.subr.bf16.mxu0 0
        %2239 = vmatpush2.bf16.msra.mxu0 0
        %2240 = vmatprep.subr.bf16.mxu0 0
        %2241 = vmatpush2.bf16.msra.mxu0 0
        %2242 = vmatprep.subr.bf16.mxu0 0
        %2243 = vmatpush2.bf16.msra.mxu0 0
        %2244 = vmatprep.subr.bf16.mxu0 0
        %2245 = vmatpush2.bf16.msra.mxu0 0
        %2246 = vmatprep.subr.bf16.mxu0 0
        %2247 = vmatpush2.bf16.msra.mxu0 0
        %2248 = vmatprep.subr.bf16.mxu0 0
        %2249 = vmatpush2.bf16.msra.mxu0 0
        %2250 = vmatprep.mubr.bf16.mxu0 0
        %2251 = vmatmul.mubr.bf16.gmra.mxu0 %v2146
        %v2252 = vpop.f32.mrf.mxu0
        %v2253 = vadd.f32 %v2168, %v2252
        %v2254 = vpop.f32.mrf.mxu0
        %v2255 = vpop.f32.mrf.mxu0
        %v2256 = vpop.f32.mrf.mxu0
        %2257 = vdwg.mxu0
        %v2258 = vmax.f32 %v2253, 0.0
        %v2259 = vpack.c.bf16 %v2258, %v2258
        %v2260 = vld [vmem:[%s9] sm:$0xf]
        %v2261 = vld [vmem:[%s9 + $0x4] sm:$0xf]
        %v2262 = vld [vmem:[%s9 + $0x8] sm:$0xf]
        %v2263 = vld [vmem:[%s9 + $0xc] sm:$0xf]
        %v2264 = vld [vmem:[%s9 + $0x10] sm:$0xf]
        %v2265 = vld [vmem:[%s9 + $0x14] sm:$0xf]
        %v2266 = vld [vmem:[%s9 + $0x18] sm:$0xf]
        %v2267 = vld [vmem:[%s9 + $0x1c] sm:$0xf]
        %v2268 = vld [vmem:[%s9 + $0x20] sm:$0xf]
        %v2269 = vld [vmem:[%s9 + $0x24] sm:$0xf]
        %v2270 = vld [vmem:[%s9 + $0x28] sm:$0xf]
        %v2271 = vld [vmem:[%s9 + $0x2c] sm:$0xf]
        %v2272 = vld [vmem:[%s9 + $0x30] sm:$0xf]
        %v2273 = vld [vmem:[%s9 + $0x34] sm:$0xf]
        %v2274 = vld [vmem:[%s9 + $0x38] sm:$0xf]
        %v2275 = vld [vmem:[%s9 + $0x3c] sm:$0xf]
        %v2276 = vld [vmem:[%s10] sm:$0x1]
        %v2278 = vlaneseq
        %v2279 = vshrl.u32 %v2278, 7
        %v2280 = vsub.s32 0, %v2279
        %v2281 = vrot.slane %v2276, %v2280
        %v2299 = vunpack.c.l.b16 %v2260
        %v2300 = vunpack.c.l.b16 %v2261
        %v2301 = vunpack.c.l.b16 %v2262
        %v2302 = vunpack.c.l.b16 %v2263
        %v2303 = vunpack.c.l.b16 %v2264
        %v2304 = vunpack.c.l.b16 %v2265
        %v2305 = vunpack.c.l.b16 %v2266
        %v2306 = vunpack.c.l.b16 %v2267
        %v2307 = vunpack.c.l.b16 %v2268
        %v2308 = vunpack.c.l.b16 %v2269
        %v2309 = vunpack.c.l.b16 %v2270
        %v2310 = vunpack.c.l.b16 %v2271
        %v2311 = vunpack.c.l.b16 %v2272
        %v2312 = vunpack.c.l.b16 %v2273
        %v2313 = vunpack.c.l.b16 %v2274
        %v2314 = vunpack.c.l.b16 %v2275
        %v2315 = vpack.c.b16 %v2300, %v2299
        %v2316 = vpack.c.b16 %v2302, %v2301
        %v2317 = vpack.c.b16 %v2304, %v2303
        %v2318 = vpack.c.b16 %v2306, %v2305
        %v2319 = vpack.c.b16 %v2308, %v2307
        %v2320 = vpack.c.b16 %v2310, %v2309
        %v2321 = vpack.c.b16 %v2312, %v2311
        %v2322 = vpack.c.b16 %v2314, %v2313
        %2331 = vmatprep.subr.bf16.mxu0 0
        %2332 = vmatpush1.bf16.msra.mxu0 %v2322
        %2333 = vmatprep.subr.bf16.mxu0 0
        %2334 = vmatpush1.bf16.msra.mxu0 %v2321
        %2335 = vmatprep.subr.bf16.mxu0 0
        %2336 = vmatpush1.bf16.msra.mxu0 %v2320
        %2337 = vmatprep.subr.bf16.mxu0 0
        %2338 = vmatpush1.bf16.msra.mxu0 %v2319
        %2339 = vmatprep.subr.bf16.mxu0 0
        %2340 = vmatpush1.bf16.msra.mxu0 %v2318
        %2341 = vmatprep.subr.bf16.mxu0 0
        %2342 = vmatpush1.bf16.msra.mxu0 %v2317
        %2343 = vmatprep.subr.bf16.mxu0 0
        %2344 = vmatpush1.bf16.msra.mxu0 %v2316
        %2345 = vmatprep.subr.bf16.mxu0 0
        %2346 = vmatpush1.bf16.msra.mxu0 %v2315
        %2347 = vmatprep.subr.bf16.mxu0 0
        %2348 = vmatpush2.bf16.msra.mxu0 0
        %2349 = vmatprep.subr.bf16.mxu0 0
        %2350 = vmatpush2.bf16.msra.mxu0 0
        %2351 = vmatprep.subr.bf16.mxu0 0
        %2352 = vmatpush2.bf16.msra.mxu0 0
        %2353 = vmatprep.subr.bf16.mxu0 0
        %2354 = vmatpush2.bf16.msra.mxu0 0
        %2355 = vmatprep.subr.bf16.mxu0 0
        %2356 = vmatpush2.bf16.msra.mxu0 0
        %2357 = vmatprep.subr.bf16.mxu0 0
        %2358 = vmatpush2.bf16.msra.mxu0 0
        %2359 = vmatprep.subr.bf16.mxu0 0
        %2360 = vmatpush2.bf16.msra.mxu0 0
        %2361 = vmatprep.subr.bf16.mxu0 0
        %2362 = vmatpush2.bf16.msra.mxu0 0
        %2363 = vmatprep.mubr.bf16.mxu0 0
        %2364 = vmatmul.mubr.bf16.gmra.mxu0 %v2259
        %v2365 = vpop.f32.mrf.mxu0
        %v2366 = vadd.f32 %v2281, %v2365
        %v2367 = vpop.f32.mrf.mxu0
        %v2368 = vpop.f32.mrf.mxu0
        %v2369 = vpop.f32.mrf.mxu0
        %2370 = vdwg.mxu0
        %vm2371 = vcmask 15360
        %2372 = vst.msk [vmem:[%s550] sm:$0xff] %vm2371, %v2366
        %2374 = vrot.lane.b32.xlu0 %v2366, 1
        %v2375 = vpop.permute.xlu0 %2374
        %v2377 = vsub.f32 %v2366, %v2375
        %v2378 = vxor.u32 %v2377, 2147483648
        %v2379 = vmul.f32 %v2378, 1.442695
        %v2380 = vpow.pop %v2379
        %v2381 = vadd.f32 %v2380, 1.0
        %v2382 = vrcp.pop %v2381
        %v2383 = vmul.f32 1.0, %v2382
        %2385 = vrot.lane.b32.xlu0 %v2383, 127
        %v2386 = vpop.permute.xlu0 %2385
        %vm2388 = vcmask 7168
        %2389 = vst.msk [vmem:[%s554] sm:$0xff] %vm2388, %v2386
        %v2390 = vld [vmem:[%s546] sm:$0xff]
        %v2391 = vsub.f32 1.0, %v2390
        %v2392 = vsel %vm2388, %v2390, 0.0
        %2393 = vadd.xlane.f32.xlu0 %v2392
        %v2394 = vpop.xlane.xlu0 %2393
        %v2395 = vrot.slane %v2394, 4
        %v2396 = vadd.f32 %v2394, %v2395
        %v2397 = vrot.slane %v2396, 2
        %v2398 = vadd.f32 %v2396, %v2397
        %v2399 = vrot.slane %v2398, 1
        %v2400 = vadd.f32 %v2398, %v2399
        %s2401 = vtos %v2400
        %2403 = vrot.lane.b32.xlu0 %v2390, 1
        %v2404 = vpop.permute.xlu0 %2403
        %v2406 = vmul.f32 %v2383, %v2404
        %2408 = vrot.lane.b32.xlu0 %v2406, 127
        %v2409 = vpop.permute.xlu0 %2408
        %v2411 = vsel %vm2388, %v2409, 0.0
        %2412 = vadd.xlane.f32.xlu0 %v2411
        %v2413 = vpop.xlane.xlu0 %2412
        %v2414 = vrot.slane %v2413, 4
        %v2415 = vadd.f32 %v2413, %v2414
        %v2416 = vrot.slane %v2415, 2
        %v2417 = vadd.f32 %v2415, %v2416
        %v2418 = vrot.slane %v2417, 1
        %v2419 = vadd.f32 %v2417, %v2418
        %s2420 = vtos %v2419
        %v2421 = vmul.f32 %v2383, %v2383
        %v2422 = vmul.f32 %v2421, %v2404
        %2424 = vrot.lane.b32.xlu0 %v2422, 127
        %v2425 = vpop.permute.xlu0 %2424
        %v2427 = vsel %vm2388, %v2425, 0.0
        %2428 = vadd.xlane.f32.xlu0 %v2427
        %v2429 = vpop.xlane.xlu0 %2428
        %v2430 = vrot.slane %v2429, 4
        %v2431 = vadd.f32 %v2429, %v2430
        %v2432 = vrot.slane %v2431, 2
        %v2433 = vadd.f32 %v2431, %v2432
        %v2434 = vrot.slane %v2433, 1
        %v2435 = vadd.f32 %v2433, %v2434
        %s2436 = vtos %v2435
        %2438 = vrot.lane.b32.xlu0 %v2391, 1
        %v2439 = vpop.permute.xlu0 %2438
        %v2441 = vmul.f32 %v2383, %v2439
        %2443 = vrot.lane.b32.xlu0 %v2441, 127
        %v2444 = vpop.permute.xlu0 %2443
        %v2446 = vsel %vm2388, %v2444, 0.0
        %2447 = vadd.xlane.f32.xlu0 %v2446
        %v2448 = vpop.xlane.xlu0 %2447
        %v2449 = vrot.slane %v2448, 4
        %v2450 = vadd.f32 %v2448, %v2449
        %v2451 = vrot.slane %v2450, 2
        %v2452 = vadd.f32 %v2450, %v2451
        %v2453 = vrot.slane %v2452, 1
        %v2454 = vadd.f32 %v2452, %v2453
        %s2455 = vtos %v2454
        %v2456 = vmul.f32 %v2421, %v2439
        %2458 = vrot.lane.b32.xlu0 %v2456, 127
        %v2459 = vpop.permute.xlu0 %2458
        %v2461 = vsel %vm2388, %v2459, 0.0
        %2462 = vadd.xlane.f32.xlu0 %v2461
        %v2463 = vpop.xlane.xlu0 %2462
        %v2464 = vrot.slane %v2463, 4
        %v2465 = vadd.f32 %v2463, %v2464
        %v2466 = vrot.slane %v2465, 2
        %v2467 = vadd.f32 %v2465, %v2466
        %v2468 = vrot.slane %v2467, 1
        %v2469 = vadd.f32 %v2467, %v2468
        %s2470 = vtos %v2469
        %v2471 = vlaneseq
        %v2472 = vand.u32 %v2471, 127
        %vm2473 = vcmp.eq.s32.totalorder %v2472, 0
        %v2474 = vstv %s2401
        %v2475 = vsel %vm2473, %v2474, 0.0
        %vm2476 = vcmp.eq.s32.totalorder %v2472, 1
        %v2477 = vstv %s2420
        %v2478 = vsel %vm2476, %v2477, 0.0
        %v2479 = vadd.f32 %v2475, %v2478
        %vm2480 = vcmp.eq.s32.totalorder %v2472, 2
        %v2481 = vstv %s2436
        %v2482 = vsel %vm2480, %v2481, 0.0
        %v2483 = vadd.f32 %v2479, %v2482
        %vm2484 = vcmp.eq.s32.totalorder %v2472, 3
        %v2485 = vstv %s2455
        %v2486 = vsel %vm2484, %v2485, 0.0
        %v2487 = vadd.f32 %v2483, %v2486
        %vm2488 = vcmp.eq.s32.totalorder %v2472, 4
        %v2489 = vstv %s2470
        %v2490 = vsel %vm2488, %v2489, 0.0
        %v2491 = vadd.f32 %v2487, %v2490
        %2492 = vst [vmem:[%s558] sm:$0xff] %v2491
        %p2493 = scmp.lt.s32.totalorder %s29, 1
        %s2494 = scalar_select %p2493, %s29, 1
        %s2495 = smul.addr %s2494, 8
        %s2496 = scalar_lea.vmem %s11, %s2495
        %p2497 = scmp.lt.s32.totalorder %s29, 1
        %s2498 = scalar_select %p2497, %s29, 1
        %s2499 = smul.addr %s2498, 8
        %s2500 = scalar_lea.vmem %s12, %s2499
        %p2501 = scmp.lt.s32.totalorder %s29, 1
        %s2502 = scalar_select %p2501, %s29, 1
        %s2503 = smul.addr %s2502, 8
        %s2504 = scalar_lea.vmem %s13, %s2503
        // Predicated region
        $region77: #{predict_and_aucm_loss.1} parent=63 // pred_check
          %p2505 = pneg %p298
        $region78: #{predict_and_aucm_loss.1} parent=63 // pred_check_branch
          %2507 = sbr.rel (%p2505) target = $region80
        $region79: #{predict_and_aucm_loss.1} parent=63 // pred_region
          _
        $region80: #{predict_and_aucm_loss.1} parent=63 // pred_fallthru
          _
        // Predicated region
        $region81: #{predict_and_aucm_loss.1} parent=63 // pred_check
          %p2508 = pneg %p324
        $region82: #{predict_and_aucm_loss.1} parent=63 // pred_check_branch
          %2510 = sbr.rel (%p2508) target = $region84
        $region83: #{predict_and_aucm_loss.1} parent=63 // pred_region
          _
        $region84: #{predict_and_aucm_loss.1} parent=63 // pred_fallthru
          _
        // Predicated region
        $region85: #{predict_and_aucm_loss.1} parent=63 // pred_check
          %p2511 = pneg %p350
        $region86: #{predict_and_aucm_loss.1} parent=63 // pred_check_branch
          %2513 = sbr.rel (%p2511) target = $region88
        $region87: #{predict_and_aucm_loss.1} parent=63 // pred_region
          _
        $region88: #{predict_and_aucm_loss.1} parent=63 // pred_fallthru
          _
      $region64: #{predict_and_aucm_loss.1} parent=5 // pred_fallthru
        _
      %p2514 = scmp.le.s32.totalorder 2, %s24
      // Predicated region
      $region89: #{predict_and_aucm_loss.1} parent=5 // pred_check
        %p2515 = pneg %p2514
      $region90: #{predict_and_aucm_loss.1} parent=5 // pred_check_branch
        %2517 = sbr.rel (%p2515) target = $region92
      $region91: #{predict_and_aucm_loss.1} parent=5 // pred_region
        %s2518 = ssub.s32 %s24, 2
        // Predicated region
        $region93: #{predict_and_aucm_loss.1} parent=91 // pred_check
          %p2519 = pneg %p304
        $region94: #{predict_and_aucm_loss.1} parent=91 // pred_check_branch
          %2521 = sbr.rel (%p2519) target = $region96
        $region95: #{predict_and_aucm_loss.1} parent=91 // pred_region
          %p2522 = scmp.lt.s32.totalorder %s30, 1
          %s2523 = scalar_select %p2522, %s30, 1
          %s2524 = smul.addr %s2523, 8
          %s2525 = scalar_lea.vmem %s11, %s2524
        $region96: #{predict_and_aucm_loss.1} parent=91 // pred_fallthru
          _
        // Predicated region
        $region97: #{predict_and_aucm_loss.1} parent=91 // pred_check
          %p2526 = pneg %p330
        $region98: #{predict_and_aucm_loss.1} parent=91 // pred_check_branch
          %2528 = sbr.rel (%p2526) target = $region100
        $region99: #{predict_and_aucm_loss.1} parent=91 // pred_region
          %p2529 = scmp.lt.s32.totalorder %s30, 1
          %s2530 = scalar_select %p2529, %s30, 1
          %s2531 = smul.addr %s2530, 8
          %s2532 = scalar_lea.vmem %s12, %s2531
        $region100: #{predict_and_aucm_loss.1} parent=91 // pred_fallthru
          _
        // Predicated region
        $region101: #{predict_and_aucm_loss.1} parent=91 // pred_check
          %p2533 = pneg %p356
        $region102: #{predict_and_aucm_loss.1} parent=91 // pred_check_branch
          %2535 = sbr.rel (%p2533) target = $region104
        $region103: #{predict_and_aucm_loss.1} parent=91 // pred_region
          %p2536 = scmp.lt.s32.totalorder %s30, 1
          %s2537 = scalar_select %p2536, %s30, 1
          %s2538 = smul.addr %s2537, 8
          %s2539 = scalar_lea.vmem %s13, %s2538
        $region104: #{predict_and_aucm_loss.1} parent=91 // pred_fallthru
          _
      $region92: #{predict_and_aucm_loss.1} parent=5 // pred_fallthru
        _
    $region6: #{predict_and_aucm_loss.1} parent=1 // loop_footer
      %s28 = sadd.s32 1, %s24
    $region7: #{predict_and_aucm_loss.1} parent=1 // loop_footer_branch
      %23 = sbr.rel target = $region3
    $region8: #{predict_and_aucm_loss.1} parent=1 // loop_exit
      _
    %2540 = vsyncpa [#allocation4], 1
    %s2541 = scalar_lea.sflag [#allocation4], 1
    %2542 = vsyncpa %s2541, 1
    %2543 = vsyncpa [#allocation6], 1

</llo_original>
